<compile_context>
chip_gen: v6e
topology: v6e:2x2x1
jax: 0.10.0
libtpu: 0.0.40
codegen_flags: <defaults>
</compile_context>

<pallas_src>
import math

import jax
import jax.numpy as jnp
from jax.experimental import pallas as pl
from jax.experimental.pallas import tpu as pltpu

LANE = 128


def _round_up(v, m):
    return ((v + m - 1) // m) * m


# --------------------------------------------------------------------------
# Fused decoder kernel (all layers + output projection, one grid step = one
# batch tile of graphs)
# --------------------------------------------------------------------------
def _make_decoder_kernel(num_layers, K, hps, batch_tile):
    f32 = jnp.float32

    def kernel(*refs):
        it = iter(refs)
        p_ref = next(it)                                   # (K, N, N) resident
        x_ref = next(it)                                   # (Tb, N, Din0)
        layers = [tuple(next(it) for _ in range(6)) for _ in range(num_layers)]
        wp_ref = next(it)                                  # (Hp_last, Doutp)
        bp_ref = next(it)                                  # (1, Doutp)
        out_ref = next(it)                                 # (Tb, N, Doutp)
        h_out_refs = [next(it) for _ in range(num_layers)]

        supports = [p_ref[k] for k in range(K)]            # K x (N, N)
        mm = supports[0].dtype                             # matmul operand dtype

        outs = []
        h_news = [[] for _ in range(num_layers)]
        for bi in range(batch_tile):                       # static, tiny loop
            x = x_ref[bi].astype(mm)                       # (N, Din)
            for l in range(num_layers):
                h_ref, wx_ref, whg_ref, whc_ref, bzr_ref, bc_ref = layers[l]
                Hp = hps[l]
                h = h_ref[bi].astype(f32)                  # (N, Hp)

                # --- diffusion: concat over the K supports, then ONE deep
                #     contraction against the fused [z|r|c] / [z|r] slabs ----
                px_cat = jnp.concatenate(
                    [jnp.dot(pk, x, preferred_element_type=f32)
                     for pk in supports], axis=-1).astype(mm)       # (N, K*Din)
                ph_cat = jnp.concatenate(
                    [jnp.dot(pk, h.astype(mm), preferred_element_type=f32)
                     for pk in supports], axis=-1).astype(mm)       # (N, K*Hp)

                xzrc = jnp.dot(px_cat, wx_ref[...],
                               preferred_element_type=f32)          # (N, 3Hp)
                hzr = jnp.dot(ph_cat, whg_ref[...],
                              preferred_element_type=f32) + bzr_ref[...]

                gates = jax.nn.sigmoid(xzrc[:, :2 * Hp] + hzr)      # (N, 2Hp)
                z = gates[:, :Hp]                # vreg-aligned (Hp % 128 == 0)
                r = gates[:, Hp:]

                # --- candidate -------------------------------------------
                rh = (r * h).astype(mm)
                prh_cat = jnp.concatenate(
                    [jnp.dot(pk, rh, preferred_element_type=f32)
                     for pk in supports], axis=-1).astype(mm)       # (N, K*Hp)
                cc = (xzrc[:, 2 * Hp:] + bc_ref[...]
                      + jnp.dot(prh_cat, whc_ref[...],
                                preferred_element_type=f32))
                cand = jnp.tanh(cc)

                # --- blend ------------------------------------------------
                h_new = (1.0 - z) * h + z * cand                    # (N, Hp)
                h_news[l].append(h_new)
                x = h_new.astype(mm)                                # next layer

            # output projection epilogue (nn.Linear), lane-padded to Doutp
            outs.append(jnp.dot(x, wp_ref[...], preferred_element_type=f32)
                        + bp_ref[...])

        out_ref[...] = jnp.stack(outs, axis=0).astype(out_ref.dtype)
        for l in range(num_layers):
            h_out_refs[l][...] = jnp.stack(h_news[l], axis=0).astype(
                h_out_refs[l].dtype)

    return kernel


# --------------------------------------------------------------------------
# Wrapper: weight packing (fused + lane-padded slabs), BlockSpecs, pallas_call
# --------------------------------------------------------------------------
def dcgru_decoder_forward(P, x_t, h_0_l, layer_params, Wp, bp, *,
                          batch_tile=1, param_dtype=jnp.float32):
    """Mirrors DCGRU_Decoder.forward: returns (output, h_t_list)."""
    f32 = jnp.float32
    K, N, _ = P.shape
    B, _, Din0 = x_t.shape
    num_layers = len(layer_params)
    hs = [int(lp["Wc"].shape[2]) for lp in layer_params]       # Wc: (K, Din+H, H)
    hps = [_round_up(h, LANE) for h in hs]
    Dout = Wp.shape[1]
    Doutp = _round_up(Dout, LANE)
    assert B % batch_tile == 0, "batch_tile must divide batch"

    args = [P.astype(param_dtype), x_t.astype(f32)]
    in_specs = [
        pl.BlockSpec((K, N, N), lambda b: (0, 0, 0)),              # resident
        pl.BlockSpec((batch_tile, N, Din0), lambda b: (b, 0, 0)),  # x tile
    ]

    # TODO(synk): when stepping the decoder over a sequence, hoist this weight
    #             packing out of the per-step wrapper and alias the padded h
    #             inputs to the h outputs (input_output_aliases) to skip the
    #             per-step HBM round-trip of the hidden state.
    din = Din0
    for l, lp in enumerate(layer_params):
        H, Hp = hs[l], hps[l]
        din_p = din if l == 0 else hps[l - 1]        # padded input width fed in
        Wg, Wc = lp["Wg"], lp["Wc"]                  # (K, din+H, 2H) / (K, din+H, H)
        bg, bcv = lp["bg"], lp["bc"]

        # fused, lane-padded 2-D slabs: x-side [z|r|c], h-side [z|r], h-side c
        wx = jnp.zeros((K * din_p, 3 * Hp), f32)
        whg = jnp.zeros((K * Hp, 2 * Hp), f32)
        whc = jnp.zeros((K * Hp, Hp), f32)
        for k in range(K):
            r0 = k * din_p
            wx = wx.at[r0:r0 + din, 0:H].set(Wg[k, :din, 0:H])
            wx = wx.at[r0:r0 + din, Hp:Hp + H].set(Wg[k, :din, H:2 * H])
            wx = wx.at[r0:r0 + din, 2 * Hp:2 * Hp + H].set(Wc[k, :din, 0:H])
            r1 = k * Hp
            whg = whg.at[r1:r1 + H, 0:H].set(Wg[k, din:, 0:H])
            whg = whg.at[r1:r1 + H, Hp:Hp + H].set(Wg[k, din:, H:2 * H])
            whc = whc.at[r1:r1 + H, 0:H].set(Wc[k, din:, 0:H])
        bzr = (jnp.zeros((1, 2 * Hp), f32)
               .at[0, 0:H].set(bg[0:H]).at[0, Hp:Hp + H].set(bg[H:2 * H]))
        bcp = jnp.zeros((1, Hp), f32).at[0, 0:H].set(bcv)
        h0p = jnp.pad(h_0_l[l].astype(f32), ((0, 0), (0, 0), (0, Hp - H)))

        args += [h0p, wx.astype(param_dtype), whg.astype(param_dtype),
                 whc.astype(param_dtype), bzr, bcp]
        in_specs += [
            pl.BlockSpec((batch_tile, N, Hp), lambda b: (b, 0, 0)),
            pl.BlockSpec((K * din_p, 3 * Hp), lambda b: (0, 0)),
            pl.BlockSpec((K * Hp, 2 * Hp), lambda b: (0, 0)),
            pl.BlockSpec((K * Hp, Hp), lambda b: (0, 0)),
            pl.BlockSpec((1, 2 * Hp), lambda b: (0, 0)),
            pl.BlockSpec((1, Hp), lambda b: (0, 0)),
        ]
        din = H

    Hl, Hpl = hs[-1], hps[-1]
    wp_pad = jnp.zeros((Hpl, Doutp), f32).at[:Hl, :Dout].set(Wp)
    bp_pad = jnp.zeros((1, Doutp), f32).at[0, :Dout].set(bp)
    args += [wp_pad.astype(param_dtype), bp_pad]
    in_specs += [pl.BlockSpec((Hpl, Doutp), lambda b: (0, 0)),
                 pl.BlockSpec((1, Doutp), lambda b: (0, 0))]

    out_shape = tuple(
        [jax.ShapeDtypeStruct((B, N, Doutp), f32)]
        + [jax.ShapeDtypeStruct((B, N, hps[l]), f32) for l in range(num_layers)])
    out_specs = ([pl.BlockSpec((batch_tile, N, Doutp), lambda b: (b, 0, 0))]
                 + [pl.BlockSpec((batch_tile, N, hps[l]), lambda b: (b, 0, 0))
                    for l in range(num_layers)])

    # VMEM budget (resident weights + double-buffered tiles) & cost estimate.
    arg_bytes = sum(int(a.size) * a.dtype.itemsize for a in args)
    out_bytes = sum(math.prod(s.shape) * 4 for s in out_shape)
    vmem_limit = int(min(max(2 * arg_bytes + out_bytes + (4 << 20), 16 << 20),
                         48 << 20))          # stays under v7x's 64 MiB physical

    flops, trans = 0, 0
    din = Din0
    for l in range(num_layers):
        Hp = hps[l]
        din_p = din if l == 0 else hps[l - 1]
        flops += 2 * B * K * N * N * (din_p + 2 * Hp)          # diffusion
        flops += 2 * B * N * (K * din_p) * (3 * Hp)            # x-side mixing
        flops += 2 * B * N * (K * Hp) * (2 * Hp)               # gate h-side
        flops += 2 * B * N * (K * Hp) * Hp                     # cand h-side
        trans += 3 * B * N * Hp                                 # sigmoid + tanh
        din = hs[l]
    flops += 2 * B * N * hps[-1] * Doutp
    cost = pl.CostEstimate(flops=flops, transcendentals=trans,
                           bytes_accessed=arg_bytes + out_bytes)

    kernel = _make_decoder_kernel(num_layers, K, hps, batch_tile)
    outs = pl.pallas_call(
        kernel,
        out_shape=out_shape,
        grid_spec=pltpu.PrefetchScalarGridSpec(
            num_scalar_prefetch=0,
            grid=(B // batch_tile,),
            in_specs=in_specs,
            out_specs=out_specs),
        compiler_params=pltpu.CompilerParams(
            dimension_semantics=("parallel",),
            vmem_limit_bytes=vmem_limit),
        cost_estimate=cost,
    )(*args)

    output = outs[0][:, :, :Dout]
    h_t_lst = [outs[1 + l][:, :, :hs[l]] for l in range(num_layers)]
    return output, h_t_lst


# --------------------------------------------------------------------------
# Deterministic parameter init (shapes follow the PyTorch module __init__)
# --------------------------------------------------------------------------
def _xavier_normal(key, shape):
    fan_in, fan_out = shape
    std = math.sqrt(2.0 / (fan_in + fan_out))
    return std * jax.random.normal(key, shape, dtype=jnp.float32)


def init_decoder_params(key, out_dim, hidden_dims, K):
    layer_params = []
    for l, H in enumerate(hidden_dims):
        din = out_dim if l == 0 else hidden_dims[l - 1]
        key, kg, kc = jax.random.split(key, 3)
        # GCN(conv_gate): W in (K*(din+H), 2H); GCN(conv_cand): W in (K*(din+H), H)
        Wg = _xavier_normal(kg, (K * (din + H), 2 * H)).reshape(K, din + H, 2 * H)
        Wc = _xavier_normal(kc, (K * (din + H), H)).reshape(K, din + H, H)
        layer_params.append(dict(
            Wg=Wg, Wc=Wc,
            bg=jnp.zeros((2 * H,), jnp.float32),     # nn.init.constant_(0)
            bc=jnp.zeros((H,), jnp.float32),
        ))
    H = hidden_dims[-1]
    key, kw, kb = jax.random.split(key, 3)
    bound = 1.0 / math.sqrt(H)
    Wp = jax.random.uniform(kw, (H, out_dim), jnp.float32, -bound, bound)
    bp = jax.random.uniform(kb, (out_dim,), jnp.float32, -bound, bound)
    return layer_params, Wp, bp


# --------------------------------------------------------------------------
# Pure-JAX reference (mirrors the PyTorch code 1:1) for verification
# --------------------------------------------------------------------------
def _ref_gcn(P, x, W, b):
    supports = [jnp.einsum('ij,bjp->bip', P[k], x) for k in range(P.shape[0])]
    cat = jnp.concatenate(supports, axis=-1)
    return jnp.einsum('bip,pq->biq', cat, W) + b


def _ref_cell(P, x_t, h, Wg, Wc, bg, bc, H):
    x_h = jnp.concatenate([x_t, h], axis=-1)
    g = _ref_gcn(P, x_h, Wg, bg)
    z, r = g[..., :H], g[..., H:]
    update, reset = jax.nn.sigmoid(z), jax.nn.sigmoid(r)
    cand_in = jnp.concatenate([x_t, reset * h], axis=-1)
    cand = jnp.tanh(_ref_gcn(P, cand_in, Wc, bc))
    return (1.0 - update) * h + update * cand


def _ref_decoder(P, x_t, h_0_l, layer_params, hidden_dims, Wp, bp):
    x_in = x_t
    h_list = []
    for l, lp in enumerate(layer_params):
        H = hidden_dims[l]
        Wg = lp["Wg"].reshape(-1, 2 * H)
        Wc = lp["Wc"].reshape(-1, H)
        h_t = _ref_cell(P, x_in, h_0_l[l], Wg, Wc, lp["bg"], lp["bc"], H)
        h_list.append(h_t)
        x_in = h_t
    out = jnp.einsum('bnh,ho->bno', h_list[-1], Wp) + bp
    return out, h_list


# --------------------------------------------------------------------------
if __name__ == "__main__":
    # Small, module-consistent shapes.
    B, N, K = 2, 16, 2          # batch, n_nodes, diffusion supports
    out_dim = 2                 # decoder input/output feature dim
    num_layers = 2
    hidden_dims = [32, 32]

    key = jax.random.PRNGKey(0)
    key, kP, kx, kh = jax.random.split(key, 4)

    P = jax.random.normal(kP, (K, N, N), dtype=jnp.float32) / math.sqrt(N)
    x_t = jax.random.normal(kx, (B, N, out_dim), dtype=jnp.float32)
    h_keys = jax.random.split(kh, num_layers)
    h_0_l = [jax.random.normal(h_keys[l], (B, N, hidden_dims[l]), dtype=jnp.float32)
             for l in range(num_layers)]

    layer_params, Wp, bp = init_decoder_params(key, out_dim, hidden_dims, K)

    output, h_t_lst = dcgru_decoder_forward(P, x_t, h_0_l, layer_params, Wp, bp,
                                            batch_tile=1)
    output = jax.block_until_ready(output)
    h_t_lst = [jax.block_until_ready(h) for h in h_t_lst]

    # Verify against the straight-line JAX reference of the PyTorch module.
    ref_out, ref_h = _ref_decoder(P, x_t, h_0_l, layer_params, hidden_dims, Wp, bp)
    assert output.shape == (B, N, out_dim)
    assert all(h.shape == (B, N, hidden_dims[l]) for l, h in enumerate(h_t_lst))
    assert jnp.allclose(output, ref_out, rtol=1e-4, atol=1e-4), \
        float(jnp.max(jnp.abs(output - ref_out)))
    for h_k, h_r in zip(h_t_lst, ref_h):
        assert jnp.allclose(h_k, h_r, rtol=1e-4, atol=1e-4)

    print("KERNEL_OK")
</pallas_src>

<mosaic_0001>
module attributes {stable_mosaic.version = 11 : i64} {
  func.func @kernel(%arg0: i32, %arg1: memref<2x16x16xf32, #tpu.memory_space<vmem>>, %arg2: memref<1x16x2xf32, #tpu.memory_space<vmem>>, %arg3: memref<1x16x128xf32, #tpu.memory_space<vmem>>, %arg4: memref<4x384xf32, #tpu.memory_space<vmem>>, %arg5: memref<256x256xf32, #tpu.memory_space<vmem>>, %arg6: memref<256x128xf32, #tpu.memory_space<vmem>>, %arg7: memref<1x256xf32, #tpu.memory_space<vmem>>, %arg8: memref<1x128xf32, #tpu.memory_space<vmem>>, %arg9: memref<1x16x128xf32, #tpu.memory_space<vmem>>, %arg10: memref<256x384xf32, #tpu.memory_space<vmem>>, %arg11: memref<256x256xf32, #tpu.memory_space<vmem>>, %arg12: memref<256x128xf32, #tpu.memory_space<vmem>>, %arg13: memref<1x256xf32, #tpu.memory_space<vmem>>, %arg14: memref<1x128xf32, #tpu.memory_space<vmem>>, %arg15: memref<128x128xf32, #tpu.memory_space<vmem>>, %arg16: memref<1x128xf32, #tpu.memory_space<vmem>>, %arg17: memref<1x16x128xf32, #tpu.memory_space<vmem>>, %arg18: memref<1x16x128xf32, #tpu.memory_space<vmem>>, %arg19: memref<1x16x128xf32, #tpu.memory_space<vmem>>) attributes {dimension_semantics = [#tpu.dimension_semantics<parallel>], iteration_bounds = array<i64: 2>, scalar_prefetch = 0 : i64, scratch_operands = 0 : i64, tpu.core_type = #tpu.core_type<tc>, window_params = [{pipeline_mode = #tpu.pipeline_mode<synchronous>, transform_indices = @transform_0, window_bounds = array<i64: 2, 16, 16>}, {transform_indices = @transform_1, window_bounds = array<i64: 1, 16, 2>}, {transform_indices = @transform_2, window_bounds = array<i64: 1, 16, 128>}, {pipeline_mode = #tpu.pipeline_mode<synchronous>, transform_indices = @transform_3, window_bounds = array<i64: 4, 384>}, {pipeline_mode = #tpu.pipeline_mode<synchronous>, transform_indices = @transform_4, window_bounds = array<i64: 256, 256>}, {pipeline_mode = #tpu.pipeline_mode<synchronous>, transform_indices = @transform_5, window_bounds = array<i64: 256, 128>}, {pipeline_mode = #tpu.pipeline_mode<synchronous>, transform_indices = @transform_6, window_bounds = array<i64: 1, 256>}, {pipeline_mode = #tpu.pipeline_mode<synchronous>, transform_indices = @transform_7, window_bounds = array<i64: 1, 128>}, {transform_indices = @transform_8, window_bounds = array<i64: 1, 16, 128>}, {pipeline_mode = #tpu.pipeline_mode<synchronous>, transform_indices = @transform_9, window_bounds = array<i64: 256, 384>}, {pipeline_mode = #tpu.pipeline_mode<synchronous>, transform_indices = @transform_10, window_bounds = array<i64: 256, 256>}, {pipeline_mode = #tpu.pipeline_mode<synchronous>, transform_indices = @transform_11, window_bounds = array<i64: 256, 128>}, {pipeline_mode = #tpu.pipeline_mode<synchronous>, transform_indices = @transform_12, window_bounds = array<i64: 1, 256>}, {pipeline_mode = #tpu.pipeline_mode<synchronous>, transform_indices = @transform_13, window_bounds = array<i64: 1, 128>}, {pipeline_mode = #tpu.pipeline_mode<synchronous>, transform_indices = @transform_14, window_bounds = array<i64: 128, 128>}, {pipeline_mode = #tpu.pipeline_mode<synchronous>, transform_indices = @transform_15, window_bounds = array<i64: 1, 128>}, {transform_indices = @transform_16, window_bounds = array<i64: 1, 16, 128>}, {transform_indices = @transform_17, window_bounds = array<i64: 1, 16, 128>}, {transform_indices = @transform_18, window_bounds = array<i64: 1, 16, 128>}]} {
    %c0 = arith.constant 0 : index
    %c0_0 = arith.constant 0 : index
    %c0_1 = arith.constant 0 : index
    %0 = vector.load %arg1[%c0, %c0_0, %c0_1] : memref<2x16x16xf32, #tpu.memory_space<vmem>>, vector<1x16x16xf32>
    %1 = vector.shape_cast %0 : vector<1x16x16xf32> to vector<16x16xf32>
    %c1 = arith.constant 1 : index
    %c0_2 = arith.constant 0 : index
    %c0_3 = arith.constant 0 : index
    %2 = vector.load %arg1[%c1, %c0_2, %c0_3] : memref<2x16x16xf32, #tpu.memory_space<vmem>>, vector<1x16x16xf32>
    %3 = vector.shape_cast %2 : vector<1x16x16xf32> to vector<16x16xf32>
    %c0_4 = arith.constant 0 : index
    %c0_5 = arith.constant 0 : index
    %c0_6 = arith.constant 0 : index
    %4 = vector.load %arg2[%c0_4, %c0_5, %c0_6] : memref<1x16x2xf32, #tpu.memory_space<vmem>>, vector<1x16x2xf32>
    %5 = vector.shape_cast %4 : vector<1x16x2xf32> to vector<16x2xf32>
    %c0_7 = arith.constant 0 : index
    %c0_8 = arith.constant 0 : index
    %c0_9 = arith.constant 0 : index
    %6 = vector.load %arg3[%c0_7, %c0_8, %c0_9] : memref<1x16x128xf32, #tpu.memory_space<vmem>>, vector<1x16x128xf32>
    %7 = vector.shape_cast %6 : vector<1x16x128xf32> to vector<16x128xf32>
    %cst = arith.constant dense<0.000000e+00> : vector<16x2xf32>
    %8 = tpu.matmul %1, %5, %cst {dimension_numbers = #tpu.dot_dimension_numbers<[1], [0], [0], [1], [0, 0, 1, 1], [], []>} : vector<16x16xf32>, vector<16x2xf32>, vector<16x2xf32> -> vector<16x2xf32>
    %cst_10 = arith.constant dense<0.000000e+00> : vector<16x2xf32>
    %9 = tpu.matmul %3, %5, %cst_10 {dimension_numbers = #tpu.dot_dimension_numbers<[1], [0], [0], [1], [0, 0, 1, 1], [], []>} : vector<16x16xf32>, vector<16x2xf32>, vector<16x2xf32> -> vector<16x2xf32>
    %10 = tpu.concatenate %8, %9 in 1 : vector<16x2xf32>, vector<16x2xf32> -> vector<16x4xf32>
    %cst_11 = arith.constant dense<0.000000e+00> : vector<16x128xf32>
    %11 = tpu.matmul %1, %7, %cst_11 {dimension_numbers = #tpu.dot_dimension_numbers<[1], [0], [0], [1], [0, 0, 1, 1], [], []>} : vector<16x16xf32>, vector<16x128xf32>, vector<16x128xf32> -> vector<16x128xf32>
    %cst_12 = arith.constant dense<0.000000e+00> : vector<16x128xf32>
    %12 = tpu.matmul %3, %7, %cst_12 {dimension_numbers = #tpu.dot_dimension_numbers<[1], [0], [0], [1], [0, 0, 1, 1], [], []>} : vector<16x16xf32>, vector<16x128xf32>, vector<16x128xf32> -> vector<16x128xf32>
    %13 = tpu.concatenate %11, %12 in 1 : vector<16x128xf32>, vector<16x128xf32> -> vector<16x256xf32>
    %c0_13 = arith.constant 0 : index
    %c0_14 = arith.constant 0 : index
    %14 = vector.load %arg4[%c0_13, %c0_14] : memref<4x384xf32, #tpu.memory_space<vmem>>, vector<4x384xf32>
    %cst_15 = arith.constant dense<0.000000e+00> : vector<16x384xf32>
    %15 = tpu.matmul %10, %14, %cst_15 {dimension_numbers = #tpu.dot_dimension_numbers<[1], [0], [0], [1], [0, 0, 1, 1], [], []>} : vector<16x4xf32>, vector<4x384xf32>, vector<16x384xf32> -> vector<16x384xf32>
    %c0_16 = arith.constant 0 : index
    %c0_17 = arith.constant 0 : index
    %16 = vector.load %arg5[%c0_16, %c0_17] : memref<256x256xf32, #tpu.memory_space<vmem>>, vector<256x256xf32>
    %cst_18 = arith.constant dense<0.000000e+00> : vector<16x256xf32>
    %17 = tpu.matmul %13, %16, %cst_18 {dimension_numbers = #tpu.dot_dimension_numbers<[1], [0], [0], [1], [0, 0, 1, 1], [], []>} : vector<16x256xf32>, vector<256x256xf32>, vector<16x256xf32> -> vector<16x256xf32>
    %c0_19 = arith.constant 0 : index
    %c0_20 = arith.constant 0 : index
    %18 = vector.load %arg7[%c0_19, %c0_20] : memref<1x256xf32, #tpu.memory_space<vmem>>, vector<1x256xf32>
    %19 = vector.broadcast %18 : vector<1x256xf32> to vector<16x256xf32>
    %20 = arith.addf %17, %19 : vector<16x256xf32>
    %21 = vector.extract_strided_slice %15 {offsets = [0, 0], sizes = [16, 256], strides = [1, 1]} : vector<16x384xf32> to vector<16x256xf32>
    %22 = arith.addf %21, %20 : vector<16x256xf32>
    %23 = arith.negf %22 : vector<16x256xf32>
    %24 = math.exp %23 : vector<16x256xf32>
    %cst_21 = arith.constant 1.000000e+00 : f32
    %25 = vector.broadcast %cst_21 : f32 to vector<16x256xf32>
    %26 = arith.addf %25, %24 : vector<16x256xf32>
    %27 = arith.divf %25, %26 : vector<16x256xf32>
    %28 = vector.extract_strided_slice %27 {offsets = [0, 0], sizes = [16, 128], strides = [1, 1]} : vector<16x256xf32> to vector<16x128xf32>
    %29 = vector.extract_strided_slice %27 {offsets = [0, 128], sizes = [16, 128], strides = [1, 1]} : vector<16x256xf32> to vector<16x128xf32>
    %30 = arith.mulf %29, %7 : vector<16x128xf32>
    %cst_22 = arith.constant dense<0.000000e+00> : vector<16x128xf32>
    %31 = tpu.matmul %1, %30, %cst_22 {dimension_numbers = #tpu.dot_dimension_numbers<[1], [0], [0], [1], [0, 0, 1, 1], [], []>} : vector<16x16xf32>, vector<16x128xf32>, vector<16x128xf32> -> vector<16x128xf32>
    %cst_23 = arith.constant dense<0.000000e+00> : vector<16x128xf32>
    %32 = tpu.matmul %3, %30, %cst_23 {dimension_numbers = #tpu.dot_dimension_numbers<[1], [0], [0], [1], [0, 0, 1, 1], [], []>} : vector<16x16xf32>, vector<16x128xf32>, vector<16x128xf32> -> vector<16x128xf32>
    %33 = tpu.concatenate %31, %32 in 1 : vector<16x128xf32>, vector<16x128xf32> -> vector<16x256xf32>
    %34 = vector.extract_strided_slice %15 {offsets = [0, 256], sizes = [16, 128], strides = [1, 1]} : vector<16x384xf32> to vector<16x128xf32>
    %c0_24 = arith.constant 0 : index
    %c0_25 = arith.constant 0 : index
    %35 = vector.load %arg8[%c0_24, %c0_25] : memref<1x128xf32, #tpu.memory_space<vmem>>, vector<1x128xf32>
    %36 = vector.broadcast %35 : vector<1x128xf32> to vector<16x128xf32>
    %37 = arith.addf %34, %36 : vector<16x128xf32>
    %c0_26 = arith.constant 0 : index
    %c0_27 = arith.constant 0 : index
    %38 = vector.load %arg6[%c0_26, %c0_27] : memref<256x128xf32, #tpu.memory_space<vmem>>, vector<256x128xf32>
    %cst_28 = arith.constant dense<0.000000e+00> : vector<16x128xf32>
    %39 = tpu.matmul %33, %38, %cst_28 {dimension_numbers = #tpu.dot_dimension_numbers<[1], [0], [0], [1], [0, 0, 1, 1], [], []>} : vector<16x256xf32>, vector<256x128xf32>, vector<16x128xf32> -> vector<16x128xf32>
    %40 = arith.addf %37, %39 : vector<16x128xf32>
    %41 = math.tanh %40 : vector<16x128xf32>
    %cst_29 = arith.constant 1.000000e+00 : f32
    %42 = vector.broadcast %cst_29 : f32 to vector<16x128xf32>
    %43 = arith.subf %42, %28 : vector<16x128xf32>
    %44 = arith.mulf %43, %7 : vector<16x128xf32>
    %45 = arith.mulf %28, %41 : vector<16x128xf32>
    %46 = arith.addf %44, %45 : vector<16x128xf32>
    %c0_30 = arith.constant 0 : index
    %c0_31 = arith.constant 0 : index
    %c0_32 = arith.constant 0 : index
    %47 = vector.load %arg9[%c0_30, %c0_31, %c0_32] : memref<1x16x128xf32, #tpu.memory_space<vmem>>, vector<1x16x128xf32>
    %48 = vector.shape_cast %47 : vector<1x16x128xf32> to vector<16x128xf32>
    %cst_33 = arith.constant dense<0.000000e+00> : vector<16x128xf32>
    %49 = tpu.matmul %1, %46, %cst_33 {dimension_numbers = #tpu.dot_dimension_numbers<[1], [0], [0], [1], [0, 0, 1, 1], [], []>} : vector<16x16xf32>, vector<16x128xf32>, vector<16x128xf32> -> vector<16x128xf32>
    %cst_34 = arith.constant dense<0.000000e+00> : vector<16x128xf32>
    %50 = tpu.matmul %3, %46, %cst_34 {dimension_numbers = #tpu.dot_dimension_numbers<[1], [0], [0], [1], [0, 0, 1, 1], [], []>} : vector<16x16xf32>, vector<16x128xf32>, vector<16x128xf32> -> vector<16x128xf32>
    %51 = tpu.concatenate %49, %50 in 1 : vector<16x128xf32>, vector<16x128xf32> -> vector<16x256xf32>
    %cst_35 = arith.constant dense<0.000000e+00> : vector<16x128xf32>
    %52 = tpu.matmul %1, %48, %cst_35 {dimension_numbers = #tpu.dot_dimension_numbers<[1], [0], [0], [1], [0, 0, 1, 1], [], []>} : vector<16x16xf32>, vector<16x128xf32>, vector<16x128xf32> -> vector<16x128xf32>
    %cst_36 = arith.constant dense<0.000000e+00> : vector<16x128xf32>
    %53 = tpu.matmul %3, %48, %cst_36 {dimension_numbers = #tpu.dot_dimension_numbers<[1], [0], [0], [1], [0, 0, 1, 1], [], []>} : vector<16x16xf32>, vector<16x128xf32>, vector<16x128xf32> -> vector<16x128xf32>
    %54 = tpu.concatenate %52, %53 in 1 : vector<16x128xf32>, vector<16x128xf32> -> vector<16x256xf32>
    %c0_37 = arith.constant 0 : index
    %c0_38 = arith.constant 0 : index
    %55 = vector.load %arg10[%c0_37, %c0_38] : memref<256x384xf32, #tpu.memory_space<vmem>>, vector<256x384xf32>
    %cst_39 = arith.constant dense<0.000000e+00> : vector<16x384xf32>
    %56 = tpu.matmul %51, %55, %cst_39 {dimension_numbers = #tpu.dot_dimension_numbers<[1], [0], [0], [1], [0, 0, 1, 1], [], []>} : vector<16x256xf32>, vector<256x384xf32>, vector<16x384xf32> -> vector<16x384xf32>
    %c0_40 = arith.constant 0 : index
    %c0_41 = arith.constant 0 : index
    %57 = vector.load %arg11[%c0_40, %c0_41] : memref<256x256xf32, #tpu.memory_space<vmem>>, vector<256x256xf32>
    %cst_42 = arith.constant dense<0.000000e+00> : vector<16x256xf32>
    %58 = tpu.matmul %54, %57, %cst_42 {dimension_numbers = #tpu.dot_dimension_numbers<[1], [0], [0], [1], [0, 0, 1, 1], [], []>} : vector<16x256xf32>, vector<256x256xf32>, vector<16x256xf32> -> vector<16x256xf32>
    %c0_43 = arith.constant 0 : index
    %c0_44 = arith.constant 0 : index
    %59 = vector.load %arg13[%c0_43, %c0_44] : memref<1x256xf32, #tpu.memory_space<vmem>>, vector<1x256xf32>
    %60 = vector.broadcast %59 : vector<1x256xf32> to vector<16x256xf32>
    %61 = arith.addf %58, %60 : vector<16x256xf32>
    %62 = vector.extract_strided_slice %56 {offsets = [0, 0], sizes = [16, 256], strides = [1, 1]} : vector<16x384xf32> to vector<16x256xf32>
    %63 = arith.addf %62, %61 : vector<16x256xf32>
    %64 = arith.negf %63 : vector<16x256xf32>
    %65 = math.exp %64 : vector<16x256xf32>
    %cst_45 = arith.constant 1.000000e+00 : f32
    %66 = vector.broadcast %cst_45 : f32 to vector<16x256xf32>
    %67 = arith.addf %66, %65 : vector<16x256xf32>
    %68 = arith.divf %66, %67 : vector<16x256xf32>
    %69 = vector.extract_strided_slice %68 {offsets = [0, 0], sizes = [16, 128], strides = [1, 1]} : vector<16x256xf32> to vector<16x128xf32>
    %70 = vector.extract_strided_slice %68 {offsets = [0, 128], sizes = [16, 128], strides = [1, 1]} : vector<16x256xf32> to vector<16x128xf32>
    %71 = arith.mulf %70, %48 : vector<16x128xf32>
    %cst_46 = arith.constant dense<0.000000e+00> : vector<16x128xf32>
    %72 = tpu.matmul %1, %71, %cst_46 {dimension_numbers = #tpu.dot_dimension_numbers<[1], [0], [0], [1], [0, 0, 1, 1], [], []>} : vector<16x16xf32>, vector<16x128xf32>, vector<16x128xf32> -> vector<16x128xf32>
    %cst_47 = arith.constant dense<0.000000e+00> : vector<16x128xf32>
    %73 = tpu.matmul %3, %71, %cst_47 {dimension_numbers = #tpu.dot_dimension_numbers<[1], [0], [0], [1], [0, 0, 1, 1], [], []>} : vector<16x16xf32>, vector<16x128xf32>, vector<16x128xf32> -> vector<16x128xf32>
    %74 = tpu.concatenate %72, %73 in 1 : vector<16x128xf32>, vector<16x128xf32> -> vector<16x256xf32>
    %75 = vector.extract_strided_slice %56 {offsets = [0, 256], sizes = [16, 128], strides = [1, 1]} : vector<16x384xf32> to vector<16x128xf32>
    %c0_48 = arith.constant 0 : index
    %c0_49 = arith.constant 0 : index
    %76 = vector.load %arg14[%c0_48, %c0_49] : memref<1x128xf32, #tpu.memory_space<vmem>>, vector<1x128xf32>
    %77 = vector.broadcast %76 : vector<1x128xf32> to vector<16x128xf32>
    %78 = arith.addf %75, %77 : vector<16x128xf32>
    %c0_50 = arith.constant 0 : index
    %c0_51 = arith.constant 0 : index
    %79 = vector.load %arg12[%c0_50, %c0_51] : memref<256x128xf32, #tpu.memory_space<vmem>>, vector<256x128xf32>
    %cst_52 = arith.constant dense<0.000000e+00> : vector<16x128xf32>
    %80 = tpu.matmul %74, %79, %cst_52 {dimension_numbers = #tpu.dot_dimension_numbers<[1], [0], [0], [1], [0, 0, 1, 1], [], []>} : vector<16x256xf32>, vector<256x128xf32>, vector<16x128xf32> -> vector<16x128xf32>
    %81 = arith.addf %78, %80 : vector<16x128xf32>
    %82 = math.tanh %81 : vector<16x128xf32>
    %cst_53 = arith.constant 1.000000e+00 : f32
    %83 = vector.broadcast %cst_53 : f32 to vector<16x128xf32>
    %84 = arith.subf %83, %69 : vector<16x128xf32>
    %85 = arith.mulf %84, %48 : vector<16x128xf32>
    %86 = arith.mulf %69, %82 : vector<16x128xf32>
    %87 = arith.addf %85, %86 : vector<16x128xf32>
    %c0_54 = arith.constant 0 : index
    %c0_55 = arith.constant 0 : index
    %88 = vector.load %arg15[%c0_54, %c0_55] : memref<128x128xf32, #tpu.memory_space<vmem>>, vector<128x128xf32>
    %cst_56 = arith.constant dense<0.000000e+00> : vector<16x128xf32>
    %89 = tpu.matmul %87, %88, %cst_56 {dimension_numbers = #tpu.dot_dimension_numbers<[1], [0], [0], [1], [0, 0, 1, 1], [], []>} : vector<16x128xf32>, vector<128x128xf32>, vector<16x128xf32> -> vector<16x128xf32>
    %c0_57 = arith.constant 0 : index
    %c0_58 = arith.constant 0 : index
    %90 = vector.load %arg16[%c0_57, %c0_58] : memref<1x128xf32, #tpu.memory_space<vmem>>, vector<1x128xf32>
    %91 = vector.broadcast %90 : vector<1x128xf32> to vector<16x128xf32>
    %92 = arith.addf %89, %91 : vector<16x128xf32>
    %93 = vector.shape_cast %92 : vector<16x128xf32> to vector<1x16x128xf32>
    %c0_59 = arith.constant 0 : index
    %c0_60 = arith.constant 0 : index
    %c0_61 = arith.constant 0 : index
    %94 = vector.load %arg17[%c0_59, %c0_60, %c0_61] : memref<1x16x128xf32, #tpu.memory_space<vmem>>, vector<1x16x128xf32>
    tpu.vector_store %arg17[%c0_59, %c0_60, %c0_61], %93 {strides = array<i32>} : memref<1x16x128xf32, #tpu.memory_space<vmem>>, vector<1x16x128xf32>,
    %95 = vector.shape_cast %46 : vector<16x128xf32> to vector<1x16x128xf32>
    %c0_62 = arith.constant 0 : index
    %c0_63 = arith.constant 0 : index
    %c0_64 = arith.constant 0 : index
    %96 = vector.load %arg18[%c0_62, %c0_63, %c0_64] : memref<1x16x128xf32, #tpu.memory_space<vmem>>, vector<1x16x128xf32>
    tpu.vector_store %arg18[%c0_62, %c0_63, %c0_64], %95 {strides = array<i32>} : memref<1x16x128xf32, #tpu.memory_space<vmem>>, vector<1x16x128xf32>,
    %97 = vector.shape_cast %87 : vector<16x128xf32> to vector<1x16x128xf32>
    %c0_65 = arith.constant 0 : index
    %c0_66 = arith.constant 0 : index
    %c0_67 = arith.constant 0 : index
    %98 = vector.load %arg19[%c0_65, %c0_66, %c0_67] : memref<1x16x128xf32, #tpu.memory_space<vmem>>, vector<1x16x128xf32>
    tpu.vector_store %arg19[%c0_65, %c0_66, %c0_67], %97 {strides = array<i32>} : memref<1x16x128xf32, #tpu.memory_space<vmem>>, vector<1x16x128xf32>,
    return
  }
  func.func @transform_0(%arg0: i32) -> (i32, i32, i32) {
    %c0_i32 = arith.constant 0 : i32
    %c0_i32_0 = arith.constant 0 : i32
    %c0_i32_1 = arith.constant 0 : i32
    %c0_i32_2 = arith.constant 0 : i32
    return %c0_i32, %c0_i32_0, %c0_i32_1 : i32, i32, i32
  }
  func.func @transform_1(%arg0: i32) -> (i32, i32, i32) {
    %c0_i32 = arith.constant 0 : i32
    %c0_i32_0 = arith.constant 0 : i32
    %c0_i32_1 = arith.constant 0 : i32
    return %arg0, %c0_i32, %c0_i32_0 : i32, i32, i32
  }
  func.func @transform_2(%arg0: i32) -> (i32, i32, i32) {
    %c0_i32 = arith.constant 0 : i32
    %c0_i32_0 = arith.constant 0 : i32
    %c0_i32_1 = arith.constant 0 : i32
    return %arg0, %c0_i32, %c0_i32_0 : i32, i32, i32
  }
  func.func @transform_3(%arg0: i32) -> (i32, i32) {
    %c0_i32 = arith.constant 0 : i32
    %c0_i32_0 = arith.constant 0 : i32
    %c0_i32_1 = arith.constant 0 : i32
    return %c0_i32, %c0_i32_0 : i32, i32
  }
  func.func @transform_4(%arg0: i32) -> (i32, i32) {
    %c0_i32 = arith.constant 0 : i32
    %c0_i32_0 = arith.constant 0 : i32
    %c0_i32_1 = arith.constant 0 : i32
    return %c0_i32, %c0_i32_0 : i32, i32
  }
  func.func @transform_5(%arg0: i32) -> (i32, i32) {
    %c0_i32 = arith.constant 0 : i32
    %c0_i32_0 = arith.constant 0 : i32
    %c0_i32_1 = arith.constant 0 : i32
    return %c0_i32, %c0_i32_0 : i32, i32
  }
  func.func @transform_6(%arg0: i32) -> (i32, i32) {
    %c0_i32 = arith.constant 0 : i32
    %c0_i32_0 = arith.constant 0 : i32
    %c0_i32_1 = arith.constant 0 : i32
    return %c0_i32, %c0_i32_0 : i32, i32
  }
  func.func @transform_7(%arg0: i32) -> (i32, i32) {
    %c0_i32 = arith.constant 0 : i32
    %c0_i32_0 = arith.constant 0 : i32
    %c0_i32_1 = arith.constant 0 : i32
    return %c0_i32, %c0_i32_0 : i32, i32
  }
  func.func @transform_8(%arg0: i32) -> (i32, i32, i32) {
    %c0_i32 = arith.constant 0 : i32
    %c0_i32_0 = arith.constant 0 : i32
    %c0_i32_1 = arith.constant 0 : i32
    return %arg0, %c0_i32, %c0_i32_0 : i32, i32, i32
  }
  func.func @transform_9(%arg0: i32) -> (i32, i32) {
    %c0_i32 = arith.constant 0 : i32
    %c0_i32_0 = arith.constant 0 : i32
    %c0_i32_1 = arith.constant 0 : i32
    return %c0_i32, %c0_i32_0 : i32, i32
  }
  func.func @transform_10(%arg0: i32) -> (i32, i32) {
    %c0_i32 = arith.constant 0 : i32
    %c0_i32_0 = arith.constant 0 : i32
    %c0_i32_1 = arith.constant 0 : i32
    return %c0_i32, %c0_i32_0 : i32, i32
  }
  func.func @transform_11(%arg0: i32) -> (i32, i32) {
    %c0_i32 = arith.constant 0 : i32
    %c0_i32_0 = arith.constant 0 : i32
    %c0_i32_1 = arith.constant 0 : i32
    return %c0_i32, %c0_i32_0 : i32, i32
  }
  func.func @transform_12(%arg0: i32) -> (i32, i32) {
    %c0_i32 = arith.constant 0 : i32
    %c0_i32_0 = arith.constant 0 : i32
    %c0_i32_1 = arith.constant 0 : i32
    return %c0_i32, %c0_i32_0 : i32, i32
  }
  func.func @transform_13(%arg0: i32) -> (i32, i32) {
    %c0_i32 = arith.constant 0 : i32
    %c0_i32_0 = arith.constant 0 : i32
    %c0_i32_1 = arith.constant 0 : i32
    return %c0_i32, %c0_i32_0 : i32, i32
  }
  func.func @transform_14(%arg0: i32) -> (i32, i32) {
    %c0_i32 = arith.constant 0 : i32
    %c0_i32_0 = arith.constant 0 : i32
    %c0_i32_1 = arith.constant 0 : i32
    return %c0_i32, %c0_i32_0 : i32, i32
  }
  func.func @transform_15(%arg0: i32) -> (i32, i32) {
    %c0_i32 = arith.constant 0 : i32
    %c0_i32_0 = arith.constant 0 : i32
    %c0_i32_1 = arith.constant 0 : i32
    return %c0_i32, %c0_i32_0 : i32, i32
  }
  func.func @transform_16(%arg0: i32) -> (i32, i32, i32) {
    %c0_i32 = arith.constant 0 : i32
    %c0_i32_0 = arith.constant 0 : i32
    %c0_i32_1 = arith.constant 0 : i32
    return %arg0, %c0_i32, %c0_i32_0 : i32, i32, i32
  }
  func.func @transform_17(%arg0: i32) -> (i32, i32, i32) {
    %c0_i32 = arith.constant 0 : i32
    %c0_i32_0 = arith.constant 0 : i32
    %c0_i32_1 = arith.constant 0 : i32
    return %arg0, %c0_i32, %c0_i32_0 : i32, i32, i32
  }
  func.func @transform_18(%arg0: i32) -> (i32, i32, i32) {
    %c0_i32 = arith.constant 0 : i32
    %c0_i32_0 = arith.constant 0 : i32
    %c0_i32_1 = arith.constant 0 : i32
    return %arg0, %c0_i32, %c0_i32_0 : i32, i32, i32
  }
}

</mosaic_0001>

<llo_original>
// kernel: tpu_custom_call.1
$region0: #{tpu_custom_call.1}
  #allocation0 [shape = 'u32[]', space=smem, size = 0x4, offset = 0x4, fixed_abs, tag = 'smem constant byte address 0x4 - core index']
  #allocation1 [shape = 'u32[144,128]{1,0:T(1,128)}', space=vmem, size = 0x12000, scoped, tag = 'internal scratch']
  %s0 = inlined_call_operand.vmem [shape: f32[2,16,16], index: 0, kind: input, shape index: {}]
  %s1 = inlined_call_operand.vmem [shape: f32[2,16,2], index: 1, kind: input, shape index: {}]
  %s2 = inlined_call_operand.hbm [shape: f32[2,16,128], index: 2, kind: input, shape index: {}]
  %s3 = inlined_call_operand.hbm [shape: f32[4,384], index: 3, kind: input, shape index: {}]
  %s4 = inlined_call_operand.hbm [shape: f32[256,256], index: 4, kind: input, shape index: {}]
  %s5 = inlined_call_operand.hbm [shape: f32[256,128], index: 5, kind: input, shape index: {}]
  %s6 = inlined_call_operand.vmem [shape: f32[1,256], index: 6, kind: input, shape index: {}]
  %s7 = inlined_call_operand.vmem [shape: f32[1,128], index: 7, kind: input, shape index: {}]
  %s8 = inlined_call_operand.hbm [shape: f32[2,16,128], index: 8, kind: input, shape index: {}]
  %s9 = inlined_call_operand.hbm [shape: f32[256,384], index: 9, kind: input, shape index: {}]
  %s10 = inlined_call_operand.hbm [shape: f32[256,256], index: 10, kind: input, shape index: {}]
  %s11 = inlined_call_operand.hbm [shape: f32[256,128], index: 11, kind: input, shape index: {}]
  %s12 = inlined_call_operand.vmem [shape: f32[1,256], index: 12, kind: input, shape index: {}]
  %s13 = inlined_call_operand.vmem [shape: f32[1,128], index: 13, kind: input, shape index: {}]
  %s14 = inlined_call_operand.hbm [shape: f32[128,128], index: 14, kind: input, shape index: {}]
  %s15 = inlined_call_operand.vmem [shape: f32[1,128], index: 15, kind: input, shape index: {}]
  %s16 = inlined_call_operand.hbm [shape: f32[2,16,128], index: 16, kind: output, shape index: {0}]
  %s17 = inlined_call_operand.hbm [shape: f32[2,16,128], index: 17, kind: output, shape index: {1}]
  %s18 = inlined_call_operand.hbm [shape: f32[2,16,128], index: 18, kind: output, shape index: {2}]
  %19 = xla_tuple %s16, %s17, %s18
  %s20 = sld [smem:[#allocation0]]
  $region149: #{tpu_custom_call.1} parent=0
    _
  %s22 = ssub.s32 1, %s20
  %s23 = scalar_select 0, %s22, %s20
  $region1: #{tpu_custom_call.1} parent=0
    #allocation2 [shape = 'u8[16384]{0}', space=vmem, size = 0x4000, scoped, tag = 'input window, operand 2']
    #allocation3 [shape = 's32[2]{0}', space=sflag, size = 0x8, scoped, tag = 'scoped memory for tpu_custom_call.1']
    #allocation4 [shape = 's32[2]{0}', space=sflag, size = 0x8, scoped, tag = 'scoped memory for tpu_custom_call.1']
    #allocation5 [shape = 'u8[6144]{0}', space=vmem, size = 0x1800, scoped, tag = 'input window, operand 3, single buffered']
    #allocation6 [shape = 's32[1]{0}', space=sflag, size = 0x4, scoped, tag = 'scoped memory for tpu_custom_call.1']
    #allocation7 [shape = 'u8[262144]{0}', space=vmem, size = 0x40000, scoped, tag = 'input window, operand 4, single buffered']
    #allocation8 [shape = 'u8[131072]{0}', space=vmem, size = 0x20000, scoped, tag = 'input window, operand 5, single buffered']
    #allocation9 [shape = 's32[1]{0}', space=sflag, size = 0x4, scoped, tag = 'scoped memory for tpu_custom_call.1']
    #allocation10 [shape = 'u8[16384]{0}', space=vmem, size = 0x4000, scoped, tag = 'input window, operand 8']
    #allocation11 [shape = 'u8[393216]{0}', space=vmem, size = 0x60000, scoped, tag = 'input window, operand 9, single buffered']
    #allocation12 [shape = 'u8[262144]{0}', space=vmem, size = 0x40000, scoped, tag = 'input window, operand 10, single buffered']
    #allocation13 [shape = 'u8[131072]{0}', space=vmem, size = 0x20000, scoped, tag = 'input window, operand 11, single buffered']
    #allocation14 [shape = 's32[1]{0}', space=sflag, size = 0x4, scoped, tag = 'scoped memory for tpu_custom_call.1']
    #allocation15 [shape = 'u8[65536]{0}', space=vmem, size = 0x10000, scoped, tag = 'input window, operand 14, single buffered']
    #allocation16 [shape = 'u8[16384]{0}', space=vmem, size = 0x4000, scoped, tag = 'output window, operand 0']
    #allocation17 [shape = 'u8[16384]{0}', space=vmem, size = 0x4000, scoped, tag = 'output window, operand 1']
    #allocation18 [shape = 's32[2]{0}', space=sflag, size = 0x8, scoped, tag = 'scoped memory for tpu_custom_call.1']
    #allocation19 [shape = 'u8[16384]{0}', space=vmem, size = 0x4000, scoped, tag = 'output window, operand 2']
    %24 = vsyncpa [#allocation3], 0
    %s25 = scalar_lea.sflag [#allocation3], 1
    %26 = vsyncpa %s25, 0
    %27 = vsyncpa [#allocation6], 0
    %28 = vsyncpa [#allocation9], 0
    %29 = vsyncpa [#allocation14], 0
    %30 = vsyncpa [#allocation4], 0
    %s31 = scalar_lea.sflag [#allocation4], 1
    %32 = vsyncpa %s31, 0
    %33 = vsyncpa [#allocation18], 0
    %s34 = scalar_lea.sflag [#allocation18], 1
    %35 = vsyncpa %s34, 0
    loop: start=0, step=1, limit=4
    $region2: #{tpu_custom_call.1} parent=1 // loop_pre_header
      _
    $region3: #{tpu_custom_call.1} parent=1 // loop_header
      %s37 = sphi 0, %s41
      %p38 = scmp.ge.s32.totalorder %s37, 4
      %s45 = sphi 0, %s45
      %s47 = sphi 0, %s45
      %s48 = sphi 0, %s47
      %s62 = sphi 0, %s48
      %s68 = sphi 0, %s70
      %s71 = sphi 0, %s68
      %s72 = sphi 0, %s71
      %s88 = sphi 0, %s72
      %s94 = sphi 0, %s96
      %s97 = sphi 0, %s94
      %s98 = sphi 0, %s97
      %s114 = sphi 0, %s98
      %s118 = sphi 0, %s118
      %s120 = sphi 0, %s118
      %s121 = sphi 0, %s120
      %s135 = sphi 0, %s121
      %s139 = sphi 0, %s139
      %s141 = sphi 0, %s139
      %s142 = sphi 0, %s141
      %s156 = sphi 0, %s142
      %s160 = sphi 0, %s160
      %s162 = sphi 0, %s160
      %s163 = sphi 0, %s162
      %s177 = sphi 0, %s163
      %s181 = sphi 0, %s181
      %s183 = sphi 0, %s181
      %s184 = sphi 0, %s183
      %s198 = sphi 0, %s184
      %s202 = sphi 0, %s202
      %s204 = sphi 0, %s202
      %s205 = sphi 0, %s204
      %s219 = sphi 0, %s205
      %s225 = sphi 0, %s227
      %s228 = sphi 0, %s225
      %s229 = sphi 0, %s228
      %s245 = sphi 0, %s229
      %s249 = sphi 0, %s249
      %s251 = sphi 0, %s249
      %s252 = sphi 0, %s251
      %s266 = sphi 0, %s252
      %s270 = sphi 0, %s270
      %s272 = sphi 0, %s270
      %s273 = sphi 0, %s272
      %s287 = sphi 0, %s273
      %s291 = sphi 0, %s291
      %s293 = sphi 0, %s291
      %s294 = sphi 0, %s293
      %s308 = sphi 0, %s294
      %s312 = sphi 0, %s312
      %s314 = sphi 0, %s312
      %s315 = sphi 0, %s314
      %s329 = sphi 0, %s315
      %s333 = sphi 0, %s333
      %s335 = sphi 0, %s333
      %s336 = sphi 0, %s335
      %s350 = sphi 0, %s336
      %s354 = sphi 0, %s354
      %s356 = sphi 0, %s354
      %s357 = sphi 0, %s356
      %s371 = sphi 0, %s357
      %s375 = sphi 0, %s375
      %s377 = sphi 0, %s375
      %s378 = sphi 0, %s377
      %s392 = sphi 0, %s378
      %s398 = sphi 0, %s400
      %s401 = sphi 0, %s398
      %s402 = sphi 0, %s401
      %s418 = sphi 0, %s402
      %s424 = sphi 0, %s426
      %s427 = sphi 0, %s424
      %s428 = sphi 0, %s427
      %s444 = sphi 0, %s428
      %s450 = sphi 0, %s452
      %s453 = sphi 0, %s450
      %s454 = sphi 0, %s453
      %s470 = sphi 0, %s454
    $region4: #{tpu_custom_call.1} parent=1 // loop_header_branch
      %40 = sbr.rel (%p38) target = $region8
    $region5: #{tpu_custom_call.1} parent=1 // loop_body
      %s42 = ssub.s32 %s37, 1
      %s43 = ssub.s32 %s37, 2
      %s44 = sadd.s32 %s37, 1
      %s46 = sadd.s32 %s45, 1
      %p49 = scmp.eq.s32.totalorder %s37, 1
      %p50 = scmp.ne.s32.totalorder %s45, %s47
      %p51 = scmp.eq.s32.totalorder %s37, 0
      %p52 = por %p50, %p51
      %p53 = scmp.ne.s32.totalorder %s45, %s47
      %p54 = scmp.eq.s32.totalorder %s42, 1
      %p55 = por %p53, %p54
      %p56 = scmp.ne.s32.totalorder %s47, %s48
      %p57 = scmp.eq.s32.totalorder %s42, 0
      %p58 = por %p56, %p57
      %p59 = scmp.ne.s32.totalorder %s47, %s48
      %p60 = scmp.eq.s32.totalorder %s43, 1
      %p61 = por %p59, %p60
      %p63 = scmp.ne.s32.totalorder %s48, %s62
      %p64 = scmp.eq.s32.totalorder %s43, 0
      %p65 = por %p63, %p64
      %s66 = ssub.s32 %s37, %s44
      %p67 = scmp.eq.s32.totalorder %s66, 0
      %s69 = sadd.s32 %s68, 1
      %s70 = scalar_select %p67, %s68, %s69
      %p73 = pneg %p67
      %p74 = scmp.eq.s32.totalorder %s37, 1
      %p75 = por %p73, %p74
      %p76 = scmp.ne.s32.totalorder %s68, %s71
      %p77 = scmp.eq.s32.totalorder %s37, 0
      %p78 = por %p76, %p77
      %p79 = scmp.ne.s32.totalorder %s68, %s71
      %p80 = scmp.eq.s32.totalorder %s42, 1
      %p81 = por %p79, %p80
      %p82 = scmp.ne.s32.totalorder %s71, %s72
      %p83 = scmp.eq.s32.totalorder %s42, 0
      %p84 = por %p82, %p83
      %p85 = scmp.ne.s32.totalorder %s71, %s72
      %p86 = scmp.eq.s32.totalorder %s43, 1
      %p87 = por %p85, %p86
      %p89 = scmp.ne.s32.totalorder %s72, %s88
      %p90 = scmp.eq.s32.totalorder %s43, 0
      %p91 = por %p89, %p90
      %s92 = ssub.s32 %s37, %s44
      %p93 = scmp.eq.s32.totalorder %s92, 0
      %s95 = sadd.s32 %s94, 1
      %s96 = scalar_select %p93, %s94, %s95
      %p99 = pneg %p93
      %p100 = scmp.eq.s32.totalorder %s37, 1
      %p101 = por %p99, %p100
      %p102 = scmp.ne.s32.totalorder %s94, %s97
      %p103 = scmp.eq.s32.totalorder %s37, 0
      %p104 = por %p102, %p103
      %p105 = scmp.ne.s32.totalorder %s94, %s97
      %p106 = scmp.eq.s32.totalorder %s42, 1
      %p107 = por %p105, %p106
      %p108 = scmp.ne.s32.totalorder %s97, %s98
      %p109 = scmp.eq.s32.totalorder %s42, 0
      %p110 = por %p108, %p109
      %p111 = scmp.ne.s32.totalorder %s97, %s98
      %p112 = scmp.eq.s32.totalorder %s43, 1
      %p113 = por %p111, %p112
      %p115 = scmp.ne.s32.totalorder %s98, %s114
      %p116 = scmp.eq.s32.totalorder %s43, 0
      %p117 = por %p115, %p116
      %s119 = sadd.s32 %s118, 1
      %p122 = scmp.eq.s32.totalorder %s37, 1
      %p123 = scmp.ne.s32.totalorder %s118, %s120
      %p124 = scmp.eq.s32.totalorder %s37, 0
      %p125 = por %p123, %p124
      %p126 = scmp.ne.s32.totalorder %s118, %s120
      %p127 = scmp.eq.s32.totalorder %s42, 1
      %p128 = por %p126, %p127
      %p129 = scmp.ne.s32.totalorder %s120, %s121
      %p130 = scmp.eq.s32.totalorder %s42, 0
      %p131 = por %p129, %p130
      %p132 = scmp.ne.s32.totalorder %s120, %s121
      %p133 = scmp.eq.s32.totalorder %s43, 1
      %p134 = por %p132, %p133
      %p136 = scmp.ne.s32.totalorder %s121, %s135
      %p137 = scmp.eq.s32.totalorder %s43, 0
      %p138 = por %p136, %p137
      %s140 = sadd.s32 %s139, 1
      %p143 = scmp.eq.s32.totalorder %s37, 1
      %p144 = scmp.ne.s32.totalorder %s139, %s141
      %p145 = scmp.eq.s32.totalorder %s37, 0
      %p146 = por %p144, %p145
      %p147 = scmp.ne.s32.totalorder %s139, %s141
      %p148 = scmp.eq.s32.totalorder %s42, 1
      %p149 = por %p147, %p148
      %p150 = scmp.ne.s32.totalorder %s141, %s142
      %p151 = scmp.eq.s32.totalorder %s42, 0
      %p152 = por %p150, %p151
      %p153 = scmp.ne.s32.totalorder %s141, %s142
      %p154 = scmp.eq.s32.totalorder %s43, 1
      %p155 = por %p153, %p154
      %p157 = scmp.ne.s32.totalorder %s142, %s156
      %p158 = scmp.eq.s32.totalorder %s43, 0
      %p159 = por %p157, %p158
      %s161 = sadd.s32 %s160, 1
      %p164 = scmp.eq.s32.totalorder %s37, 1
      %p165 = scmp.ne.s32.totalorder %s160, %s162
      %p166 = scmp.eq.s32.totalorder %s37, 0
      %p167 = por %p165, %p166
      %p168 = scmp.ne.s32.totalorder %s160, %s162
      %p169 = scmp.eq.s32.totalorder %s42, 1
      %p170 = por %p168, %p169
      %p171 = scmp.ne.s32.totalorder %s162, %s163
      %p172 = scmp.eq.s32.totalorder %s42, 0
      %p173 = por %p171, %p172
      %p174 = scmp.ne.s32.totalorder %s162, %s163
      %p175 = scmp.eq.s32.totalorder %s43, 1
      %p176 = por %p174, %p175
      %p178 = scmp.ne.s32.totalorder %s163, %s177
      %p179 = scmp.eq.s32.totalorder %s43, 0
      %p180 = por %p178, %p179
      %s182 = sadd.s32 %s181, 1
      %p185 = scmp.eq.s32.totalorder %s37, 1
      %p186 = scmp.ne.s32.totalorder %s181, %s183
      %p187 = scmp.eq.s32.totalorder %s37, 0
      %p188 = por %p186, %p187
      %p189 = scmp.ne.s32.totalorder %s181, %s183
      %p190 = scmp.eq.s32.totalorder %s42, 1
      %p191 = por %p189, %p190
      %p192 = scmp.ne.s32.totalorder %s183, %s184
      %p193 = scmp.eq.s32.totalorder %s42, 0
      %p194 = por %p192, %p193
      %p195 = scmp.ne.s32.totalorder %s183, %s184
      %p196 = scmp.eq.s32.totalorder %s43, 1
      %p197 = por %p195, %p196
      %p199 = scmp.ne.s32.totalorder %s184, %s198
      %p200 = scmp.eq.s32.totalorder %s43, 0
      %p201 = por %p199, %p200
      %s203 = sadd.s32 %s202, 1
      %p206 = scmp.eq.s32.totalorder %s37, 1
      %p207 = scmp.ne.s32.totalorder %s202, %s204
      %p208 = scmp.eq.s32.totalorder %s37, 0
      %p209 = por %p207, %p208
      %p210 = scmp.ne.s32.totalorder %s202, %s204
      %p211 = scmp.eq.s32.totalorder %s42, 1
      %p212 = por %p210, %p211
      %p213 = scmp.ne.s32.totalorder %s204, %s205
      %p214 = scmp.eq.s32.totalorder %s42, 0
      %p215 = por %p213, %p214
      %p216 = scmp.ne.s32.totalorder %s204, %s205
      %p217 = scmp.eq.s32.totalorder %s43, 1
      %p218 = por %p216, %p217
      %p220 = scmp.ne.s32.totalorder %s205, %s219
      %p221 = scmp.eq.s32.totalorder %s43, 0
      %p222 = por %p220, %p221
      %s223 = ssub.s32 %s37, %s44
      %p224 = scmp.eq.s32.totalorder %s223, 0
      %s226 = sadd.s32 %s225, 1
      %s227 = scalar_select %p224, %s225, %s226
      %p230 = pneg %p224
      %p231 = scmp.eq.s32.totalorder %s37, 1
      %p232 = por %p230, %p231
      %p233 = scmp.ne.s32.totalorder %s225, %s228
      %p234 = scmp.eq.s32.totalorder %s37, 0
      %p235 = por %p233, %p234
      %p236 = scmp.ne.s32.totalorder %s225, %s228
      %p237 = scmp.eq.s32.totalorder %s42, 1
      %p238 = por %p236, %p237
      %p239 = scmp.ne.s32.totalorder %s228, %s229
      %p240 = scmp.eq.s32.totalorder %s42, 0
      %p241 = por %p239, %p240
      %p242 = scmp.ne.s32.totalorder %s228, %s229
      %p243 = scmp.eq.s32.totalorder %s43, 1
      %p244 = por %p242, %p243
      %p246 = scmp.ne.s32.totalorder %s229, %s245
      %p247 = scmp.eq.s32.totalorder %s43, 0
      %p248 = por %p246, %p247
      %s250 = sadd.s32 %s249, 1
      %p253 = scmp.eq.s32.totalorder %s37, 1
      %p254 = scmp.ne.s32.totalorder %s249, %s251
      %p255 = scmp.eq.s32.totalorder %s37, 0
      %p256 = por %p254, %p255
      %p257 = scmp.ne.s32.totalorder %s249, %s251
      %p258 = scmp.eq.s32.totalorder %s42, 1
      %p259 = por %p257, %p258
      %p260 = scmp.ne.s32.totalorder %s251, %s252
      %p261 = scmp.eq.s32.totalorder %s42, 0
      %p262 = por %p260, %p261
      %p263 = scmp.ne.s32.totalorder %s251, %s252
      %p264 = scmp.eq.s32.totalorder %s43, 1
      %p265 = por %p263, %p264
      %p267 = scmp.ne.s32.totalorder %s252, %s266
      %p268 = scmp.eq.s32.totalorder %s43, 0
      %p269 = por %p267, %p268
      %s271 = sadd.s32 %s270, 1
      %p274 = scmp.eq.s32.totalorder %s37, 1
      %p275 = scmp.ne.s32.totalorder %s270, %s272
      %p276 = scmp.eq.s32.totalorder %s37, 0
      %p277 = por %p275, %p276
      %p278 = scmp.ne.s32.totalorder %s270, %s272
      %p279 = scmp.eq.s32.totalorder %s42, 1
      %p280 = por %p278, %p279
      %p281 = scmp.ne.s32.totalorder %s272, %s273
      %p282 = scmp.eq.s32.totalorder %s42, 0
      %p283 = por %p281, %p282
      %p284 = scmp.ne.s32.totalorder %s272, %s273
      %p285 = scmp.eq.s32.totalorder %s43, 1
      %p286 = por %p284, %p285
      %p288 = scmp.ne.s32.totalorder %s273, %s287
      %p289 = scmp.eq.s32.totalorder %s43, 0
      %p290 = por %p288, %p289
      %s292 = sadd.s32 %s291, 1
      %p295 = scmp.eq.s32.totalorder %s37, 1
      %p296 = scmp.ne.s32.totalorder %s291, %s293
      %p297 = scmp.eq.s32.totalorder %s37, 0
      %p298 = por %p296, %p297
      %p299 = scmp.ne.s32.totalorder %s291, %s293
      %p300 = scmp.eq.s32.totalorder %s42, 1
      %p301 = por %p299, %p300
      %p302 = scmp.ne.s32.totalorder %s293, %s294
      %p303 = scmp.eq.s32.totalorder %s42, 0
      %p304 = por %p302, %p303
      %p305 = scmp.ne.s32.totalorder %s293, %s294
      %p306 = scmp.eq.s32.totalorder %s43, 1
      %p307 = por %p305, %p306
      %p309 = scmp.ne.s32.totalorder %s294, %s308
      %p310 = scmp.eq.s32.totalorder %s43, 0
      %p311 = por %p309, %p310
      %s313 = sadd.s32 %s312, 1
      %p316 = scmp.eq.s32.totalorder %s37, 1
      %p317 = scmp.ne.s32.totalorder %s312, %s314
      %p318 = scmp.eq.s32.totalorder %s37, 0
      %p319 = por %p317, %p318
      %p320 = scmp.ne.s32.totalorder %s312, %s314
      %p321 = scmp.eq.s32.totalorder %s42, 1
      %p322 = por %p320, %p321
      %p323 = scmp.ne.s32.totalorder %s314, %s315
      %p324 = scmp.eq.s32.totalorder %s42, 0
      %p325 = por %p323, %p324
      %p326 = scmp.ne.s32.totalorder %s314, %s315
      %p327 = scmp.eq.s32.totalorder %s43, 1
      %p328 = por %p326, %p327
      %p330 = scmp.ne.s32.totalorder %s315, %s329
      %p331 = scmp.eq.s32.totalorder %s43, 0
      %p332 = por %p330, %p331
      %s334 = sadd.s32 %s333, 1
      %p337 = scmp.eq.s32.totalorder %s37, 1
      %p338 = scmp.ne.s32.totalorder %s333, %s335
      %p339 = scmp.eq.s32.totalorder %s37, 0
      %p340 = por %p338, %p339
      %p341 = scmp.ne.s32.totalorder %s333, %s335
      %p342 = scmp.eq.s32.totalorder %s42, 1
      %p343 = por %p341, %p342
      %p344 = scmp.ne.s32.totalorder %s335, %s336
      %p345 = scmp.eq.s32.totalorder %s42, 0
      %p346 = por %p344, %p345
      %p347 = scmp.ne.s32.totalorder %s335, %s336
      %p348 = scmp.eq.s32.totalorder %s43, 1
      %p349 = por %p347, %p348
      %p351 = scmp.ne.s32.totalorder %s336, %s350
      %p352 = scmp.eq.s32.totalorder %s43, 0
      %p353 = por %p351, %p352
      %s355 = sadd.s32 %s354, 1
      %p358 = scmp.eq.s32.totalorder %s37, 1
      %p359 = scmp.ne.s32.totalorder %s354, %s356
      %p360 = scmp.eq.s32.totalorder %s37, 0
      %p361 = por %p359, %p360
      %p362 = scmp.ne.s32.totalorder %s354, %s356
      %p363 = scmp.eq.s32.totalorder %s42, 1
      %p364 = por %p362, %p363
      %p365 = scmp.ne.s32.totalorder %s356, %s357
      %p366 = scmp.eq.s32.totalorder %s42, 0
      %p367 = por %p365, %p366
      %p368 = scmp.ne.s32.totalorder %s356, %s357
      %p369 = scmp.eq.s32.totalorder %s43, 1
      %p370 = por %p368, %p369
      %p372 = scmp.ne.s32.totalorder %s357, %s371
      %p373 = scmp.eq.s32.totalorder %s43, 0
      %p374 = por %p372, %p373
      %s376 = sadd.s32 %s375, 1
      %p379 = scmp.eq.s32.totalorder %s37, 1
      %p380 = scmp.ne.s32.totalorder %s375, %s377
      %p381 = scmp.eq.s32.totalorder %s37, 0
      %p382 = por %p380, %p381
      %p383 = scmp.ne.s32.totalorder %s375, %s377
      %p384 = scmp.eq.s32.totalorder %s42, 1
      %p385 = por %p383, %p384
      %p386 = scmp.ne.s32.totalorder %s377, %s378
      %p387 = scmp.eq.s32.totalorder %s42, 0
      %p388 = por %p386, %p387
      %p389 = scmp.ne.s32.totalorder %s377, %s378
      %p390 = scmp.eq.s32.totalorder %s43, 1
      %p391 = por %p389, %p390
      %p393 = scmp.ne.s32.totalorder %s378, %s392
      %p394 = scmp.eq.s32.totalorder %s43, 0
      %p395 = por %p393, %p394
      %s396 = ssub.s32 %s37, %s44
      %p397 = scmp.eq.s32.totalorder %s396, 0
      %s399 = sadd.s32 %s398, 1
      %s400 = scalar_select %p397, %s398, %s399
      %p403 = pneg %p397
      %p404 = scmp.eq.s32.totalorder %s37, 1
      %p405 = por %p403, %p404
      %p406 = scmp.ne.s32.totalorder %s398, %s401
      %p407 = scmp.eq.s32.totalorder %s37, 0
      %p408 = por %p406, %p407
      %p409 = scmp.ne.s32.totalorder %s398, %s401
      %p410 = scmp.eq.s32.totalorder %s42, 1
      %p411 = por %p409, %p410
      %p412 = scmp.ne.s32.totalorder %s401, %s402
      %p413 = scmp.eq.s32.totalorder %s42, 0
      %p414 = por %p412, %p413
      %p415 = scmp.ne.s32.totalorder %s401, %s402
      %p416 = scmp.eq.s32.totalorder %s43, 1
      %p417 = por %p415, %p416
      %p419 = scmp.ne.s32.totalorder %s402, %s418
      %p420 = scmp.eq.s32.totalorder %s43, 0
      %p421 = por %p419, %p420
      %s422 = ssub.s32 %s37, %s44
      %p423 = scmp.eq.s32.totalorder %s422, 0
      %s425 = sadd.s32 %s424, 1
      %s426 = scalar_select %p423, %s424, %s425
      %p429 = pneg %p423
      %p430 = scmp.eq.s32.totalorder %s37, 1
      %p431 = por %p429, %p430
      %p432 = scmp.ne.s32.totalorder %s424, %s427
      %p433 = scmp.eq.s32.totalorder %s37, 0
      %p434 = por %p432, %p433
      %p435 = scmp.ne.s32.totalorder %s424, %s427
      %p436 = scmp.eq.s32.totalorder %s42, 1
      %p437 = por %p435, %p436
      %p438 = scmp.ne.s32.totalorder %s427, %s428
      %p439 = scmp.eq.s32.totalorder %s42, 0
      %p440 = por %p438, %p439
      %p441 = scmp.ne.s32.totalorder %s427, %s428
      %p442 = scmp.eq.s32.totalorder %s43, 1
      %p443 = por %p441, %p442
      %p445 = scmp.ne.s32.totalorder %s428, %s444
      %p446 = scmp.eq.s32.totalorder %s43, 0
      %p447 = por %p445, %p446
      %s448 = ssub.s32 %s37, %s44
      %p449 = scmp.eq.s32.totalorder %s448, 0
      %s451 = sadd.s32 %s450, 1
      %s452 = scalar_select %p449, %s450, %s451
      %p455 = pneg %p449
      %p456 = scmp.eq.s32.totalorder %s37, 1
      %p457 = por %p455, %p456
      %p458 = scmp.ne.s32.totalorder %s450, %s453
      %p459 = scmp.eq.s32.totalorder %s37, 0
      %p460 = por %p458, %p459
      %p461 = scmp.ne.s32.totalorder %s450, %s453
      %p462 = scmp.eq.s32.totalorder %s42, 1
      %p463 = por %p461, %p462
      %p464 = scmp.ne.s32.totalorder %s453, %s454
      %p465 = scmp.eq.s32.totalorder %s42, 0
      %p466 = por %p464, %p465
      %p467 = scmp.ne.s32.totalorder %s453, %s454
      %p468 = scmp.eq.s32.totalorder %s43, 1
      %p469 = por %p467, %p468
      %p471 = scmp.ne.s32.totalorder %s454, %s470
      %p472 = scmp.eq.s32.totalorder %s43, 0
      %p473 = por %p471, %p472
      %p474 = scmp.le.s32.totalorder 1, %s37
      %p475 = scmp.lt.s32.totalorder %s37, 3
      %p476 = pnand %p474, %p475
      %p477 = pneg %p476
      // Predicated region
      $region9: #{tpu_custom_call.1} parent=5 // pred_check
        _
      $region10: #{tpu_custom_call.1} parent=5 // pred_check_branch
        %479 = sbr.rel (%p476) target = $region12
      $region11: #{tpu_custom_call.1} parent=5 // pred_region
        %s480 = ssub.s32 %s37, 1
        // Predicated region
        $region13: #{tpu_custom_call.1} parent=11 // pred_check
          %p481 = pneg %p58
        $region14: #{tpu_custom_call.1} parent=11 // pred_check_branch
          %483 = sbr.rel (%p481) target = $region16
        $region15: #{tpu_custom_call.1} parent=11 // pred_region
          _
        $region16: #{tpu_custom_call.1} parent=11 // pred_fallthru
          _
        // Predicated region
        $region17: #{tpu_custom_call.1} parent=11 // pred_check
          %p484 = pneg %p131
        $region18: #{tpu_custom_call.1} parent=11 // pred_check_branch
          %486 = sbr.rel (%p484) target = $region20
        $region19: #{tpu_custom_call.1} parent=11 // pred_region
          %s488 = ssub.s32 192, 192
          %489 = vsyncadd [#allocation6], %s488
          %s491 = sshll.u32 [#allocation5], 4
          %s492 = int_to_ptr.vmem [resolvable:$true] %s491
          %494 = dma.hbm_to_vmem [thread:$0]  %s3, 192, %s492, [#allocation6]
        $region20: #{tpu_custom_call.1} parent=11 // pred_fallthru
          _
        // Predicated region
        $region21: #{tpu_custom_call.1} parent=11 // pred_check
          %p495 = pneg %p152
        $region22: #{tpu_custom_call.1} parent=11 // pred_check_branch
          %497 = sbr.rel (%p495) target = $region24
        $region23: #{tpu_custom_call.1} parent=11 // pred_region
          %s499 = ssub.s32 8192, 8192
          %500 = vsyncadd [#allocation6], %s499
          %s501 = sshll.u32 [#allocation7], 4
          %s502 = int_to_ptr.vmem [resolvable:$true] %s501
          %507 = dma.hbm_to_vmem [thread:$0]  %s4, 8192, %s502, [#allocation6], 256, 256, 16
        $region24: #{tpu_custom_call.1} parent=11 // pred_fallthru
          _
        // Predicated region
        $region25: #{tpu_custom_call.1} parent=11 // pred_check
          %p508 = pneg %p173
        $region26: #{tpu_custom_call.1} parent=11 // pred_check_branch
          %510 = sbr.rel (%p508) target = $region28
        $region27: #{tpu_custom_call.1} parent=11 // pred_region
          %s512 = ssub.s32 4096, 4096
          %513 = vsyncadd [#allocation9], %s512
          %s514 = sshll.u32 [#allocation8], 4
          %s515 = int_to_ptr.vmem [resolvable:$true] %s514
          %520 = dma.hbm_to_vmem [thread:$0]  %s5, 4096, %s515, [#allocation9], 128, 128, 8
        $region28: #{tpu_custom_call.1} parent=11 // pred_fallthru
          _
        // Predicated region
        $region29: #{tpu_custom_call.1} parent=11 // pred_check
          %p521 = pneg %p194
        $region30: #{tpu_custom_call.1} parent=11 // pred_check_branch
          %523 = sbr.rel (%p521) target = $region32
        $region31: #{tpu_custom_call.1} parent=11 // pred_region
          _
        $region32: #{tpu_custom_call.1} parent=11 // pred_fallthru
          _
        // Predicated region
        $region33: #{tpu_custom_call.1} parent=11 // pred_check
          %p524 = pneg %p215
        $region34: #{tpu_custom_call.1} parent=11 // pred_check_branch
          %526 = sbr.rel (%p524) target = $region36
        $region35: #{tpu_custom_call.1} parent=11 // pred_region
          _
        $region36: #{tpu_custom_call.1} parent=11 // pred_fallthru
          _
        // Predicated region
        $region37: #{tpu_custom_call.1} parent=11 // pred_check
          %p527 = pneg %p262
        $region38: #{tpu_custom_call.1} parent=11 // pred_check_branch
          %529 = sbr.rel (%p527) target = $region40
        $region39: #{tpu_custom_call.1} parent=11 // pred_region
          %s531 = ssub.s32 12288, 12288
          %532 = vsyncadd [#allocation6], %s531
          %s533 = sshll.u32 [#allocation11], 4
          %s534 = int_to_ptr.vmem [resolvable:$true] %s533
          %539 = dma.hbm_to_vmem [thread:$0]  %s9, 12288, %s534, [#allocation6], 384, 384, 24
        $region40: #{tpu_custom_call.1} parent=11 // pred_fallthru
          _
        // Predicated region
        $region41: #{tpu_custom_call.1} parent=11 // pred_check
          %p540 = pneg %p283
        $region42: #{tpu_custom_call.1} parent=11 // pred_check_branch
          %542 = sbr.rel (%p540) target = $region44
        $region43: #{tpu_custom_call.1} parent=11 // pred_region
          %s544 = ssub.s32 8192, 8192
          %545 = vsyncadd [#allocation9], %s544
          %s546 = sshll.u32 [#allocation12], 4
          %s547 = int_to_ptr.vmem [resolvable:$true] %s546
          %552 = dma.hbm_to_vmem [thread:$0]  %s10, 8192, %s547, [#allocation9], 256, 256, 16
        $region44: #{tpu_custom_call.1} parent=11 // pred_fallthru
          _
        // Predicated region
        $region45: #{tpu_custom_call.1} parent=11 // pred_check
          %p553 = pneg %p304
        $region46: #{tpu_custom_call.1} parent=11 // pred_check_branch
          %555 = sbr.rel (%p553) target = $region48
        $region47: #{tpu_custom_call.1} parent=11 // pred_region
          %s557 = ssub.s32 4096, 4096
          %558 = vsyncadd [#allocation14], %s557
          %s559 = sshll.u32 [#allocation13], 4
          %s560 = int_to_ptr.vmem [resolvable:$true] %s559
          %565 = dma.hbm_to_vmem [thread:$0]  %s11, 4096, %s560, [#allocation14], 128, 128, 8
        $region48: #{tpu_custom_call.1} parent=11 // pred_fallthru
          _
        // Predicated region
        $region49: #{tpu_custom_call.1} parent=11 // pred_check
          %p566 = pneg %p325
        $region50: #{tpu_custom_call.1} parent=11 // pred_check_branch
          %568 = sbr.rel (%p566) target = $region52
        $region51: #{tpu_custom_call.1} parent=11 // pred_region
          _
        $region52: #{tpu_custom_call.1} parent=11 // pred_fallthru
          _
        // Predicated region
        $region53: #{tpu_custom_call.1} parent=11 // pred_check
          %p569 = pneg %p346
        $region54: #{tpu_custom_call.1} parent=11 // pred_check_branch
          %571 = sbr.rel (%p569) target = $region56
        $region55: #{tpu_custom_call.1} parent=11 // pred_region
          _
        $region56: #{tpu_custom_call.1} parent=11 // pred_fallthru
          _
        // Predicated region
        $region57: #{tpu_custom_call.1} parent=11 // pred_check
          %p572 = pneg %p367
        $region58: #{tpu_custom_call.1} parent=11 // pred_check_branch
          %574 = sbr.rel (%p572) target = $region60
        $region59: #{tpu_custom_call.1} parent=11 // pred_region
          %s576 = ssub.s32 2048, 2048
          %577 = vsyncadd [#allocation14], %s576
          %s578 = sshll.u32 [#allocation15], 4
          %s579 = int_to_ptr.vmem [resolvable:$true] %s578
          %584 = dma.hbm_to_vmem [thread:$0]  %s14, 2048, %s579, [#allocation14], 128, 128, 8
        $region60: #{tpu_custom_call.1} parent=11 // pred_fallthru
          _
        // Predicated region
        $region61: #{tpu_custom_call.1} parent=11 // pred_check
          %p585 = pneg %p388
        $region62: #{tpu_custom_call.1} parent=11 // pred_check_branch
          %587 = sbr.rel (%p585) target = $region64
        $region63: #{tpu_custom_call.1} parent=11 // pred_region
          _
        $region64: #{tpu_custom_call.1} parent=11 // pred_fallthru
          _
      $region12: #{tpu_custom_call.1} parent=5 // pred_fallthru
        _
      %p588 = scmp.lt.s32.totalorder %s37, 2
      // Predicated region
      $region65: #{tpu_custom_call.1} parent=5 // pred_check
        %p589 = pneg %p588
      $region66: #{tpu_custom_call.1} parent=5 // pred_check_branch
        %591 = sbr.rel (%p589) target = $region68
      $region67: #{tpu_custom_call.1} parent=5 // pred_region
        // Predicated region
        $region69: #{tpu_custom_call.1} parent=67 // pred_check
          %p592 = pneg %p78
        $region70: #{tpu_custom_call.1} parent=67 // pred_check_branch
          %594 = sbr.rel (%p592) target = $region72
        $region71: #{tpu_custom_call.1} parent=67 // pred_region
          %p595 = scmp.lt.s32.totalorder %s37, 1
          %s596 = scalar_select %p595, %s37, 1
          %s597 = smul.addr %s596, 2
          %s598 = smul.addr %s597, 8
          %s599 = scalar_lea.vmem %s1, %s598
        $region72: #{tpu_custom_call.1} parent=67 // pred_fallthru
          _
        // Predicated region
        $region73: #{tpu_custom_call.1} parent=67 // pred_check
          %p600 = pneg %p104
        $region74: #{tpu_custom_call.1} parent=67 // pred_check_branch
          %602 = sbr.rel (%p600) target = $region76
        $region75: #{tpu_custom_call.1} parent=67 // pred_region
          %s603 = sand.u32 %s37, 1
          %s604 = scalar_lea.sflag [#allocation3], %s603
          %s605 = sand.u32 %s94, 1
          %s606 = smul.addr %s605, 16
          %s607 = scalar_lea.vmem [#allocation2], %s606
          %s609 = ssub.s32 256, 256
          %610 = vsyncadd %s604, %s609
          %s611 = smul.addr %s37, 2
          %s612 = smul.addr %s611, 128
          %s613 = scalar_lea.hbm %s2, %s612
          %s614 = sshll.u32 %s607, 4
          %s615 = int_to_ptr.vmem [resolvable:$true] %s614
          %620 = dma.hbm_to_vmem [thread:$0]  %s613, 256, %s615, %s604, 128, 128, 8
        $region76: #{tpu_custom_call.1} parent=67 // pred_fallthru
          _
        // Predicated region
        $region77: #{tpu_custom_call.1} parent=67 // pred_check
          %p621 = pneg %p235
        $region78: #{tpu_custom_call.1} parent=67 // pred_check_branch
          %623 = sbr.rel (%p621) target = $region80
        $region79: #{tpu_custom_call.1} parent=67 // pred_region
          %s624 = sand.u32 %s37, 1
          %s625 = scalar_lea.sflag [#allocation3], %s624
          %s626 = sand.u32 %s225, 1
          %s627 = smul.addr %s626, 16
          %s628 = scalar_lea.vmem [#allocation10], %s627
          %s630 = ssub.s32 256, 256
          %631 = vsyncadd %s625, %s630
          %s632 = smul.addr %s37, 2
          %s633 = smul.addr %s632, 128
          %s634 = scalar_lea.hbm %s8, %s633
          %s635 = sshll.u32 %s628, 4
          %s636 = int_to_ptr.vmem [resolvable:$true] %s635
          %641 = dma.hbm_to_vmem [thread:$0]  %s634, 256, %s636, %s625, 128, 128, 8
        $region80: #{tpu_custom_call.1} parent=67 // pred_fallthru
          _
      $region68: #{tpu_custom_call.1} parent=5 // pred_fallthru
        _
      %p642 = scmp.le.s32.totalorder 1, %s37
      %p643 = scmp.lt.s32.totalorder %s37, 3
      %p644 = pnand %p642, %p643
      %p645 = pneg %p644
      // Predicated region
      $region81: #{tpu_custom_call.1} parent=5 // pred_check
        _
      $region82: #{tpu_custom_call.1} parent=5 // pred_check_branch
        %647 = sbr.rel (%p644) target = $region84
      $region83: #{tpu_custom_call.1} parent=5 // pred_region
        %s648 = ssub.s32 %s37, 1
        %s649 = sand.u32 %s42, 1
        %s650 = scalar_lea.sflag [#allocation3], %s649
        %s651 = sand.u32 %s97, 1
        %s652 = smul.addr %s651, 16
        %s653 = scalar_lea.vmem [#allocation2], %s652
        // Predicated region
        $region85: #{tpu_custom_call.1} parent=83 // pred_check
          %p654 = pneg %p110
        $region86: #{tpu_custom_call.1} parent=83 // pred_check_branch
          %656 = sbr.rel (%p654) target = $region88
        $region87: #{tpu_custom_call.1} parent=83 // pred_region
          %657 = dma.done %s650, 256
        $region88: #{tpu_custom_call.1} parent=83 // pred_fallthru
          _
        // Predicated region
        $region89: #{tpu_custom_call.1} parent=83 // pred_check
          %p658 = pneg %p131
        $region90: #{tpu_custom_call.1} parent=83 // pred_check_branch
          %660 = sbr.rel (%p658) target = $region92
        $region91: #{tpu_custom_call.1} parent=83 // pred_region
          %661 = dma.done [#allocation6], 192
        $region92: #{tpu_custom_call.1} parent=83 // pred_fallthru
          _
        // Predicated region
        $region93: #{tpu_custom_call.1} parent=83 // pred_check
          %p662 = pneg %p152
        $region94: #{tpu_custom_call.1} parent=83 // pred_check_branch
          %664 = sbr.rel (%p662) target = $region96
        $region95: #{tpu_custom_call.1} parent=83 // pred_region
          %665 = dma.done [#allocation6], 8192
        $region96: #{tpu_custom_call.1} parent=83 // pred_fallthru
          _
        // Predicated region
        $region97: #{tpu_custom_call.1} parent=83 // pred_check
          %p666 = pneg %p173
        $region98: #{tpu_custom_call.1} parent=83 // pred_check_branch
          %668 = sbr.rel (%p666) target = $region100
        $region99: #{tpu_custom_call.1} parent=83 // pred_region
          %669 = dma.done [#allocation9], 4096
        $region100: #{tpu_custom_call.1} parent=83 // pred_fallthru
          _
        %s670 = sand.u32 %s42, 1
        %s671 = scalar_lea.sflag [#allocation3], %s670
        %s672 = sand.u32 %s228, 1
        %s673 = smul.addr %s672, 16
        %s674 = scalar_lea.vmem [#allocation10], %s673
        // Predicated region
        $region101: #{tpu_custom_call.1} parent=83 // pred_check
          %p675 = pneg %p241
        $region102: #{tpu_custom_call.1} parent=83 // pred_check_branch
          %677 = sbr.rel (%p675) target = $region104
        $region103: #{tpu_custom_call.1} parent=83 // pred_region
          %678 = dma.done %s671, 256
        $region104: #{tpu_custom_call.1} parent=83 // pred_fallthru
          _
        // Predicated region
        $region105: #{tpu_custom_call.1} parent=83 // pred_check
          %p679 = pneg %p262
        $region106: #{tpu_custom_call.1} parent=83 // pred_check_branch
          %681 = sbr.rel (%p679) target = $region108
        $region107: #{tpu_custom_call.1} parent=83 // pred_region
          %682 = dma.done [#allocation6], 12288
        $region108: #{tpu_custom_call.1} parent=83 // pred_fallthru
          _
        // Predicated region
        $region109: #{tpu_custom_call.1} parent=83 // pred_check
          %p683 = pneg %p283
        $region110: #{tpu_custom_call.1} parent=83 // pred_check_branch
          %685 = sbr.rel (%p683) target = $region112
        $region111: #{tpu_custom_call.1} parent=83 // pred_region
          %686 = dma.done [#allocation9], 8192
        $region112: #{tpu_custom_call.1} parent=83 // pred_fallthru
          _
        // Predicated region
        $region113: #{tpu_custom_call.1} parent=83 // pred_check
          %p687 = pneg %p304
        $region114: #{tpu_custom_call.1} parent=83 // pred_check_branch
          %689 = sbr.rel (%p687) target = $region116
        $region115: #{tpu_custom_call.1} parent=83 // pred_region
          %690 = dma.done [#allocation14], 4096
        $region116: #{tpu_custom_call.1} parent=83 // pred_fallthru
          _
        // Predicated region
        $region117: #{tpu_custom_call.1} parent=83 // pred_check
          %p691 = pneg %p367
        $region118: #{tpu_custom_call.1} parent=83 // pred_check_branch
          %693 = sbr.rel (%p691) target = $region120
        $region119: #{tpu_custom_call.1} parent=83 // pred_region
          %694 = dma.done [#allocation14], 2048
        $region120: #{tpu_custom_call.1} parent=83 // pred_fallthru
          _
        %p695 = pneg %p58
        %p696 = pneg %p55
        %p697 = scmp.lt.s32.totalorder %s42, 1
        %s698 = scalar_select %p697, %s42, 1
        %s699 = smul.addr %s698, 2
        %s700 = smul.addr %s699, 8
        %s701 = scalar_lea.vmem %s1, %s700
        %p702 = pneg %p84
        %p703 = pneg %p81
        %s704 = sand.u32 %s42, 1
        %s705 = scalar_lea.sflag [#allocation3], %s704
        %s706 = sand.u32 %s97, 1
        %s707 = smul.addr %s706, 16
        %s708 = scalar_lea.vmem [#allocation2], %s707
        %p709 = pneg %p110
        %p710 = pneg %p107
        %p711 = pneg %p131
        %p712 = pneg %p128
        %p713 = pneg %p152
        %p714 = pneg %p149
        %p715 = pneg %p173
        %p716 = pneg %p170
        %p717 = pneg %p194
        %p718 = pneg %p191
        %p719 = pneg %p215
        %p720 = pneg %p212
        %s721 = sand.u32 %s42, 1
        %s722 = scalar_lea.sflag [#allocation3], %s721
        %s723 = sand.u32 %s228, 1
        %s724 = smul.addr %s723, 16
        %s725 = scalar_lea.vmem [#allocation10], %s724
        %p726 = pneg %p241
        %p727 = pneg %p238
        %p728 = pneg %p262
        %p729 = pneg %p259
        %p730 = pneg %p283
        %p731 = pneg %p280
        %p732 = pneg %p304
        %p733 = pneg %p301
        %p734 = pneg %p325
        %p735 = pneg %p322
        %p736 = pneg %p346
        %p737 = pneg %p343
        %p738 = pneg %p367
        %p739 = pneg %p364
        %p740 = pneg %p388
        %p741 = pneg %p385
        %p742 = pneg %p414
        %p743 = pneg %p411
        %s744 = sand.u32 %s401, 1
        %s745 = scalar_lea.sflag [#allocation4], %s744
        %s746 = sand.u32 %s401, 1
        %s747 = smul.addr %s746, 16
        %s748 = scalar_lea.vmem [#allocation16], %s747
        %p749 = pneg %p440
        %p750 = pneg %p437
        %s751 = sand.u32 %s42, 1
        %s752 = scalar_lea.sflag [#allocation18], %s751
        %s753 = sand.u32 %s427, 1
        %s754 = smul.addr %s753, 16
        %s755 = scalar_lea.vmem [#allocation17], %s754
        %p756 = pneg %p466
        %p757 = pneg %p463
        %s758 = sand.u32 %s42, 1
        %s759 = scalar_lea.sflag [#allocation18], %s758
        %s760 = sand.u32 %s453, 1
        %s761 = smul.addr %s760, 16
        %s762 = scalar_lea.vmem [#allocation19], %s761
        %p763 = scmp.lt.s32.totalorder %s42, 1
        %s764 = scalar_select %p763, %s42, 1
        %s765 = smul.addr %s764, 2
        %s766 = smul.addr %s765, 8
        %s767 = scalar_lea.vmem %s1, %s766
        %v768 = vld [vmem:[%s0] sm:$0xff]
        %v769 = vld [vmem:[%s0 + $0x8] sm:$0xff]
        %s770 = scalar_lea.vmem %s0, 16
        %v771 = vld [vmem:[%s770] sm:$0xff]
        %v772 = vld [vmem:[%s770 + $0x8] sm:$0xff]
        %v773 = vld [vmem:[%s767] sm:$0xff]
        %v774 = vld [vmem:[%s767 + $0x8] sm:$0xff]
        %v775 = vld [vmem:[%s653] sm:$0xff]
        %v776 = vld [vmem:[%s653 + $0x8] sm:$0xff]
        %vm777 = vcmask 130048
        %v779 = vsel %vm777, %v768, 0
        %v782 = vsel %vm777, %v769, 0
        %784 = vmatprep.subr.mxu0 0.0
        %785 = vmatpush1.msra.mxu0 0.0
        %786 = vmatprep.subr.mxu0 0.0
        %787 = vmatpush1.msra.mxu0 0.0
        %788 = vmatprep.subr.mxu0 0.0
        %789 = vmatpush1.msra.mxu0 0.0
        %790 = vmatprep.subr.mxu0 0.0
        %791 = vmatpush1.msra.mxu0 0.0
        %792 = vmatprep.subr.mxu0 0.0
        %793 = vmatpush1.msra.mxu0 0.0
        %794 = vmatprep.subr.mxu0 0.0
        %795 = vmatpush1.msra.mxu0 0.0
        %796 = vmatprep.subr.mxu0 0.0
        %797 = vmatpush1.msra.mxu0 0.0
        %798 = vmatprep.subr.mxu0 0.0
        %799 = vmatpush1.msra.mxu0 0.0
        %800 = vmatprep.subr.mxu0 0.0
        %801 = vmatpush1.msra.mxu0 0.0
        %802 = vmatprep.subr.mxu0 0.0
        %803 = vmatpush1.msra.mxu0 0.0
        %804 = vmatprep.subr.mxu0 0.0
        %805 = vmatpush1.msra.mxu0 0.0
        %806 = vmatprep.subr.mxu0 0.0
        %807 = vmatpush1.msra.mxu0 0.0
        %808 = vmatprep.subr.mxu0 0.0
        %809 = vmatpush1.msra.mxu0 0.0
        %810 = vmatprep.subr.mxu0 0.0
        %811 = vmatpush1.msra.mxu0 0.0
        %812 = vmatprep.subr.mxu0 0.0
        %813 = vmatpush1.msra.mxu0 %v774
        %814 = vmatprep.subr.mxu0 0.0
        %815 = vmatpush1.msra.mxu0 %v773
        %816 = vmatprep.subr.mxu0 0.0
        %817 = vmatpush2.msra.mxu0 0.0
        %818 = vmatprep.subr.mxu0 0.0
        %819 = vmatpush2.msra.mxu0 0.0
        %820 = vmatprep.subr.mxu0 0.0
        %821 = vmatpush2.msra.mxu0 0.0
        %822 = vmatprep.subr.mxu0 0.0
        %823 = vmatpush2.msra.mxu0 0.0
        %824 = vmatprep.subr.mxu0 0.0
        %825 = vmatpush2.msra.mxu0 0.0
        %826 = vmatprep.subr.mxu0 0.0
        %827 = vmatpush2.msra.mxu0 0.0
        %828 = vmatprep.subr.mxu0 0.0
        %829 = vmatpush2.msra.mxu0 0.0
        %830 = vmatprep.subr.mxu0 0.0
        %831 = vmatpush2.msra.mxu0 0.0
        %832 = vmatprep.subr.mxu0 0.0
        %833 = vmatpush2.msra.mxu0 0.0
        %834 = vmatprep.subr.mxu0 0.0
        %835 = vmatpush2.msra.mxu0 0.0
        %836 = vmatprep.subr.mxu0 0.0
        %837 = vmatpush2.msra.mxu0 0.0
        %838 = vmatprep.subr.mxu0 0.0
        %839 = vmatpush2.msra.mxu0 0.0
        %840 = vmatprep.subr.mxu0 0.0
        %841 = vmatpush2.msra.mxu0 0.0
        %842 = vmatprep.subr.mxu0 0.0
        %843 = vmatpush2.msra.mxu0 0.0
        %844 = vmatprep.subr.mxu0 0.0
        %845 = vmatpush2.msra.mxu0 0.0
        %846 = vmatprep.subr.mxu0 0.0
        %847 = vmatpush2.msra.mxu0 0.0
        %848 = vmatprep.mubr.f32.mxu0 0.0
        %849 = vmatmul.mubr.f32.gmra.mxu0 %v779
        %v850 = vpop.f32.mrf.mxu0
        %v851 = vadd.f32 0.0, %v850
        %v852 = vpop.f32.mrf.mxu0
        %853 = vmatprep.mubr.f32.mxu0 0.0
        %854 = vmatmul.mubr.f32.gmra.mxu0 %v782
        %v855 = vpop.f32.mrf.mxu0
        %v856 = vadd.f32 0.0, %v855
        %v857 = vpop.f32.mrf.mxu0
        %858 = vdwg.mxu0
        %v860 = vsel %vm777, %v771, 0
        %v863 = vsel %vm777, %v772, 0
        %865 = vmatprep.subr.mxu0 0.0
        %866 = vmatpush1.msra.mxu0 0.0
        %867 = vmatprep.subr.mxu0 0.0
        %868 = vmatpush1.msra.mxu0 0.0
        %869 = vmatprep.subr.mxu0 0.0
        %870 = vmatpush1.msra.mxu0 0.0
        %871 = vmatprep.subr.mxu0 0.0
        %872 = vmatpush1.msra.mxu0 0.0
        %873 = vmatprep.subr.mxu0 0.0
        %874 = vmatpush1.msra.mxu0 0.0
        %875 = vmatprep.subr.mxu0 0.0
        %876 = vmatpush1.msra.mxu0 0.0
        %877 = vmatprep.subr.mxu0 0.0
        %878 = vmatpush1.msra.mxu0 0.0
        %879 = vmatprep.subr.mxu0 0.0
        %880 = vmatpush1.msra.mxu0 0.0
        %881 = vmatprep.subr.mxu0 0.0
        %882 = vmatpush1.msra.mxu0 0.0
        %883 = vmatprep.subr.mxu0 0.0
        %884 = vmatpush1.msra.mxu0 0.0
        %885 = vmatprep.subr.mxu0 0.0
        %886 = vmatpush1.msra.mxu0 0.0
        %887 = vmatprep.subr.mxu0 0.0
        %888 = vmatpush1.msra.mxu0 0.0
        %889 = vmatprep.subr.mxu0 0.0
        %890 = vmatpush1.msra.mxu0 0.0
        %891 = vmatprep.subr.mxu0 0.0
        %892 = vmatpush1.msra.mxu0 0.0
        %893 = vmatprep.subr.mxu0 0.0
        %894 = vmatpush1.msra.mxu0 %v774
        %895 = vmatprep.subr.mxu0 0.0
        %896 = vmatpush1.msra.mxu0 %v773
        %897 = vmatprep.subr.mxu0 0.0
        %898 = vmatpush2.msra.mxu0 0.0
        %899 = vmatprep.subr.mxu0 0.0
        %900 = vmatpush2.msra.mxu0 0.0
        %901 = vmatprep.subr.mxu0 0.0
        %902 = vmatpush2.msra.mxu0 0.0
        %903 = vmatprep.subr.mxu0 0.0
        %904 = vmatpush2.msra.mxu0 0.0
        %905 = vmatprep.subr.mxu0 0.0
        %906 = vmatpush2.msra.mxu0 0.0
        %907 = vmatprep.subr.mxu0 0.0
        %908 = vmatpush2.msra.mxu0 0.0
        %909 = vmatprep.subr.mxu0 0.0
        %910 = vmatpush2.msra.mxu0 0.0
        %911 = vmatprep.subr.mxu0 0.0
        %912 = vmatpush2.msra.mxu0 0.0
        %913 = vmatprep.subr.mxu0 0.0
        %914 = vmatpush2.msra.mxu0 0.0
        %915 = vmatprep.subr.mxu0 0.0
        %916 = vmatpush2.msra.mxu0 0.0
        %917 = vmatprep.subr.mxu0 0.0
        %918 = vmatpush2.msra.mxu0 0.0
        %919 = vmatprep.subr.mxu0 0.0
        %920 = vmatpush2.msra.mxu0 0.0
        %921 = vmatprep.subr.mxu0 0.0
        %922 = vmatpush2.msra.mxu0 0.0
        %923 = vmatprep.subr.mxu0 0.0
        %924 = vmatpush2.msra.mxu0 0.0
        %925 = vmatprep.subr.mxu0 0.0
        %926 = vmatpush2.msra.mxu0 0.0
        %927 = vmatprep.subr.mxu0 0.0
        %928 = vmatpush2.msra.mxu0 0.0
        %929 = vmatprep.mubr.f32.mxu0 0.0
        %930 = vmatmul.mubr.f32.gmra.mxu0 %v860
        %v931 = vpop.f32.mrf.mxu0
        %v932 = vadd.f32 0.0, %v931
        %v933 = vpop.f32.mrf.mxu0
        %934 = vmatprep.mubr.f32.mxu0 0.0
        %935 = vmatmul.mubr.f32.gmra.mxu0 %v863
        %v936 = vpop.f32.mrf.mxu0
        %v937 = vadd.f32 0.0, %v936
        %v938 = vpop.f32.mrf.mxu0
        %939 = vdwg.mxu0
        %942 = vrot.lane.b32.xlu0 %v932, 2
        %v943 = vpop.permute.xlu0 %942
        %944 = vrot.lane.b32.xlu0 %v937, 2
        %v945 = vpop.permute.xlu0 %944
        %vm948 = vcmask 15360
        %v949 = vsel %vm948, %v851, %v943
        %v950 = vsel %vm948, %v856, %v945
        %951 = vmatprep.subr.mxu0 0.0
        %952 = vmatpush1.msra.mxu0 0.0
        %953 = vmatprep.subr.mxu0 0.0
        %954 = vmatpush1.msra.mxu0 0.0
        %955 = vmatprep.subr.mxu0 0.0
        %956 = vmatpush1.msra.mxu0 0.0
        %957 = vmatprep.subr.mxu0 0.0
        %958 = vmatpush1.msra.mxu0 0.0
        %959 = vmatprep.subr.mxu0 0.0
        %960 = vmatpush1.msra.mxu0 0.0
        %961 = vmatprep.subr.mxu0 0.0
        %962 = vmatpush1.msra.mxu0 0.0
        %963 = vmatprep.subr.mxu0 0.0
        %964 = vmatpush1.msra.mxu0 0.0
        %965 = vmatprep.subr.mxu0 0.0
        %966 = vmatpush1.msra.mxu0 0.0
        %967 = vmatprep.subr.mxu0 0.0
        %968 = vmatpush1.msra.mxu0 0.0
        %969 = vmatprep.subr.mxu0 0.0
        %970 = vmatpush1.msra.mxu0 0.0
        %971 = vmatprep.subr.mxu0 0.0
        %972 = vmatpush1.msra.mxu0 0.0
        %973 = vmatprep.subr.mxu0 0.0
        %974 = vmatpush1.msra.mxu0 0.0
        %975 = vmatprep.subr.mxu0 0.0
        %976 = vmatpush1.msra.mxu0 0.0
        %977 = vmatprep.subr.mxu0 0.0
        %978 = vmatpush1.msra.mxu0 0.0
        %979 = vmatprep.subr.mxu0 0.0
        %980 = vmatpush1.msra.mxu0 %v776
        %981 = vmatprep.subr.mxu0 0.0
        %982 = vmatpush1.msra.mxu0 %v775
        %983 = vmatprep.subr.mxu0 0.0
        %984 = vmatpush2.msra.mxu0 0.0
        %985 = vmatprep.subr.mxu0 0.0
        %986 = vmatpush2.msra.mxu0 0.0
        %987 = vmatprep.subr.mxu0 0.0
        %988 = vmatpush2.msra.mxu0 0.0
        %989 = vmatprep.subr.mxu0 0.0
        %990 = vmatpush2.msra.mxu0 0.0
        %991 = vmatprep.subr.mxu0 0.0
        %992 = vmatpush2.msra.mxu0 0.0
        %993 = vmatprep.subr.mxu0 0.0
        %994 = vmatpush2.msra.mxu0 0.0
        %995 = vmatprep.subr.mxu0 0.0
        %996 = vmatpush2.msra.mxu0 0.0
        %997 = vmatprep.subr.mxu0 0.0
        %998 = vmatpush2.msra.mxu0 0.0
        %999 = vmatprep.subr.mxu0 0.0
        %1000 = vmatpush2.msra.mxu0 0.0
        %1001 = vmatprep.subr.mxu0 0.0
        %1002 = vmatpush2.msra.mxu0 0.0
        %1003 = vmatprep.subr.mxu0 0.0
        %1004 = vmatpush2.msra.mxu0 0.0
        %1005 = vmatprep.subr.mxu0 0.0
        %1006 = vmatpush2.msra.mxu0 0.0
        %1007 = vmatprep.subr.mxu0 0.0
        %1008 = vmatpush2.msra.mxu0 0.0
        %1009 = vmatprep.subr.mxu0 0.0
        %1010 = vmatpush2.msra.mxu0 0.0
        %1011 = vmatprep.subr.mxu0 0.0
        %1012 = vmatpush2.msra.mxu0 0.0
        %1013 = vmatprep.subr.mxu0 0.0
        %1014 = vmatpush2.msra.mxu0 0.0
        %1015 = vmatprep.mubr.f32.mxu0 0.0
        %1016 = vmatmul.mubr.f32.gmra.mxu0 %v779
        %v1017 = vpop.f32.mrf.mxu0
        %v1018 = vadd.f32 0.0, %v1017
        %v1019 = vpop.f32.mrf.mxu0
        %1020 = vmatprep.mubr.f32.mxu0 0.0
        %1021 = vmatmul.mubr.f32.gmra.mxu0 %v782
        %v1022 = vpop.f32.mrf.mxu0
        %v1023 = vadd.f32 0.0, %v1022
        %v1024 = vpop.f32.mrf.mxu0
        %1025 = vdwg.mxu0
        %1026 = vmatprep.subr.mxu0 0.0
        %1027 = vmatpush1.msra.mxu0 0.0
        %1028 = vmatprep.subr.mxu0 0.0
        %1029 = vmatpush1.msra.mxu0 0.0
        %1030 = vmatprep.subr.mxu0 0.0
        %1031 = vmatpush1.msra.mxu0 0.0
        %1032 = vmatprep.subr.mxu0 0.0
        %1033 = vmatpush1.msra.mxu0 0.0
        %1034 = vmatprep.subr.mxu0 0.0
        %1035 = vmatpush1.msra.mxu0 0.0
        %1036 = vmatprep.subr.mxu0 0.0
        %1037 = vmatpush1.msra.mxu0 0.0
        %1038 = vmatprep.subr.mxu0 0.0
        %1039 = vmatpush1.msra.mxu0 0.0
        %1040 = vmatprep.subr.mxu0 0.0
        %1041 = vmatpush1.msra.mxu0 0.0
        %1042 = vmatprep.subr.mxu0 0.0
        %1043 = vmatpush1.msra.mxu0 0.0
        %1044 = vmatprep.subr.mxu0 0.0
        %1045 = vmatpush1.msra.mxu0 0.0
        %1046 = vmatprep.subr.mxu0 0.0
        %1047 = vmatpush1.msra.mxu0 0.0
        %1048 = vmatprep.subr.mxu0 0.0
        %1049 = vmatpush1.msra.mxu0 0.0
        %1050 = vmatprep.subr.mxu0 0.0
        %1051 = vmatpush1.msra.mxu0 0.0
        %1052 = vmatprep.subr.mxu0 0.0
        %1053 = vmatpush1.msra.mxu0 0.0
        %1054 = vmatprep.subr.mxu0 0.0
        %1055 = vmatpush1.msra.mxu0 %v776
        %1056 = vmatprep.subr.mxu0 0.0
        %1057 = vmatpush1.msra.mxu0 %v775
        %1058 = vmatprep.subr.mxu0 0.0
        %1059 = vmatpush2.msra.mxu0 0.0
        %1060 = vmatprep.subr.mxu0 0.0
        %1061 = vmatpush2.msra.mxu0 0.0
        %1062 = vmatprep.subr.mxu0 0.0
        %1063 = vmatpush2.msra.mxu0 0.0
        %1064 = vmatprep.subr.mxu0 0.0
        %1065 = vmatpush2.msra.mxu0 0.0
        %1066 = vmatprep.subr.mxu0 0.0
        %1067 = vmatpush2.msra.mxu0 0.0
        %1068 = vmatprep.subr.mxu0 0.0
        %1069 = vmatpush2.msra.mxu0 0.0
        %1070 = vmatprep.subr.mxu0 0.0
        %1071 = vmatpush2.msra.mxu0 0.0
        %1072 = vmatprep.subr.mxu0 0.0
        %1073 = vmatpush2.msra.mxu0 0.0
        %1074 = vmatprep.subr.mxu0 0.0
        %1075 = vmatpush2.msra.mxu0 0.0
        %1076 = vmatprep.subr.mxu0 0.0
        %1077 = vmatpush2.msra.mxu0 0.0
        %1078 = vmatprep.subr.mxu0 0.0
        %1079 = vmatpush2.msra.mxu0 0.0
        %1080 = vmatprep.subr.mxu0 0.0
        %1081 = vmatpush2.msra.mxu0 0.0
        %1082 = vmatprep.subr.mxu0 0.0
        %1083 = vmatpush2.msra.mxu0 0.0
        %1084 = vmatprep.subr.mxu0 0.0
        %1085 = vmatpush2.msra.mxu0 0.0
        %1086 = vmatprep.subr.mxu0 0.0
        %1087 = vmatpush2.msra.mxu0 0.0
        %1088 = vmatprep.subr.mxu0 0.0
        %1089 = vmatpush2.msra.mxu0 0.0
        %1090 = vmatprep.mubr.f32.mxu0 0.0
        %1091 = vmatmul.mubr.f32.gmra.mxu0 %v860
        %v1092 = vpop.f32.mrf.mxu0
        %v1093 = vadd.f32 0.0, %v1092
        %v1094 = vpop.f32.mrf.mxu0
        %1095 = vmatprep.mubr.f32.mxu0 0.0
        %1096 = vmatmul.mubr.f32.gmra.mxu0 %v863
        %v1097 = vpop.f32.mrf.mxu0
        %v1098 = vadd.f32 0.0, %v1097
        %v1099 = vpop.f32.mrf.mxu0
        %1100 = vdwg.mxu0
        %v1101 = vld [vmem:[#allocation5] sm:$0xff]
        %v1102 = vld [vmem:[#allocation5 + $0x8] sm:$0xf]
        %v1105 = vcombine.high %v1101, %v1101
        %vm1106 = vcmask 31744
        %v1108 = vsel %vm1106, %v949, 0
        %v1111 = vsel %vm1106, %v950, 0
        %vm1113 = vcmask 1043456
        %v1114 = vsel %vm1113, %v1101, 0
        %v1116 = vsel %vm1113, %v1105, 0
        %v1118 = vsel %vm1113, %v1102, 0
        %1120 = vmatprep.subr.mxu0 0.0
        %1121 = vmatpush1.msra.mxu0 0.0
        %1122 = vmatprep.subr.mxu0 0.0
        %1123 = vmatpush1.msra.mxu0 0.0
        %1124 = vmatprep.subr.mxu0 0.0
        %1125 = vmatpush1.msra.mxu0 0.0
        %1126 = vmatprep.subr.mxu0 0.0
        %1127 = vmatpush1.msra.mxu0 0.0
        %1128 = vmatprep.subr.mxu0 0.0
        %1129 = vmatpush1.msra.mxu0 0.0
        %1130 = vmatprep.subr.mxu0 0.0
        %1131 = vmatpush1.msra.mxu0 0.0
        %1132 = vmatprep.subr.mxu0 0.0
        %1133 = vmatpush1.msra.mxu0 0.0
        %1134 = vmatprep.subr.mxu0 0.0
        %1135 = vmatpush1.msra.mxu0 0.0
        %1136 = vmatprep.subr.mxu0 0.0
        %1137 = vmatpush1.msra.mxu0 0.0
        %1138 = vmatprep.subr.mxu0 0.0
        %1139 = vmatpush1.msra.mxu0 0.0
        %1140 = vmatprep.subr.mxu0 0.0
        %1141 = vmatpush1.msra.mxu0 0.0
        %1142 = vmatprep.subr.mxu0 0.0
        %1143 = vmatpush1.msra.mxu0 0.0
        %1144 = vmatprep.subr.mxu0 0.0
        %1145 = vmatpush1.msra.mxu0 0.0
        %1146 = vmatprep.subr.mxu0 0.0
        %1147 = vmatpush1.msra.mxu0 0.0
        %1148 = vmatprep.subr.mxu0 0.0
        %1149 = vmatpush1.msra.mxu0 0.0
        %1150 = vmatprep.subr.mxu0 %v1116
        %1151 = vmatpush1.msra.mxu0 %v1114
        %1152 = vmatprep.subr.mxu0 0.0
        %1153 = vmatpush2.msra.mxu0 0.0
        %1154 = vmatprep.subr.mxu0 0.0
        %1155 = vmatpush2.msra.mxu0 0.0
        %1156 = vmatprep.subr.mxu0 0.0
        %1157 = vmatpush2.msra.mxu0 0.0
        %1158 = vmatprep.subr.mxu0 0.0
        %1159 = vmatpush2.msra.mxu0 0.0
        %1160 = vmatprep.subr.mxu0 0.0
        %1161 = vmatpush2.msra.mxu0 0.0
        %1162 = vmatprep.subr.mxu0 0.0
        %1163 = vmatpush2.msra.mxu0 0.0
        %1164 = vmatprep.subr.mxu0 0.0
        %1165 = vmatpush2.msra.mxu0 0.0
        %1166 = vmatprep.subr.mxu0 0.0
        %1167 = vmatpush2.msra.mxu0 0.0
        %1168 = vmatprep.subr.mxu0 0.0
        %1169 = vmatpush2.msra.mxu0 0.0
        %1170 = vmatprep.subr.mxu0 0.0
        %1171 = vmatpush2.msra.mxu0 0.0
        %1172 = vmatprep.subr.mxu0 0.0
        %1173 = vmatpush2.msra.mxu0 0.0
        %1174 = vmatprep.subr.mxu0 0.0
        %1175 = vmatpush2.msra.mxu0 0.0
        %1176 = vmatprep.subr.mxu0 0.0
        %1177 = vmatpush2.msra.mxu0 0.0
        %1178 = vmatprep.subr.mxu0 0.0
        %1179 = vmatpush2.msra.mxu0 0.0
        %1180 = vmatprep.subr.mxu0 0.0
        %1181 = vmatpush2.msra.mxu0 0.0
        %1182 = vmatprep.subr.mxu0 0.0
        %1183 = vmatpush2.msra.mxu0 0.0
        %1184 = vmatprep.mubr.f32.mxu0 0.0
        %1185 = vmatmul.mubr.f32.gmra.mxu0 %v1108
        %v1186 = vpop.f32.mrf.mxu0
        %v1187 = vadd.f32 0.0, %v1186
        %v1188 = vpop.f32.mrf.mxu0
        %v1189 = vadd.f32 0.0, %v1188
        %1190 = vmatprep.mubr.f32.mxu0 0.0
        %1191 = vmatmul.mubr.f32.gmra.mxu0 %v1111
        %v1192 = vpop.f32.mrf.mxu0
        %v1193 = vadd.f32 0.0, %v1192
        %v1194 = vpop.f32.mrf.mxu0
        %v1195 = vadd.f32 0.0, %v1194
        %1196 = vdwg.mxu0
        %1197 = vmatprep.subr.mxu0 0.0
        %1198 = vmatpush1.msra.mxu0 0.0
        %1199 = vmatprep.subr.mxu0 0.0
        %1200 = vmatpush1.msra.mxu0 0.0
        %1201 = vmatprep.subr.mxu0 0.0
        %1202 = vmatpush1.msra.mxu0 0.0
        %1203 = vmatprep.subr.mxu0 0.0
        %1204 = vmatpush1.msra.mxu0 0.0
        %1205 = vmatprep.subr.mxu0 0.0
        %1206 = vmatpush1.msra.mxu0 0.0
        %1207 = vmatprep.subr.mxu0 0.0
        %1208 = vmatpush1.msra.mxu0 0.0
        %1209 = vmatprep.subr.mxu0 0.0
        %1210 = vmatpush1.msra.mxu0 0.0
        %1211 = vmatprep.subr.mxu0 0.0
        %1212 = vmatpush1.msra.mxu0 0.0
        %1213 = vmatprep.subr.mxu0 0.0
        %1214 = vmatpush1.msra.mxu0 0.0
        %1215 = vmatprep.subr.mxu0 0.0
        %1216 = vmatpush1.msra.mxu0 0.0
        %1217 = vmatprep.subr.mxu0 0.0
        %1218 = vmatpush1.msra.mxu0 0.0
        %1219 = vmatprep.subr.mxu0 0.0
        %1220 = vmatpush1.msra.mxu0 0.0
        %1221 = vmatprep.subr.mxu0 0.0
        %1222 = vmatpush1.msra.mxu0 0.0
        %1223 = vmatprep.subr.mxu0 0.0
        %1224 = vmatpush1.msra.mxu0 0.0
        %1225 = vmatprep.subr.mxu0 0.0
        %1226 = vmatpush1.msra.mxu0 0.0
        %1227 = vmatprep.subr.mxu0 0.0
        %1228 = vmatpush1.msra.mxu0 %v1118
        %1229 = vmatprep.subr.mxu0 0.0
        %1230 = vmatpush2.msra.mxu0 0.0
        %1231 = vmatprep.subr.mxu0 0.0
        %1232 = vmatpush2.msra.mxu0 0.0
        %1233 = vmatprep.subr.mxu0 0.0
        %1234 = vmatpush2.msra.mxu0 0.0
        %1235 = vmatprep.subr.mxu0 0.0
        %1236 = vmatpush2.msra.mxu0 0.0
        %1237 = vmatprep.subr.mxu0 0.0
        %1238 = vmatpush2.msra.mxu0 0.0
        %1239 = vmatprep.subr.mxu0 0.0
        %1240 = vmatpush2.msra.mxu0 0.0
        %1241 = vmatprep.subr.mxu0 0.0
        %1242 = vmatpush2.msra.mxu0 0.0
        %1243 = vmatprep.subr.mxu0 0.0
        %1244 = vmatpush2.msra.mxu0 0.0
        %1245 = vmatprep.subr.mxu0 0.0
        %1246 = vmatpush2.msra.mxu0 0.0
        %1247 = vmatprep.subr.mxu0 0.0
        %1248 = vmatpush2.msra.mxu0 0.0
        %1249 = vmatprep.subr.mxu0 0.0
        %1250 = vmatpush2.msra.mxu0 0.0
        %1251 = vmatprep.subr.mxu0 0.0
        %1252 = vmatpush2.msra.mxu0 0.0
        %1253 = vmatprep.subr.mxu0 0.0
        %1254 = vmatpush2.msra.mxu0 0.0
        %1255 = vmatprep.subr.mxu0 0.0
        %1256 = vmatpush2.msra.mxu0 0.0
        %1257 = vmatprep.subr.mxu0 0.0
        %1258 = vmatpush2.msra.mxu0 0.0
        %1259 = vmatprep.subr.mxu0 0.0
        %1260 = vmatpush2.msra.mxu0 0.0
        %1261 = vmatprep.mubr.f32.mxu0 0.0
        %1262 = vmatmul.mubr.f32.gmra.mxu0 %v1108
        %v1263 = vpop.f32.mrf.mxu0
        %v1264 = vadd.f32 0.0, %v1263
        %v1265 = vpop.f32.mrf.mxu0
        %1266 = vmatprep.mubr.f32.mxu0 0.0
        %1267 = vmatmul.mubr.f32.gmra.mxu0 %v1111
        %v1268 = vpop.f32.mrf.mxu0
        %v1269 = vadd.f32 0.0, %v1268
        %v1270 = vpop.f32.mrf.mxu0
        %1271 = vdwg.mxu0
        %v1272 = vld [vmem:[#allocation7] sm:$0xff]
        %v1273 = vld [vmem:[#allocation7 + $0x8] sm:$0xff]
        %v1274 = vld [vmem:[#allocation7 + $0x10] sm:$0xff]
        %v1275 = vld [vmem:[#allocation7 + $0x18] sm:$0xff]
        %v1276 = vld [vmem:[#allocation7 + $0x20] sm:$0xff]
        %v1277 = vld [vmem:[#allocation7 + $0x28] sm:$0xff]
        %v1278 = vld [vmem:[#allocation7 + $0x30] sm:$0xff]
        %v1279 = vld [vmem:[#allocation7 + $0x38] sm:$0xff]
        %v1280 = vld [vmem:[#allocation7 + $0x40] sm:$0xff]
        %v1281 = vld [vmem:[#allocation7 + $0x48] sm:$0xff]
        %v1282 = vld [vmem:[#allocation7 + $0x50] sm:$0xff]
        %v1283 = vld [vmem:[#allocation7 + $0x58] sm:$0xff]
        %v1284 = vld [vmem:[#allocation7 + $0x60] sm:$0xff]
        %v1285 = vld [vmem:[#allocation7 + $0x68] sm:$0xff]
        %v1286 = vld [vmem:[#allocation7 + $0x70] sm:$0xff]
        %v1287 = vld [vmem:[#allocation7 + $0x78] sm:$0xff]
        %v1288 = vld [vmem:[#allocation7 + $0x80] sm:$0xff]
        %v1289 = vld [vmem:[#allocation7 + $0x88] sm:$0xff]
        %v1290 = vld [vmem:[#allocation7 + $0x90] sm:$0xff]
        %v1291 = vld [vmem:[#allocation7 + $0x98] sm:$0xff]
        %v1292 = vld [vmem:[#allocation7 + $0xa0] sm:$0xff]
        %v1293 = vld [vmem:[#allocation7 + $0xa8] sm:$0xff]
        %v1294 = vld [vmem:[#allocation7 + $0xb0] sm:$0xff]
        %v1295 = vld [vmem:[#allocation7 + $0xb8] sm:$0xff]
        %v1296 = vld [vmem:[#allocation7 + $0xc0] sm:$0xff]
        %v1297 = vld [vmem:[#allocation7 + $0xc8] sm:$0xff]
        %v1298 = vld [vmem:[#allocation7 + $0xd0] sm:$0xff]
        %v1299 = vld [vmem:[#allocation7 + $0xd8] sm:$0xff]
        %v1300 = vld [vmem:[#allocation7 + $0xe0] sm:$0xff]
        %v1301 = vld [vmem:[#allocation7 + $0xe8] sm:$0xff]
        %v1302 = vld [vmem:[#allocation7 + $0xf0] sm:$0xff]
        %v1303 = vld [vmem:[#allocation7 + $0xf8] sm:$0xff]
        %v1304 = vld [vmem:[#allocation7 + $0x100] sm:$0xff]
        %v1305 = vld [vmem:[#allocation7 + $0x108] sm:$0xff]
        %v1306 = vld [vmem:[#allocation7 + $0x110] sm:$0xff]
        %v1307 = vld [vmem:[#allocation7 + $0x118] sm:$0xff]
        %v1308 = vld [vmem:[#allocation7 + $0x120] sm:$0xff]
        %v1309 = vld [vmem:[#allocation7 + $0x128] sm:$0xff]
        %v1310 = vld [vmem:[#allocation7 + $0x130] sm:$0xff]
        %v1311 = vld [vmem:[#allocation7 + $0x138] sm:$0xff]
        %v1312 = vld [vmem:[#allocation7 + $0x140] sm:$0xff]
        %v1313 = vld [vmem:[#allocation7 + $0x148] sm:$0xff]
        %v1314 = vld [vmem:[#allocation7 + $0x150] sm:$0xff]
        %v1315 = vld [vmem:[#allocation7 + $0x158] sm:$0xff]
        %v1316 = vld [vmem:[#allocation7 + $0x160] sm:$0xff]
        %v1317 = vld [vmem:[#allocation7 + $0x168] sm:$0xff]
        %v1318 = vld [vmem:[#allocation7 + $0x170] sm:$0xff]
        %v1319 = vld [vmem:[#allocation7 + $0x178] sm:$0xff]
        %v1320 = vld [vmem:[#allocation7 + $0x180] sm:$0xff]
        %v1321 = vld [vmem:[#allocation7 + $0x188] sm:$0xff]
        %v1322 = vld [vmem:[#allocation7 + $0x190] sm:$0xff]
        %v1323 = vld [vmem:[#allocation7 + $0x198] sm:$0xff]
        %v1324 = vld [vmem:[#allocation7 + $0x1a0] sm:$0xff]
        %v1325 = vld [vmem:[#allocation7 + $0x1a8] sm:$0xff]
        %v1326 = vld [vmem:[#allocation7 + $0x1b0] sm:$0xff]
        %v1327 = vld [vmem:[#allocation7 + $0x1b8] sm:$0xff]
        %v1328 = vld [vmem:[#allocation7 + $0x1c0] sm:$0xff]
        %v1329 = vld [vmem:[#allocation7 + $0x1c8] sm:$0xff]
        %v1330 = vld [vmem:[#allocation7 + $0x1d0] sm:$0xff]
        %v1331 = vld [vmem:[#allocation7 + $0x1d8] sm:$0xff]
        %v1332 = vld [vmem:[#allocation7 + $0x1e0] sm:$0xff]
        %v1333 = vld [vmem:[#allocation7 + $0x1e8] sm:$0xff]
        %v1334 = vld [vmem:[#allocation7 + $0x1f0] sm:$0xff]
        %v1335 = vld [vmem:[#allocation7 + $0x1f8] sm:$0xff]
        %v1336 = vld [vmem:[%s6] sm:$0x3]
        %v1338 = vlaneseq
        %v1339 = vshrl.u32 %v1338, 7
        %v1340 = vsub.s32 0, %v1339
        %v1341 = vrot.slane %v1336, %v1340
        %v1342 = vlaneseq
        %v1343 = vshrl.u32 %v1342, 7
        %v1344 = vsub.s32 1, %v1343
        %v1345 = vrot.slane %v1336, %v1344
        %1348 = vmatprep.subr.mxu0 %v1303
        %1349 = vmatpush1.msra.mxu0 %v1302
        %1350 = vmatprep.subr.mxu0 %v1301
        %1351 = vmatpush1.msra.mxu0 %v1300
        %1352 = vmatprep.subr.mxu0 %v1299
        %1353 = vmatpush1.msra.mxu0 %v1298
        %1354 = vmatprep.subr.mxu0 %v1297
        %1355 = vmatpush1.msra.mxu0 %v1296
        %1356 = vmatprep.subr.mxu0 %v1295
        %1357 = vmatpush1.msra.mxu0 %v1294
        %1358 = vmatprep.subr.mxu0 %v1293
        %1359 = vmatpush1.msra.mxu0 %v1292
        %1360 = vmatprep.subr.mxu0 %v1291
        %1361 = vmatpush1.msra.mxu0 %v1290
        %1362 = vmatprep.subr.mxu0 %v1289
        %1363 = vmatpush1.msra.mxu0 %v1288
        %1364 = vmatprep.subr.mxu0 %v1287
        %1365 = vmatpush1.msra.mxu0 %v1286
        %1366 = vmatprep.subr.mxu0 %v1285
        %1367 = vmatpush1.msra.mxu0 %v1284
        %1368 = vmatprep.subr.mxu0 %v1283
        %1369 = vmatpush1.msra.mxu0 %v1282
        %1370 = vmatprep.subr.mxu0 %v1281
        %1371 = vmatpush1.msra.mxu0 %v1280
        %1372 = vmatprep.subr.mxu0 %v1279
        %1373 = vmatpush1.msra.mxu0 %v1278
        %1374 = vmatprep.subr.mxu0 %v1277
        %1375 = vmatpush1.msra.mxu0 %v1276
        %1376 = vmatprep.subr.mxu0 %v1275
        %1377 = vmatpush1.msra.mxu0 %v1274
        %1378 = vmatprep.subr.mxu0 %v1273
        %1379 = vmatpush1.msra.mxu0 %v1272
        %1380 = vmatprep.subr.mxu0 %v1335
        %1381 = vmatpush2.msra.mxu0 %v1334
        %1382 = vmatprep.subr.mxu0 %v1333
        %1383 = vmatpush2.msra.mxu0 %v1332
        %1384 = vmatprep.subr.mxu0 %v1331
        %1385 = vmatpush2.msra.mxu0 %v1330
        %1386 = vmatprep.subr.mxu0 %v1329
        %1387 = vmatpush2.msra.mxu0 %v1328
        %1388 = vmatprep.subr.mxu0 %v1327
        %1389 = vmatpush2.msra.mxu0 %v1326
        %1390 = vmatprep.subr.mxu0 %v1325
        %1391 = vmatpush2.msra.mxu0 %v1324
        %1392 = vmatprep.subr.mxu0 %v1323
        %1393 = vmatpush2.msra.mxu0 %v1322
        %1394 = vmatprep.subr.mxu0 %v1321
        %1395 = vmatpush2.msra.mxu0 %v1320
        %1396 = vmatprep.subr.mxu0 %v1319
        %1397 = vmatpush2.msra.mxu0 %v1318
        %1398 = vmatprep.subr.mxu0 %v1317
        %1399 = vmatpush2.msra.mxu0 %v1316
        %1400 = vmatprep.subr.mxu0 %v1315
        %1401 = vmatpush2.msra.mxu0 %v1314
        %1402 = vmatprep.subr.mxu0 %v1313
        %1403 = vmatpush2.msra.mxu0 %v1312
        %1404 = vmatprep.subr.mxu0 %v1311
        %1405 = vmatpush2.msra.mxu0 %v1310
        %1406 = vmatprep.subr.mxu0 %v1309
        %1407 = vmatpush2.msra.mxu0 %v1308
        %1408 = vmatprep.subr.mxu0 %v1307
        %1409 = vmatpush2.msra.mxu0 %v1306
        %1410 = vmatprep.subr.mxu0 %v1305
        %1411 = vmatpush2.msra.mxu0 %v1304
        %1412 = vmatprep.mubr.f32.mxu0 %v1093
        %1413 = vmatmul.mubr.f32.gmra.mxu0 %v1018
        %v1414 = vpop.f32.mrf.mxu0
        %v1415 = vadd.f32 %v1341, %v1414
        %v1416 = vpop.f32.mrf.mxu0
        %v1417 = vadd.f32 %v1345, %v1416
        %1418 = vmatprep.mubr.f32.mxu0 %v1098
        %1419 = vmatmul.mubr.f32.gmra.mxu0 %v1023
        %v1420 = vpop.f32.mrf.mxu0
        %v1421 = vadd.f32 %v1341, %v1420
        %v1422 = vpop.f32.mrf.mxu0
        %v1423 = vadd.f32 %v1345, %v1422
        %1424 = vdwg.mxu0
        %v1425 = vadd.f32 %v1187, %v1415
        %v1426 = vadd.f32 %v1189, %v1417
        %v1427 = vadd.f32 %v1193, %v1421
        %v1428 = vadd.f32 %v1195, %v1423
        %v1429 = vxor.u32 %v1425, 2147483648
        %v1430 = vxor.u32 %v1426, 2147483648
        %v1431 = vxor.u32 %v1427, 2147483648
        %v1432 = vxor.u32 %v1428, 2147483648
        %v1433 = vmul.f32 %v1429, 1.442695
        %v1434 = vpow.pop %v1433
        %v1435 = vmul.f32 %v1430, 1.442695
        %v1436 = vpow.pop %v1435
        %v1437 = vmul.f32 %v1431, 1.442695
        %v1438 = vpow.pop %v1437
        %v1439 = vmul.f32 %v1432, 1.442695
        %v1440 = vpow.pop %v1439
        %v1441 = vadd.f32 %v1434, 1.0
        %v1442 = vadd.f32 %v1436, 1.0
        %v1443 = vadd.f32 %v1438, 1.0
        %v1444 = vadd.f32 %v1440, 1.0
        %v1445 = vrcp.pop %v1441
        %v1446 = vmul.f32 1.0, %v1445
        %v1447 = vrcp.pop %v1442
        %v1448 = vmul.f32 1.0, %v1447
        %v1449 = vrcp.pop %v1443
        %v1450 = vmul.f32 1.0, %v1449
        %v1451 = vrcp.pop %v1444
        %v1452 = vmul.f32 1.0, %v1451
        %v1453 = vmul.f32 %v1448, %v775
        %v1454 = vmul.f32 %v1452, %v776
        %1455 = vmatprep.subr.mxu0 0.0
        %1456 = vmatpush1.msra.mxu0 0.0
        %1457 = vmatprep.subr.mxu0 0.0
        %1458 = vmatpush1.msra.mxu0 0.0
        %1459 = vmatprep.subr.mxu0 0.0
        %1460 = vmatpush1.msra.mxu0 0.0
        %1461 = vmatprep.subr.mxu0 0.0
        %1462 = vmatpush1.msra.mxu0 0.0
        %1463 = vmatprep.subr.mxu0 0.0
        %1464 = vmatpush1.msra.mxu0 0.0
        %1465 = vmatprep.subr.mxu0 0.0
        %1466 = vmatpush1.msra.mxu0 0.0
        %1467 = vmatprep.subr.mxu0 0.0
        %1468 = vmatpush1.msra.mxu0 0.0
        %1469 = vmatprep.subr.mxu0 0.0
        %1470 = vmatpush1.msra.mxu0 0.0
        %1471 = vmatprep.subr.mxu0 0.0
        %1472 = vmatpush1.msra.mxu0 0.0
        %1473 = vmatprep.subr.mxu0 0.0
        %1474 = vmatpush1.msra.mxu0 0.0
        %1475 = vmatprep.subr.mxu0 0.0
        %1476 = vmatpush1.msra.mxu0 0.0
        %1477 = vmatprep.subr.mxu0 0.0
        %1478 = vmatpush1.msra.mxu0 0.0
        %1479 = vmatprep.subr.mxu0 0.0
        %1480 = vmatpush1.msra.mxu0 0.0
        %1481 = vmatprep.subr.mxu0 0.0
        %1482 = vmatpush1.msra.mxu0 0.0
        %1483 = vmatprep.subr.mxu0 0.0
        %1484 = vmatpush1.msra.mxu0 %v1454
        %1485 = vmatprep.subr.mxu0 0.0
        %1486 = vmatpush1.msra.mxu0 %v1453
        %1487 = vmatprep.subr.mxu0 0.0
        %1488 = vmatpush2.msra.mxu0 0.0
        %1489 = vmatprep.subr.mxu0 0.0
        %1490 = vmatpush2.msra.mxu0 0.0
        %1491 = vmatprep.subr.mxu0 0.0
        %1492 = vmatpush2.msra.mxu0 0.0
        %1493 = vmatprep.subr.mxu0 0.0
        %1494 = vmatpush2.msra.mxu0 0.0
        %1495 = vmatprep.subr.mxu0 0.0
        %1496 = vmatpush2.msra.mxu0 0.0
        %1497 = vmatprep.subr.mxu0 0.0
        %1498 = vmatpush2.msra.mxu0 0.0
        %1499 = vmatprep.subr.mxu0 0.0
        %1500 = vmatpush2.msra.mxu0 0.0
        %1501 = vmatprep.subr.mxu0 0.0
        %1502 = vmatpush2.msra.mxu0 0.0
        %1503 = vmatprep.subr.mxu0 0.0
        %1504 = vmatpush2.msra.mxu0 0.0
        %1505 = vmatprep.subr.mxu0 0.0
        %1506 = vmatpush2.msra.mxu0 0.0
        %1507 = vmatprep.subr.mxu0 0.0
        %1508 = vmatpush2.msra.mxu0 0.0
        %1509 = vmatprep.subr.mxu0 0.0
        %1510 = vmatpush2.msra.mxu0 0.0
        %1511 = vmatprep.subr.mxu0 0.0
        %1512 = vmatpush2.msra.mxu0 0.0
        %1513 = vmatprep.subr.mxu0 0.0
        %1514 = vmatpush2.msra.mxu0 0.0
        %1515 = vmatprep.subr.mxu0 0.0
        %1516 = vmatpush2.msra.mxu0 0.0
        %1517 = vmatprep.subr.mxu0 0.0
        %1518 = vmatpush2.msra.mxu0 0.0
        %1519 = vmatprep.mubr.f32.mxu0 0.0
        %1520 = vmatmul.mubr.f32.gmra.mxu0 %v779
        %v1521 = vpop.f32.mrf.mxu0
        %v1522 = vadd.f32 0.0, %v1521
        %v1523 = vpop.f32.mrf.mxu0
        %1524 = vmatprep.mubr.f32.mxu0 0.0
        %1525 = vmatmul.mubr.f32.gmra.mxu0 %v782
        %v1526 = vpop.f32.mrf.mxu0
        %v1527 = vadd.f32 0.0, %v1526
        %v1528 = vpop.f32.mrf.mxu0
        %1529 = vdwg.mxu0
        %1530 = vmatprep.subr.mxu0 0.0
        %1531 = vmatpush1.msra.mxu0 0.0
        %1532 = vmatprep.subr.mxu0 0.0
        %1533 = vmatpush1.msra.mxu0 0.0
        %1534 = vmatprep.subr.mxu0 0.0
        %1535 = vmatpush1.msra.mxu0 0.0
        %1536 = vmatprep.subr.mxu0 0.0
        %1537 = vmatpush1.msra.mxu0 0.0
        %1538 = vmatprep.subr.mxu0 0.0
        %1539 = vmatpush1.msra.mxu0 0.0
        %1540 = vmatprep.subr.mxu0 0.0
        %1541 = vmatpush1.msra.mxu0 0.0
        %1542 = vmatprep.subr.mxu0 0.0
        %1543 = vmatpush1.msra.mxu0 0.0
        %1544 = vmatprep.subr.mxu0 0.0
        %1545 = vmatpush1.msra.mxu0 0.0
        %1546 = vmatprep.subr.mxu0 0.0
        %1547 = vmatpush1.msra.mxu0 0.0
        %1548 = vmatprep.subr.mxu0 0.0
        %1549 = vmatpush1.msra.mxu0 0.0
        %1550 = vmatprep.subr.mxu0 0.0
        %1551 = vmatpush1.msra.mxu0 0.0
        %1552 = vmatprep.subr.mxu0 0.0
        %1553 = vmatpush1.msra.mxu0 0.0
        %1554 = vmatprep.subr.mxu0 0.0
        %1555 = vmatpush1.msra.mxu0 0.0
        %1556 = vmatprep.subr.mxu0 0.0
        %1557 = vmatpush1.msra.mxu0 0.0
        %1558 = vmatprep.subr.mxu0 0.0
        %1559 = vmatpush1.msra.mxu0 %v1454
        %1560 = vmatprep.subr.mxu0 0.0
        %1561 = vmatpush1.msra.mxu0 %v1453
        %1562 = vmatprep.subr.mxu0 0.0
        %1563 = vmatpush2.msra.mxu0 0.0
        %1564 = vmatprep.subr.mxu0 0.0
        %1565 = vmatpush2.msra.mxu0 0.0
        %1566 = vmatprep.subr.mxu0 0.0
        %1567 = vmatpush2.msra.mxu0 0.0
        %1568 = vmatprep.subr.mxu0 0.0
        %1569 = vmatpush2.msra.mxu0 0.0
        %1570 = vmatprep.subr.mxu0 0.0
        %1571 = vmatpush2.msra.mxu0 0.0
        %1572 = vmatprep.subr.mxu0 0.0
        %1573 = vmatpush2.msra.mxu0 0.0
        %1574 = vmatprep.subr.mxu0 0.0
        %1575 = vmatpush2.msra.mxu0 0.0
        %1576 = vmatprep.subr.mxu0 0.0
        %1577 = vmatpush2.msra.mxu0 0.0
        %1578 = vmatprep.subr.mxu0 0.0
        %1579 = vmatpush2.msra.mxu0 0.0
        %1580 = vmatprep.subr.mxu0 0.0
        %1581 = vmatpush2.msra.mxu0 0.0
        %1582 = vmatprep.subr.mxu0 0.0
        %1583 = vmatpush2.msra.mxu0 0.0
        %1584 = vmatprep.subr.mxu0 0.0
        %1585 = vmatpush2.msra.mxu0 0.0
        %1586 = vmatprep.subr.mxu0 0.0
        %1587 = vmatpush2.msra.mxu0 0.0
        %1588 = vmatprep.subr.mxu0 0.0
        %1589 = vmatpush2.msra.mxu0 0.0
        %1590 = vmatprep.subr.mxu0 0.0
        %1591 = vmatpush2.msra.mxu0 0.0
        %1592 = vmatprep.subr.mxu0 0.0
        %1593 = vmatpush2.msra.mxu0 0.0
        %1594 = vmatprep.mubr.f32.mxu0 0.0
        %1595 = vmatmul.mubr.f32.gmra.mxu0 %v860
        %v1596 = vpop.f32.mrf.mxu0
        %v1597 = vadd.f32 0.0, %v1596
        %v1598 = vpop.f32.mrf.mxu0
        %1599 = vmatprep.mubr.f32.mxu0 0.0
        %1600 = vmatmul.mubr.f32.gmra.mxu0 %v863
        %v1601 = vpop.f32.mrf.mxu0
        %v1602 = vadd.f32 0.0, %v1601
        %v1603 = vpop.f32.mrf.mxu0
        %1604 = vdwg.mxu0
        %v1605 = vld [vmem:[%s7] sm:$0x1]
        %v1607 = vlaneseq
        %v1608 = vshrl.u32 %v1607, 7
        %v1609 = vsub.s32 0, %v1608
        %v1610 = vrot.slane %v1605, %v1609
        %v1612 = vadd.f32 %v1264, %v1610
        %v1613 = vadd.f32 %v1269, %v1610
        %v1614 = vld [vmem:[#allocation8] sm:$0xff]
        %v1615 = vld [vmem:[#allocation8 + $0x8] sm:$0xff]
        %v1616 = vld [vmem:[#allocation8 + $0x10] sm:$0xff]
        %v1617 = vld [vmem:[#allocation8 + $0x18] sm:$0xff]
        %v1618 = vld [vmem:[#allocation8 + $0x20] sm:$0xff]
        %v1619 = vld [vmem:[#allocation8 + $0x28] sm:$0xff]
        %v1620 = vld [vmem:[#allocation8 + $0x30] sm:$0xff]
        %v1621 = vld [vmem:[#allocation8 + $0x38] sm:$0xff]
        %v1622 = vld [vmem:[#allocation8 + $0x40] sm:$0xff]
        %v1623 = vld [vmem:[#allocation8 + $0x48] sm:$0xff]
        %v1624 = vld [vmem:[#allocation8 + $0x50] sm:$0xff]
        %v1625 = vld [vmem:[#allocation8 + $0x58] sm:$0xff]
        %v1626 = vld [vmem:[#allocation8 + $0x60] sm:$0xff]
        %v1627 = vld [vmem:[#allocation8 + $0x68] sm:$0xff]
        %v1628 = vld [vmem:[#allocation8 + $0x70] sm:$0xff]
        %v1629 = vld [vmem:[#allocation8 + $0x78] sm:$0xff]
        %v1630 = vld [vmem:[#allocation8 + $0x80] sm:$0xff]
        %v1631 = vld [vmem:[#allocation8 + $0x88] sm:$0xff]
        %v1632 = vld [vmem:[#allocation8 + $0x90] sm:$0xff]
        %v1633 = vld [vmem:[#allocation8 + $0x98] sm:$0xff]
        %v1634 = vld [vmem:[#allocation8 + $0xa0] sm:$0xff]
        %v1635 = vld [vmem:[#allocation8 + $0xa8] sm:$0xff]
        %v1636 = vld [vmem:[#allocation8 + $0xb0] sm:$0xff]
        %v1637 = vld [vmem:[#allocation8 + $0xb8] sm:$0xff]
        %v1638 = vld [vmem:[#allocation8 + $0xc0] sm:$0xff]
        %v1639 = vld [vmem:[#allocation8 + $0xc8] sm:$0xff]
        %v1640 = vld [vmem:[#allocation8 + $0xd0] sm:$0xff]
        %v1641 = vld [vmem:[#allocation8 + $0xd8] sm:$0xff]
        %v1642 = vld [vmem:[#allocation8 + $0xe0] sm:$0xff]
        %v1643 = vld [vmem:[#allocation8 + $0xe8] sm:$0xff]
        %v1644 = vld [vmem:[#allocation8 + $0xf0] sm:$0xff]
        %v1645 = vld [vmem:[#allocation8 + $0xf8] sm:$0xff]
        %1646 = vmatprep.subr.mxu0 0.0
        %1647 = vmatpush1.msra.mxu0 %v1629
        %1648 = vmatprep.subr.mxu0 0.0
        %1649 = vmatpush1.msra.mxu0 %v1628
        %1650 = vmatprep.subr.mxu0 0.0
        %1651 = vmatpush1.msra.mxu0 %v1627
        %1652 = vmatprep.subr.mxu0 0.0
        %1653 = vmatpush1.msra.mxu0 %v1626
        %1654 = vmatprep.subr.mxu0 0.0
        %1655 = vmatpush1.msra.mxu0 %v1625
        %1656 = vmatprep.subr.mxu0 0.0
        %1657 = vmatpush1.msra.mxu0 %v1624
        %1658 = vmatprep.subr.mxu0 0.0
        %1659 = vmatpush1.msra.mxu0 %v1623
        %1660 = vmatprep.subr.mxu0 0.0
        %1661 = vmatpush1.msra.mxu0 %v1622
        %1662 = vmatprep.subr.mxu0 0.0
        %1663 = vmatpush1.msra.mxu0 %v1621
        %1664 = vmatprep.subr.mxu0 0.0
        %1665 = vmatpush1.msra.mxu0 %v1620
        %1666 = vmatprep.subr.mxu0 0.0
        %1667 = vmatpush1.msra.mxu0 %v1619
        %1668 = vmatprep.subr.mxu0 0.0
        %1669 = vmatpush1.msra.mxu0 %v1618
        %1670 = vmatprep.subr.mxu0 0.0
        %1671 = vmatpush1.msra.mxu0 %v1617
        %1672 = vmatprep.subr.mxu0 0.0
        %1673 = vmatpush1.msra.mxu0 %v1616
        %1674 = vmatprep.subr.mxu0 0.0
        %1675 = vmatpush1.msra.mxu0 %v1615
        %1676 = vmatprep.subr.mxu0 0.0
        %1677 = vmatpush1.msra.mxu0 %v1614
        %1678 = vmatprep.subr.mxu0 0.0
        %1679 = vmatpush2.msra.mxu0 %v1645
        %1680 = vmatprep.subr.mxu0 0.0
        %1681 = vmatpush2.msra.mxu0 %v1644
        %1682 = vmatprep.subr.mxu0 0.0
        %1683 = vmatpush2.msra.mxu0 %v1643
        %1684 = vmatprep.subr.mxu0 0.0
        %1685 = vmatpush2.msra.mxu0 %v1642
        %1686 = vmatprep.subr.mxu0 0.0
        %1687 = vmatpush2.msra.mxu0 %v1641
        %1688 = vmatprep.subr.mxu0 0.0
        %1689 = vmatpush2.msra.mxu0 %v1640
        %1690 = vmatprep.subr.mxu0 0.0
        %1691 = vmatpush2.msra.mxu0 %v1639
        %1692 = vmatprep.subr.mxu0 0.0
        %1693 = vmatpush2.msra.mxu0 %v1638
        %1694 = vmatprep.subr.mxu0 0.0
        %1695 = vmatpush2.msra.mxu0 %v1637
        %1696 = vmatprep.subr.mxu0 0.0
        %1697 = vmatpush2.msra.mxu0 %v1636
        %1698 = vmatprep.subr.mxu0 0.0
        %1699 = vmatpush2.msra.mxu0 %v1635
        %1700 = vmatprep.subr.mxu0 0.0
        %1701 = vmatpush2.msra.mxu0 %v1634
        %1702 = vmatprep.subr.mxu0 0.0
        %1703 = vmatpush2.msra.mxu0 %v1633
        %1704 = vmatprep.subr.mxu0 0.0
        %1705 = vmatpush2.msra.mxu0 %v1632
        %1706 = vmatprep.subr.mxu0 0.0
        %1707 = vmatpush2.msra.mxu0 %v1631
        %1708 = vmatprep.subr.mxu0 0.0
        %1709 = vmatpush2.msra.mxu0 %v1630
        %1710 = vmatprep.mubr.f32.mxu0 %v1597
        %1711 = vmatmul.mubr.f32.gmra.mxu0 %v1522
        %v1712 = vpop.f32.mrf.mxu0
        %v1713 = vadd.f32 0.0, %v1712
        %v1714 = vpop.f32.mrf.mxu0
        %1715 = vmatprep.mubr.f32.mxu0 %v1602
        %1716 = vmatmul.mubr.f32.gmra.mxu0 %v1527
        %v1717 = vpop.f32.mrf.mxu0
        %v1718 = vadd.f32 0.0, %v1717
        %v1719 = vpop.f32.mrf.mxu0
        %1720 = vdwg.mxu0
        %v1721 = vadd.f32 %v1612, %v1713
        %v1722 = vadd.f32 %v1613, %v1718
        %v1723 = vtanh.pop %v1721
        %v1724 = vtanh.pop %v1722
        %v1725 = vsub.f32 1.0, %v1446
        %v1726 = vsub.f32 1.0, %v1450
        %v1727 = vmul.f32 %v1725, %v775
        %v1728 = vmul.f32 %v1726, %v776
        %v1729 = vmul.f32 %v1446, %v1723
        %v1730 = vmul.f32 %v1450, %v1724
        %v1731 = vadd.f32 %v1727, %v1729
        %v1732 = vadd.f32 %v1728, %v1730
        %v1733 = vld [vmem:[%s674] sm:$0xff]
        %v1734 = vld [vmem:[%s674 + $0x8] sm:$0xff]
        %1735 = vmatprep.subr.mxu0 0.0
        %1736 = vmatpush1.msra.mxu0 0.0
        %1737 = vmatprep.subr.mxu0 0.0
        %1738 = vmatpush1.msra.mxu0 0.0
        %1739 = vmatprep.subr.mxu0 0.0
        %1740 = vmatpush1.msra.mxu0 0.0
        %1741 = vmatprep.subr.mxu0 0.0
        %1742 = vmatpush1.msra.mxu0 0.0
        %1743 = vmatprep.subr.mxu0 0.0
        %1744 = vmatpush1.msra.mxu0 0.0
        %1745 = vmatprep.subr.mxu0 0.0
        %1746 = vmatpush1.msra.mxu0 0.0
        %1747 = vmatprep.subr.mxu0 0.0
        %1748 = vmatpush1.msra.mxu0 0.0
        %1749 = vmatprep.subr.mxu0 0.0
        %1750 = vmatpush1.msra.mxu0 0.0
        %1751 = vmatprep.subr.mxu0 0.0
        %1752 = vmatpush1.msra.mxu0 0.0
        %1753 = vmatprep.subr.mxu0 0.0
        %1754 = vmatpush1.msra.mxu0 0.0
        %1755 = vmatprep.subr.mxu0 0.0
        %1756 = vmatpush1.msra.mxu0 0.0
        %1757 = vmatprep.subr.mxu0 0.0
        %1758 = vmatpush1.msra.mxu0 0.0
        %1759 = vmatprep.subr.mxu0 0.0
        %1760 = vmatpush1.msra.mxu0 0.0
        %1761 = vmatprep.subr.mxu0 0.0
        %1762 = vmatpush1.msra.mxu0 0.0
        %1763 = vmatprep.subr.mxu0 0.0
        %1764 = vmatpush1.msra.mxu0 %v1732
        %1765 = vmatprep.subr.mxu0 0.0
        %1766 = vmatpush1.msra.mxu0 %v1731
        %1767 = vmatprep.subr.mxu0 0.0
        %1768 = vmatpush2.msra.mxu0 0.0
        %1769 = vmatprep.subr.mxu0 0.0
        %1770 = vmatpush2.msra.mxu0 0.0
        %1771 = vmatprep.subr.mxu0 0.0
        %1772 = vmatpush2.msra.mxu0 0.0
        %1773 = vmatprep.subr.mxu0 0.0
        %1774 = vmatpush2.msra.mxu0 0.0
        %1775 = vmatprep.subr.mxu0 0.0
        %1776 = vmatpush2.msra.mxu0 0.0
        %1777 = vmatprep.subr.mxu0 0.0
        %1778 = vmatpush2.msra.mxu0 0.0
        %1779 = vmatprep.subr.mxu0 0.0
        %1780 = vmatpush2.msra.mxu0 0.0
        %1781 = vmatprep.subr.mxu0 0.0
        %1782 = vmatpush2.msra.mxu0 0.0
        %1783 = vmatprep.subr.mxu0 0.0
        %1784 = vmatpush2.msra.mxu0 0.0
        %1785 = vmatprep.subr.mxu0 0.0
        %1786 = vmatpush2.msra.mxu0 0.0
        %1787 = vmatprep.subr.mxu0 0.0
        %1788 = vmatpush2.msra.mxu0 0.0
        %1789 = vmatprep.subr.mxu0 0.0
        %1790 = vmatpush2.msra.mxu0 0.0
        %1791 = vmatprep.subr.mxu0 0.0
        %1792 = vmatpush2.msra.mxu0 0.0
        %1793 = vmatprep.subr.mxu0 0.0
        %1794 = vmatpush2.msra.mxu0 0.0
        %1795 = vmatprep.subr.mxu0 0.0
        %1796 = vmatpush2.msra.mxu0 0.0
        %1797 = vmatprep.subr.mxu0 0.0
        %1798 = vmatpush2.msra.mxu0 0.0
        %1799 = vmatprep.mubr.f32.mxu0 0.0
        %1800 = vmatmul.mubr.f32.gmra.mxu0 %v779
        %v1801 = vpop.f32.mrf.mxu0
        %v1802 = vadd.f32 0.0, %v1801
        %v1803 = vpop.f32.mrf.mxu0
        %1804 = vmatprep.mubr.f32.mxu0 0.0
        %1805 = vmatmul.mubr.f32.gmra.mxu0 %v782
        %v1806 = vpop.f32.mrf.mxu0
        %v1807 = vadd.f32 0.0, %v1806
        %v1808 = vpop.f32.mrf.mxu0
        %1809 = vdwg.mxu0
        %1810 = vmatprep.subr.mxu0 0.0
        %1811 = vmatpush1.msra.mxu0 0.0
        %1812 = vmatprep.subr.mxu0 0.0
        %1813 = vmatpush1.msra.mxu0 0.0
        %1814 = vmatprep.subr.mxu0 0.0
        %1815 = vmatpush1.msra.mxu0 0.0
        %1816 = vmatprep.subr.mxu0 0.0
        %1817 = vmatpush1.msra.mxu0 0.0
        %1818 = vmatprep.subr.mxu0 0.0
        %1819 = vmatpush1.msra.mxu0 0.0
        %1820 = vmatprep.subr.mxu0 0.0
        %1821 = vmatpush1.msra.mxu0 0.0
        %1822 = vmatprep.subr.mxu0 0.0
        %1823 = vmatpush1.msra.mxu0 0.0
        %1824 = vmatprep.subr.mxu0 0.0
        %1825 = vmatpush1.msra.mxu0 0.0
        %1826 = vmatprep.subr.mxu0 0.0
        %1827 = vmatpush1.msra.mxu0 0.0
        %1828 = vmatprep.subr.mxu0 0.0
        %1829 = vmatpush1.msra.mxu0 0.0
        %1830 = vmatprep.subr.mxu0 0.0
        %1831 = vmatpush1.msra.mxu0 0.0
        %1832 = vmatprep.subr.mxu0 0.0
        %1833 = vmatpush1.msra.mxu0 0.0
        %1834 = vmatprep.subr.mxu0 0.0
        %1835 = vmatpush1.msra.mxu0 0.0
        %1836 = vmatprep.subr.mxu0 0.0
        %1837 = vmatpush1.msra.mxu0 0.0
        %1838 = vmatprep.subr.mxu0 0.0
        %1839 = vmatpush1.msra.mxu0 %v1732
        %1840 = vmatprep.subr.mxu0 0.0
        %1841 = vmatpush1.msra.mxu0 %v1731
        %1842 = vmatprep.subr.mxu0 0.0
        %1843 = vmatpush2.msra.mxu0 0.0
        %1844 = vmatprep.subr.mxu0 0.0
        %1845 = vmatpush2.msra.mxu0 0.0
        %1846 = vmatprep.subr.mxu0 0.0
        %1847 = vmatpush2.msra.mxu0 0.0
        %1848 = vmatprep.subr.mxu0 0.0
        %1849 = vmatpush2.msra.mxu0 0.0
        %1850 = vmatprep.subr.mxu0 0.0
        %1851 = vmatpush2.msra.mxu0 0.0
        %1852 = vmatprep.subr.mxu0 0.0
        %1853 = vmatpush2.msra.mxu0 0.0
        %1854 = vmatprep.subr.mxu0 0.0
        %1855 = vmatpush2.msra.mxu0 0.0
        %1856 = vmatprep.subr.mxu0 0.0
        %1857 = vmatpush2.msra.mxu0 0.0
        %1858 = vmatprep.subr.mxu0 0.0
        %1859 = vmatpush2.msra.mxu0 0.0
        %1860 = vmatprep.subr.mxu0 0.0
        %1861 = vmatpush2.msra.mxu0 0.0
        %1862 = vmatprep.subr.mxu0 0.0
        %1863 = vmatpush2.msra.mxu0 0.0
        %1864 = vmatprep.subr.mxu0 0.0
        %1865 = vmatpush2.msra.mxu0 0.0
        %1866 = vmatprep.subr.mxu0 0.0
        %1867 = vmatpush2.msra.mxu0 0.0
        %1868 = vmatprep.subr.mxu0 0.0
        %1869 = vmatpush2.msra.mxu0 0.0
        %1870 = vmatprep.subr.mxu0 0.0
        %1871 = vmatpush2.msra.mxu0 0.0
        %1872 = vmatprep.subr.mxu0 0.0
        %1873 = vmatpush2.msra.mxu0 0.0
        %1874 = vmatprep.mubr.f32.mxu0 0.0
        %1875 = vmatmul.mubr.f32.gmra.mxu0 %v860
        %v1876 = vpop.f32.mrf.mxu0
        %v1877 = vadd.f32 0.0, %v1876
        %v1878 = vpop.f32.mrf.mxu0
        %1879 = vmatprep.mubr.f32.mxu0 0.0
        %1880 = vmatmul.mubr.f32.gmra.mxu0 %v863
        %v1881 = vpop.f32.mrf.mxu0
        %v1882 = vadd.f32 0.0, %v1881
        %v1883 = vpop.f32.mrf.mxu0
        %1884 = vdwg.mxu0
        %1885 = vmatprep.subr.mxu0 0.0
        %1886 = vmatpush1.msra.mxu0 0.0
        %1887 = vmatprep.subr.mxu0 0.0
        %1888 = vmatpush1.msra.mxu0 0.0
        %1889 = vmatprep.subr.mxu0 0.0
        %1890 = vmatpush1.msra.mxu0 0.0
        %1891 = vmatprep.subr.mxu0 0.0
        %1892 = vmatpush1.msra.mxu0 0.0
        %1893 = vmatprep.subr.mxu0 0.0
        %1894 = vmatpush1.msra.mxu0 0.0
        %1895 = vmatprep.subr.mxu0 0.0
        %1896 = vmatpush1.msra.mxu0 0.0
        %1897 = vmatprep.subr.mxu0 0.0
        %1898 = vmatpush1.msra.mxu0 0.0
        %1899 = vmatprep.subr.mxu0 0.0
        %1900 = vmatpush1.msra.mxu0 0.0
        %1901 = vmatprep.subr.mxu0 0.0
        %1902 = vmatpush1.msra.mxu0 0.0
        %1903 = vmatprep.subr.mxu0 0.0
        %1904 = vmatpush1.msra.mxu0 0.0
        %1905 = vmatprep.subr.mxu0 0.0
        %1906 = vmatpush1.msra.mxu0 0.0
        %1907 = vmatprep.subr.mxu0 0.0
        %1908 = vmatpush1.msra.mxu0 0.0
        %1909 = vmatprep.subr.mxu0 0.0
        %1910 = vmatpush1.msra.mxu0 0.0
        %1911 = vmatprep.subr.mxu0 0.0
        %1912 = vmatpush1.msra.mxu0 0.0
        %1913 = vmatprep.subr.mxu0 0.0
        %1914 = vmatpush1.msra.mxu0 %v1734
        %1915 = vmatprep.subr.mxu0 0.0
        %1916 = vmatpush1.msra.mxu0 %v1733
        %1917 = vmatprep.subr.mxu0 0.0
        %1918 = vmatpush2.msra.mxu0 0.0
        %1919 = vmatprep.subr.mxu0 0.0
        %1920 = vmatpush2.msra.mxu0 0.0
        %1921 = vmatprep.subr.mxu0 0.0
        %1922 = vmatpush2.msra.mxu0 0.0
        %1923 = vmatprep.subr.mxu0 0.0
        %1924 = vmatpush2.msra.mxu0 0.0
        %1925 = vmatprep.subr.mxu0 0.0
        %1926 = vmatpush2.msra.mxu0 0.0
        %1927 = vmatprep.subr.mxu0 0.0
        %1928 = vmatpush2.msra.mxu0 0.0
        %1929 = vmatprep.subr.mxu0 0.0
        %1930 = vmatpush2.msra.mxu0 0.0
        %1931 = vmatprep.subr.mxu0 0.0
        %1932 = vmatpush2.msra.mxu0 0.0
        %1933 = vmatprep.subr.mxu0 0.0
        %1934 = vmatpush2.msra.mxu0 0.0
        %1935 = vmatprep.subr.mxu0 0.0
        %1936 = vmatpush2.msra.mxu0 0.0
        %1937 = vmatprep.subr.mxu0 0.0
        %1938 = vmatpush2.msra.mxu0 0.0
        %1939 = vmatprep.subr.mxu0 0.0
        %1940 = vmatpush2.msra.mxu0 0.0
        %1941 = vmatprep.subr.mxu0 0.0
        %1942 = vmatpush2.msra.mxu0 0.0
        %1943 = vmatprep.subr.mxu0 0.0
        %1944 = vmatpush2.msra.mxu0 0.0
        %1945 = vmatprep.subr.mxu0 0.0
        %1946 = vmatpush2.msra.mxu0 0.0
        %1947 = vmatprep.subr.mxu0 0.0
        %1948 = vmatpush2.msra.mxu0 0.0
        %1949 = vmatprep.mubr.f32.mxu0 0.0
        %1950 = vmatmul.mubr.f32.gmra.mxu0 %v779
        %v1951 = vpop.f32.mrf.mxu0
        %v1952 = vadd.f32 0.0, %v1951
        %v1953 = vpop.f32.mrf.mxu0
        %1954 = vmatprep.mubr.f32.mxu0 0.0
        %1955 = vmatmul.mubr.f32.gmra.mxu0 %v782
        %v1956 = vpop.f32.mrf.mxu0
        %v1957 = vadd.f32 0.0, %v1956
        %v1958 = vpop.f32.mrf.mxu0
        %1959 = vdwg.mxu0
        %1960 = vmatprep.subr.mxu0 0.0
        %1961 = vmatpush1.msra.mxu0 0.0
        %1962 = vmatprep.subr.mxu0 0.0
        %1963 = vmatpush1.msra.mxu0 0.0
        %1964 = vmatprep.subr.mxu0 0.0
        %1965 = vmatpush1.msra.mxu0 0.0
        %1966 = vmatprep.subr.mxu0 0.0
        %1967 = vmatpush1.msra.mxu0 0.0
        %1968 = vmatprep.subr.mxu0 0.0
        %1969 = vmatpush1.msra.mxu0 0.0
        %1970 = vmatprep.subr.mxu0 0.0
        %1971 = vmatpush1.msra.mxu0 0.0
        %1972 = vmatprep.subr.mxu0 0.0
        %1973 = vmatpush1.msra.mxu0 0.0
        %1974 = vmatprep.subr.mxu0 0.0
        %1975 = vmatpush1.msra.mxu0 0.0
        %1976 = vmatprep.subr.mxu0 0.0
        %1977 = vmatpush1.msra.mxu0 0.0
        %1978 = vmatprep.subr.mxu0 0.0
        %1979 = vmatpush1.msra.mxu0 0.0
        %1980 = vmatprep.subr.mxu0 0.0
        %1981 = vmatpush1.msra.mxu0 0.0
        %1982 = vmatprep.subr.mxu0 0.0
        %1983 = vmatpush1.msra.mxu0 0.0
        %1984 = vmatprep.subr.mxu0 0.0
        %1985 = vmatpush1.msra.mxu0 0.0
        %1986 = vmatprep.subr.mxu0 0.0
        %1987 = vmatpush1.msra.mxu0 0.0
        %1988 = vmatprep.subr.mxu0 0.0
        %1989 = vmatpush1.msra.mxu0 %v1734
        %1990 = vmatprep.subr.mxu0 0.0
        %1991 = vmatpush1.msra.mxu0 %v1733
        %1992 = vmatprep.subr.mxu0 0.0
        %1993 = vmatpush2.msra.mxu0 0.0
        %1994 = vmatprep.subr.mxu0 0.0
        %1995 = vmatpush2.msra.mxu0 0.0
        %1996 = vmatprep.subr.mxu0 0.0
        %1997 = vmatpush2.msra.mxu0 0.0
        %1998 = vmatprep.subr.mxu0 0.0
        %1999 = vmatpush2.msra.mxu0 0.0
        %2000 = vmatprep.subr.mxu0 0.0
        %2001 = vmatpush2.msra.mxu0 0.0
        %2002 = vmatprep.subr.mxu0 0.0
        %2003 = vmatpush2.msra.mxu0 0.0
        %2004 = vmatprep.subr.mxu0 0.0
        %2005 = vmatpush2.msra.mxu0 0.0
        %2006 = vmatprep.subr.mxu0 0.0
        %2007 = vmatpush2.msra.mxu0 0.0
        %2008 = vmatprep.subr.mxu0 0.0
        %2009 = vmatpush2.msra.mxu0 0.0
        %2010 = vmatprep.subr.mxu0 0.0
        %2011 = vmatpush2.msra.mxu0 0.0
        %2012 = vmatprep.subr.mxu0 0.0
        %2013 = vmatpush2.msra.mxu0 0.0
        %2014 = vmatprep.subr.mxu0 0.0
        %2015 = vmatpush2.msra.mxu0 0.0
        %2016 = vmatprep.subr.mxu0 0.0
        %2017 = vmatpush2.msra.mxu0 0.0
        %2018 = vmatprep.subr.mxu0 0.0
        %2019 = vmatpush2.msra.mxu0 0.0
        %2020 = vmatprep.subr.mxu0 0.0
        %2021 = vmatpush2.msra.mxu0 0.0
        %2022 = vmatprep.subr.mxu0 0.0
        %2023 = vmatpush2.msra.mxu0 0.0
        %2024 = vmatprep.mubr.f32.mxu0 0.0
        %2025 = vmatmul.mubr.f32.gmra.mxu0 %v860
        %v2026 = vpop.f32.mrf.mxu0
        %v2027 = vadd.f32 0.0, %v2026
        %v2028 = vpop.f32.mrf.mxu0
        %2029 = vmatprep.mubr.f32.mxu0 0.0
        %2030 = vmatmul.mubr.f32.gmra.mxu0 %v863
        %v2031 = vpop.f32.mrf.mxu0
        %v2032 = vadd.f32 0.0, %v2031
        %v2033 = vpop.f32.mrf.mxu0
        %2034 = vdwg.mxu0
        %v2035 = vld [vmem:[#allocation11] sm:$0xff]
        %v2036 = vld [vmem:[#allocation11 + $0x8] sm:$0xff]
        %v2037 = vld [vmem:[#allocation11 + $0x10] sm:$0xff]
        %v2038 = vld [vmem:[#allocation11 + $0x18] sm:$0xff]
        %v2039 = vld [vmem:[#allocation11 + $0x20] sm:$0xff]
        %v2040 = vld [vmem:[#allocation11 + $0x28] sm:$0xff]
        %v2041 = vld [vmem:[#allocation11 + $0x30] sm:$0xff]
        %v2042 = vld [vmem:[#allocation11 + $0x38] sm:$0xff]
        %v2043 = vld [vmem:[#allocation11 + $0x40] sm:$0xff]
        %v2044 = vld [vmem:[#allocation11 + $0x48] sm:$0xff]
        %v2045 = vld [vmem:[#allocation11 + $0x50] sm:$0xff]
        %v2046 = vld [vmem:[#allocation11 + $0x58] sm:$0xff]
        %v2047 = vld [vmem:[#allocation11 + $0x60] sm:$0xff]
        %v2048 = vld [vmem:[#allocation11 + $0x68] sm:$0xff]
        %v2049 = vld [vmem:[#allocation11 + $0x70] sm:$0xff]
        %v2050 = vld [vmem:[#allocation11 + $0x78] sm:$0xff]
        %v2051 = vld [vmem:[#allocation11 + $0x80] sm:$0xff]
        %v2052 = vld [vmem:[#allocation11 + $0x88] sm:$0xff]
        %v2053 = vld [vmem:[#allocation11 + $0x90] sm:$0xff]
        %v2054 = vld [vmem:[#allocation11 + $0x98] sm:$0xff]
        %v2055 = vld [vmem:[#allocation11 + $0xa0] sm:$0xff]
        %v2056 = vld [vmem:[#allocation11 + $0xa8] sm:$0xff]
        %v2057 = vld [vmem:[#allocation11 + $0xb0] sm:$0xff]
        %v2058 = vld [vmem:[#allocation11 + $0xb8] sm:$0xff]
        %v2059 = vld [vmem:[#allocation11 + $0xc0] sm:$0xff]
        %v2060 = vld [vmem:[#allocation11 + $0xc8] sm:$0xff]
        %v2061 = vld [vmem:[#allocation11 + $0xd0] sm:$0xff]
        %v2062 = vld [vmem:[#allocation11 + $0xd8] sm:$0xff]
        %v2063 = vld [vmem:[#allocation11 + $0xe0] sm:$0xff]
        %v2064 = vld [vmem:[#allocation11 + $0xe8] sm:$0xff]
        %v2065 = vld [vmem:[#allocation11 + $0xf0] sm:$0xff]
        %v2066 = vld [vmem:[#allocation11 + $0xf8] sm:$0xff]
        %v2067 = vld [vmem:[#allocation11 + $0x100] sm:$0xff]
        %v2068 = vld [vmem:[#allocation11 + $0x108] sm:$0xff]
        %v2069 = vld [vmem:[#allocation11 + $0x110] sm:$0xff]
        %v2070 = vld [vmem:[#allocation11 + $0x118] sm:$0xff]
        %v2071 = vld [vmem:[#allocation11 + $0x120] sm:$0xff]
        %v2072 = vld [vmem:[#allocation11 + $0x128] sm:$0xff]
        %v2073 = vld [vmem:[#allocation11 + $0x130] sm:$0xff]
        %v2074 = vld [vmem:[#allocation11 + $0x138] sm:$0xff]
        %v2075 = vld [vmem:[#allocation11 + $0x140] sm:$0xff]
        %v2076 = vld [vmem:[#allocation11 + $0x148] sm:$0xff]
        %v2077 = vld [vmem:[#allocation11 + $0x150] sm:$0xff]
        %v2078 = vld [vmem:[#allocation11 + $0x158] sm:$0xff]
        %v2079 = vld [vmem:[#allocation11 + $0x160] sm:$0xff]
        %v2080 = vld [vmem:[#allocation11 + $0x168] sm:$0xff]
        %v2081 = vld [vmem:[#allocation11 + $0x170] sm:$0xff]
        %v2082 = vld [vmem:[#allocation11 + $0x178] sm:$0xff]
        %v2083 = vld [vmem:[#allocation11 + $0x180] sm:$0xff]
        %v2084 = vld [vmem:[#allocation11 + $0x188] sm:$0xff]
        %v2085 = vld [vmem:[#allocation11 + $0x190] sm:$0xff]
        %v2086 = vld [vmem:[#allocation11 + $0x198] sm:$0xff]
        %v2087 = vld [vmem:[#allocation11 + $0x1a0] sm:$0xff]
        %v2088 = vld [vmem:[#allocation11 + $0x1a8] sm:$0xff]
        %v2089 = vld [vmem:[#allocation11 + $0x1b0] sm:$0xff]
        %v2090 = vld [vmem:[#allocation11 + $0x1b8] sm:$0xff]
        %v2091 = vld [vmem:[#allocation11 + $0x1c0] sm:$0xff]
        %v2092 = vld [vmem:[#allocation11 + $0x1c8] sm:$0xff]
        %v2093 = vld [vmem:[#allocation11 + $0x1d0] sm:$0xff]
        %v2094 = vld [vmem:[#allocation11 + $0x1d8] sm:$0xff]
        %v2095 = vld [vmem:[#allocation11 + $0x1e0] sm:$0xff]
        %v2096 = vld [vmem:[#allocation11 + $0x1e8] sm:$0xff]
        %v2097 = vld [vmem:[#allocation11 + $0x1f0] sm:$0xff]
        %v2098 = vld [vmem:[#allocation11 + $0x1f8] sm:$0xff]
        %v2099 = vld [vmem:[#allocation11 + $0x200] sm:$0xff]
        %v2100 = vld [vmem:[#allocation11 + $0x208] sm:$0xff]
        %v2101 = vld [vmem:[#allocation11 + $0x210] sm:$0xff]
        %v2102 = vld [vmem:[#allocation11 + $0x218] sm:$0xff]
        %v2103 = vld [vmem:[#allocation11 + $0x220] sm:$0xff]
        %v2104 = vld [vmem:[#allocation11 + $0x228] sm:$0xff]
        %v2105 = vld [vmem:[#allocation11 + $0x230] sm:$0xff]
        %v2106 = vld [vmem:[#allocation11 + $0x238] sm:$0xff]
        %v2107 = vld [vmem:[#allocation11 + $0x240] sm:$0xff]
        %v2108 = vld [vmem:[#allocation11 + $0x248] sm:$0xff]
        %v2109 = vld [vmem:[#allocation11 + $0x250] sm:$0xff]
        %v2110 = vld [vmem:[#allocation11 + $0x258] sm:$0xff]
        %v2111 = vld [vmem:[#allocation11 + $0x260] sm:$0xff]
        %v2112 = vld [vmem:[#allocation11 + $0x268] sm:$0xff]
        %v2113 = vld [vmem:[#allocation11 + $0x270] sm:$0xff]
        %v2114 = vld [vmem:[#allocation11 + $0x278] sm:$0xff]
        %v2115 = vld [vmem:[#allocation11 + $0x280] sm:$0xff]
        %v2116 = vld [vmem:[#allocation11 + $0x288] sm:$0xff]
        %v2117 = vld [vmem:[#allocation11 + $0x290] sm:$0xff]
        %v2118 = vld [vmem:[#allocation11 + $0x298] sm:$0xff]
        %v2119 = vld [vmem:[#allocation11 + $0x2a0] sm:$0xff]
        %v2120 = vld [vmem:[#allocation11 + $0x2a8] sm:$0xff]
        %v2121 = vld [vmem:[#allocation11 + $0x2b0] sm:$0xff]
        %v2122 = vld [vmem:[#allocation11 + $0x2b8] sm:$0xff]
        %v2123 = vld [vmem:[#allocation11 + $0x2c0] sm:$0xff]
        %v2124 = vld [vmem:[#allocation11 + $0x2c8] sm:$0xff]
        %v2125 = vld [vmem:[#allocation11 + $0x2d0] sm:$0xff]
        %v2126 = vld [vmem:[#allocation11 + $0x2d8] sm:$0xff]
        %v2127 = vld [vmem:[#allocation11 + $0x2e0] sm:$0xff]
        %v2128 = vld [vmem:[#allocation11 + $0x2e8] sm:$0xff]
        %v2129 = vld [vmem:[#allocation11 + $0x2f0] sm:$0xff]
        %v2130 = vld [vmem:[#allocation11 + $0x2f8] sm:$0xff]
        %2131 = vmatprep.subr.mxu0 %v2081
        %2132 = vmatpush1.msra.mxu0 %v2080
        %2133 = vmatprep.subr.mxu0 %v2078
        %2134 = vmatpush1.msra.mxu0 %v2077
        %2135 = vmatprep.subr.mxu0 %v2075
        %2136 = vmatpush1.msra.mxu0 %v2074
        %2137 = vmatprep.subr.mxu0 %v2072
        %2138 = vmatpush1.msra.mxu0 %v2071
        %2139 = vmatprep.subr.mxu0 %v2069
        %2140 = vmatpush1.msra.mxu0 %v2068
        %2141 = vmatprep.subr.mxu0 %v2066
        %2142 = vmatpush1.msra.mxu0 %v2065
        %2143 = vmatprep.subr.mxu0 %v2063
        %2144 = vmatpush1.msra.mxu0 %v2062
        %2145 = vmatprep.subr.mxu0 %v2060
        %2146 = vmatpush1.msra.mxu0 %v2059
        %2147 = vmatprep.subr.mxu0 %v2057
        %2148 = vmatpush1.msra.mxu0 %v2056
        %2149 = vmatprep.subr.mxu0 %v2054
        %2150 = vmatpush1.msra.mxu0 %v2053
        %2151 = vmatprep.subr.mxu0 %v2051
        %2152 = vmatpush1.msra.mxu0 %v2050
        %2153 = vmatprep.subr.mxu0 %v2048
        %2154 = vmatpush1.msra.mxu0 %v2047
        %2155 = vmatprep.subr.mxu0 %v2045
        %2156 = vmatpush1.msra.mxu0 %v2044
        %2157 = vmatprep.subr.mxu0 %v2042
        %2158 = vmatpush1.msra.mxu0 %v2041
        %2159 = vmatprep.subr.mxu0 %v2039
        %2160 = vmatpush1.msra.mxu0 %v2038
        %2161 = vmatprep.subr.mxu0 %v2036
        %2162 = vmatpush1.msra.mxu0 %v2035
        %2163 = vmatprep.subr.mxu0 %v2129
        %2164 = vmatpush2.msra.mxu0 %v2128
        %2165 = vmatprep.subr.mxu0 %v2126
        %2166 = vmatpush2.msra.mxu0 %v2125
        %2167 = vmatprep.subr.mxu0 %v2123
        %2168 = vmatpush2.msra.mxu0 %v2122
        %2169 = vmatprep.subr.mxu0 %v2120
        %2170 = vmatpush2.msra.mxu0 %v2119
        %2171 = vmatprep.subr.mxu0 %v2117
        %2172 = vmatpush2.msra.mxu0 %v2116
        %2173 = vmatprep.subr.mxu0 %v2114
        %2174 = vmatpush2.msra.mxu0 %v2113
        %2175 = vmatprep.subr.mxu0 %v2111
        %2176 = vmatpush2.msra.mxu0 %v2110
        %2177 = vmatprep.subr.mxu0 %v2108
        %2178 = vmatpush2.msra.mxu0 %v2107
        %2179 = vmatprep.subr.mxu0 %v2105
        %2180 = vmatpush2.msra.mxu0 %v2104
        %2181 = vmatprep.subr.mxu0 %v2102
        %2182 = vmatpush2.msra.mxu0 %v2101
        %2183 = vmatprep.subr.mxu0 %v2099
        %2184 = vmatpush2.msra.mxu0 %v2098
        %2185 = vmatprep.subr.mxu0 %v2096
        %2186 = vmatpush2.msra.mxu0 %v2095
        %2187 = vmatprep.subr.mxu0 %v2093
        %2188 = vmatpush2.msra.mxu0 %v2092
        %2189 = vmatprep.subr.mxu0 %v2090
        %2190 = vmatpush2.msra.mxu0 %v2089
        %2191 = vmatprep.subr.mxu0 %v2087
        %2192 = vmatpush2.msra.mxu0 %v2086
        %2193 = vmatprep.subr.mxu0 %v2084
        %2194 = vmatpush2.msra.mxu0 %v2083
        %2195 = vmatprep.mubr.f32.mxu0 %v1877
        %2196 = vmatmul.mubr.f32.gmra.mxu0 %v1802
        %v2197 = vpop.f32.mrf.mxu0
        %v2198 = vadd.f32 0.0, %v2197
        %v2199 = vpop.f32.mrf.mxu0
        %v2200 = vadd.f32 0.0, %v2199
        %2201 = vmatprep.mubr.f32.mxu0 %v1882
        %2202 = vmatmul.mubr.f32.gmra.mxu0 %v1807
        %v2203 = vpop.f32.mrf.mxu0
        %v2204 = vadd.f32 0.0, %v2203
        %v2205 = vpop.f32.mrf.mxu0
        %v2206 = vadd.f32 0.0, %v2205
        %2207 = vdwg.mxu0
        %2208 = vmatprep.subr.mxu0 0.0
        %2209 = vmatpush1.msra.mxu0 %v2082
        %2210 = vmatprep.subr.mxu0 0.0
        %2211 = vmatpush1.msra.mxu0 %v2079
        %2212 = vmatprep.subr.mxu0 0.0
        %2213 = vmatpush1.msra.mxu0 %v2076
        %2214 = vmatprep.subr.mxu0 0.0
        %2215 = vmatpush1.msra.mxu0 %v2073
        %2216 = vmatprep.subr.mxu0 0.0
        %2217 = vmatpush1.msra.mxu0 %v2070
        %2218 = vmatprep.subr.mxu0 0.0
        %2219 = vmatpush1.msra.mxu0 %v2067
        %2220 = vmatprep.subr.mxu0 0.0
        %2221 = vmatpush1.msra.mxu0 %v2064
        %2222 = vmatprep.subr.mxu0 0.0
        %2223 = vmatpush1.msra.mxu0 %v2061
        %2224 = vmatprep.subr.mxu0 0.0
        %2225 = vmatpush1.msra.mxu0 %v2058
        %2226 = vmatprep.subr.mxu0 0.0
        %2227 = vmatpush1.msra.mxu0 %v2055
        %2228 = vmatprep.subr.mxu0 0.0
        %2229 = vmatpush1.msra.mxu0 %v2052
        %2230 = vmatprep.subr.mxu0 0.0
        %2231 = vmatpush1.msra.mxu0 %v2049
        %2232 = vmatprep.subr.mxu0 0.0
        %2233 = vmatpush1.msra.mxu0 %v2046
        %2234 = vmatprep.subr.mxu0 0.0
        %2235 = vmatpush1.msra.mxu0 %v2043
        %2236 = vmatprep.subr.mxu0 0.0
        %2237 = vmatpush1.msra.mxu0 %v2040
        %2238 = vmatprep.subr.mxu0 0.0
        %2239 = vmatpush1.msra.mxu0 %v2037
        %2240 = vmatprep.subr.mxu0 0.0
        %2241 = vmatpush2.msra.mxu0 %v2130
        %2242 = vmatprep.subr.mxu0 0.0
        %2243 = vmatpush2.msra.mxu0 %v2127
        %2244 = vmatprep.subr.mxu0 0.0
        %2245 = vmatpush2.msra.mxu0 %v2124
        %2246 = vmatprep.subr.mxu0 0.0
        %2247 = vmatpush2.msra.mxu0 %v2121
        %2248 = vmatprep.subr.mxu0 0.0
        %2249 = vmatpush2.msra.mxu0 %v2118
        %2250 = vmatprep.subr.mxu0 0.0
        %2251 = vmatpush2.msra.mxu0 %v2115
        %2252 = vmatprep.subr.mxu0 0.0
        %2253 = vmatpush2.msra.mxu0 %v2112
        %2254 = vmatprep.subr.mxu0 0.0
        %2255 = vmatpush2.msra.mxu0 %v2109
        %2256 = vmatprep.subr.mxu0 0.0
        %2257 = vmatpush2.msra.mxu0 %v2106
        %2258 = vmatprep.subr.mxu0 0.0
        %2259 = vmatpush2.msra.mxu0 %v2103
        %2260 = vmatprep.subr.mxu0 0.0
        %2261 = vmatpush2.msra.mxu0 %v2100
        %2262 = vmatprep.subr.mxu0 0.0
        %2263 = vmatpush2.msra.mxu0 %v2097
        %2264 = vmatprep.subr.mxu0 0.0
        %2265 = vmatpush2.msra.mxu0 %v2094
        %2266 = vmatprep.subr.mxu0 0.0
        %2267 = vmatpush2.msra.mxu0 %v2091
        %2268 = vmatprep.subr.mxu0 0.0
        %2269 = vmatpush2.msra.mxu0 %v2088
        %2270 = vmatprep.subr.mxu0 0.0
        %2271 = vmatpush2.msra.mxu0 %v2085
        %2272 = vmatprep.mubr.f32.mxu0 %v1877
        %2273 = vmatmul.mubr.f32.gmra.mxu0 %v1802
        %v2274 = vpop.f32.mrf.mxu0
        %v2275 = vadd.f32 0.0, %v2274
        %v2276 = vpop.f32.mrf.mxu0
        %2277 = vmatprep.mubr.f32.mxu0 %v1882
        %2278 = vmatmul.mubr.f32.gmra.mxu0 %v1807
        %v2279 = vpop.f32.mrf.mxu0
        %v2280 = vadd.f32 0.0, %v2279
        %v2281 = vpop.f32.mrf.mxu0
        %2282 = vdwg.mxu0
        %v2283 = vld [vmem:[#allocation12] sm:$0xff]
        %v2284 = vld [vmem:[#allocation12 + $0x8] sm:$0xff]
        %v2285 = vld [vmem:[#allocation12 + $0x10] sm:$0xff]
        %v2286 = vld [vmem:[#allocation12 + $0x18] sm:$0xff]
        %v2287 = vld [vmem:[#allocation12 + $0x20] sm:$0xff]
        %v2288 = vld [vmem:[#allocation12 + $0x28] sm:$0xff]
        %v2289 = vld [vmem:[#allocation12 + $0x30] sm:$0xff]
        %v2290 = vld [vmem:[#allocation12 + $0x38] sm:$0xff]
        %v2291 = vld [vmem:[#allocation12 + $0x40] sm:$0xff]
        %v2292 = vld [vmem:[#allocation12 + $0x48] sm:$0xff]
        %v2293 = vld [vmem:[#allocation12 + $0x50] sm:$0xff]
        %v2294 = vld [vmem:[#allocation12 + $0x58] sm:$0xff]
        %v2295 = vld [vmem:[#allocation12 + $0x60] sm:$0xff]
        %v2296 = vld [vmem:[#allocation12 + $0x68] sm:$0xff]
        %v2297 = vld [vmem:[#allocation12 + $0x70] sm:$0xff]
        %v2298 = vld [vmem:[#allocation12 + $0x78] sm:$0xff]
        %v2299 = vld [vmem:[#allocation12 + $0x80] sm:$0xff]
        %v2300 = vld [vmem:[#allocation12 + $0x88] sm:$0xff]
        %v2301 = vld [vmem:[#allocation12 + $0x90] sm:$0xff]
        %v2302 = vld [vmem:[#allocation12 + $0x98] sm:$0xff]
        %v2303 = vld [vmem:[#allocation12 + $0xa0] sm:$0xff]
        %v2304 = vld [vmem:[#allocation12 + $0xa8] sm:$0xff]
        %v2305 = vld [vmem:[#allocation12 + $0xb0] sm:$0xff]
        %v2306 = vld [vmem:[#allocation12 + $0xb8] sm:$0xff]
        %v2307 = vld [vmem:[#allocation12 + $0xc0] sm:$0xff]
        %v2308 = vld [vmem:[#allocation12 + $0xc8] sm:$0xff]
        %v2309 = vld [vmem:[#allocation12 + $0xd0] sm:$0xff]
        %v2310 = vld [vmem:[#allocation12 + $0xd8] sm:$0xff]
        %v2311 = vld [vmem:[#allocation12 + $0xe0] sm:$0xff]
        %v2312 = vld [vmem:[#allocation12 + $0xe8] sm:$0xff]
        %v2313 = vld [vmem:[#allocation12 + $0xf0] sm:$0xff]
        %v2314 = vld [vmem:[#allocation12 + $0xf8] sm:$0xff]
        %v2315 = vld [vmem:[#allocation12 + $0x100] sm:$0xff]
        %v2316 = vld [vmem:[#allocation12 + $0x108] sm:$0xff]
        %v2317 = vld [vmem:[#allocation12 + $0x110] sm:$0xff]
        %v2318 = vld [vmem:[#allocation12 + $0x118] sm:$0xff]
        %v2319 = vld [vmem:[#allocation12 + $0x120] sm:$0xff]
        %v2320 = vld [vmem:[#allocation12 + $0x128] sm:$0xff]
        %v2321 = vld [vmem:[#allocation12 + $0x130] sm:$0xff]
        %v2322 = vld [vmem:[#allocation12 + $0x138] sm:$0xff]
        %v2323 = vld [vmem:[#allocation12 + $0x140] sm:$0xff]
        %v2324 = vld [vmem:[#allocation12 + $0x148] sm:$0xff]
        %v2325 = vld [vmem:[#allocation12 + $0x150] sm:$0xff]
        %v2326 = vld [vmem:[#allocation12 + $0x158] sm:$0xff]
        %v2327 = vld [vmem:[#allocation12 + $0x160] sm:$0xff]
        %v2328 = vld [vmem:[#allocation12 + $0x168] sm:$0xff]
        %v2329 = vld [vmem:[#allocation12 + $0x170] sm:$0xff]
        %v2330 = vld [vmem:[#allocation12 + $0x178] sm:$0xff]
        %v2331 = vld [vmem:[#allocation12 + $0x180] sm:$0xff]
        %v2332 = vld [vmem:[#allocation12 + $0x188] sm:$0xff]
        %v2333 = vld [vmem:[#allocation12 + $0x190] sm:$0xff]
        %v2334 = vld [vmem:[#allocation12 + $0x198] sm:$0xff]
        %v2335 = vld [vmem:[#allocation12 + $0x1a0] sm:$0xff]
        %v2336 = vld [vmem:[#allocation12 + $0x1a8] sm:$0xff]
        %v2337 = vld [vmem:[#allocation12 + $0x1b0] sm:$0xff]
        %v2338 = vld [vmem:[#allocation12 + $0x1b8] sm:$0xff]
        %v2339 = vld [vmem:[#allocation12 + $0x1c0] sm:$0xff]
        %v2340 = vld [vmem:[#allocation12 + $0x1c8] sm:$0xff]
        %v2341 = vld [vmem:[#allocation12 + $0x1d0] sm:$0xff]
        %v2342 = vld [vmem:[#allocation12 + $0x1d8] sm:$0xff]
        %v2343 = vld [vmem:[#allocation12 + $0x1e0] sm:$0xff]
        %v2344 = vld [vmem:[#allocation12 + $0x1e8] sm:$0xff]
        %v2345 = vld [vmem:[#allocation12 + $0x1f0] sm:$0xff]
        %v2346 = vld [vmem:[#allocation12 + $0x1f8] sm:$0xff]
        %v2347 = vld [vmem:[%s12] sm:$0x3]
        %v2349 = vlaneseq
        %v2350 = vshrl.u32 %v2349, 7
        %v2351 = vsub.s32 0, %v2350
        %v2352 = vrot.slane %v2347, %v2351
        %v2353 = vlaneseq
        %v2354 = vshrl.u32 %v2353, 7
        %v2355 = vsub.s32 1, %v2354
        %v2356 = vrot.slane %v2347, %v2355
        %2359 = vmatprep.subr.mxu0 %v2314
        %2360 = vmatpush1.msra.mxu0 %v2313
        %2361 = vmatprep.subr.mxu0 %v2312
        %2362 = vmatpush1.msra.mxu0 %v2311
        %2363 = vmatprep.subr.mxu0 %v2310
        %2364 = vmatpush1.msra.mxu0 %v2309
        %2365 = vmatprep.subr.mxu0 %v2308
        %2366 = vmatpush1.msra.mxu0 %v2307
        %2367 = vmatprep.subr.mxu0 %v2306
        %2368 = vmatpush1.msra.mxu0 %v2305
        %2369 = vmatprep.subr.mxu0 %v2304
        %2370 = vmatpush1.msra.mxu0 %v2303
        %2371 = vmatprep.subr.mxu0 %v2302
        %2372 = vmatpush1.msra.mxu0 %v2301
        %2373 = vmatprep.subr.mxu0 %v2300
        %2374 = vmatpush1.msra.mxu0 %v2299
        %2375 = vmatprep.subr.mxu0 %v2298
        %2376 = vmatpush1.msra.mxu0 %v2297
        %2377 = vmatprep.subr.mxu0 %v2296
        %2378 = vmatpush1.msra.mxu0 %v2295
        %2379 = vmatprep.subr.mxu0 %v2294
        %2380 = vmatpush1.msra.mxu0 %v2293
        %2381 = vmatprep.subr.mxu0 %v2292
        %2382 = vmatpush1.msra.mxu0 %v2291
        %2383 = vmatprep.subr.mxu0 %v2290
        %2384 = vmatpush1.msra.mxu0 %v2289
        %2385 = vmatprep.subr.mxu0 %v2288
        %2386 = vmatpush1.msra.mxu0 %v2287
        %2387 = vmatprep.subr.mxu0 %v2286
        %2388 = vmatpush1.msra.mxu0 %v2285
        %2389 = vmatprep.subr.mxu0 %v2284
        %2390 = vmatpush1.msra.mxu0 %v2283
        %2391 = vmatprep.subr.mxu0 %v2346
        %2392 = vmatpush2.msra.mxu0 %v2345
        %2393 = vmatprep.subr.mxu0 %v2344
        %2394 = vmatpush2.msra.mxu0 %v2343
        %2395 = vmatprep.subr.mxu0 %v2342
        %2396 = vmatpush2.msra.mxu0 %v2341
        %2397 = vmatprep.subr.mxu0 %v2340
        %2398 = vmatpush2.msra.mxu0 %v2339
        %2399 = vmatprep.subr.mxu0 %v2338
        %2400 = vmatpush2.msra.mxu0 %v2337
        %2401 = vmatprep.subr.mxu0 %v2336
        %2402 = vmatpush2.msra.mxu0 %v2335
        %2403 = vmatprep.subr.mxu0 %v2334
        %2404 = vmatpush2.msra.mxu0 %v2333
        %2405 = vmatprep.subr.mxu0 %v2332
        %2406 = vmatpush2.msra.mxu0 %v2331
        %2407 = vmatprep.subr.mxu0 %v2330
        %2408 = vmatpush2.msra.mxu0 %v2329
        %2409 = vmatprep.subr.mxu0 %v2328
        %2410 = vmatpush2.msra.mxu0 %v2327
        %2411 = vmatprep.subr.mxu0 %v2326
        %2412 = vmatpush2.msra.mxu0 %v2325
        %2413 = vmatprep.subr.mxu0 %v2324
        %2414 = vmatpush2.msra.mxu0 %v2323
        %2415 = vmatprep.subr.mxu0 %v2322
        %2416 = vmatpush2.msra.mxu0 %v2321
        %2417 = vmatprep.subr.mxu0 %v2320
        %2418 = vmatpush2.msra.mxu0 %v2319
        %2419 = vmatprep.subr.mxu0 %v2318
        %2420 = vmatpush2.msra.mxu0 %v2317
        %2421 = vmatprep.subr.mxu0 %v2316
        %2422 = vmatpush2.msra.mxu0 %v2315
        %2423 = vmatprep.mubr.f32.mxu0 %v2027
        %2424 = vmatmul.mubr.f32.gmra.mxu0 %v1952
        %v2425 = vpop.f32.mrf.mxu0
        %v2426 = vadd.f32 %v2352, %v2425
        %v2427 = vpop.f32.mrf.mxu0
        %v2428 = vadd.f32 %v2356, %v2427
        %2429 = vmatprep.mubr.f32.mxu0 %v2032
        %2430 = vmatmul.mubr.f32.gmra.mxu0 %v1957
        %v2431 = vpop.f32.mrf.mxu0
        %v2432 = vadd.f32 %v2352, %v2431
        %v2433 = vpop.f32.mrf.mxu0
        %v2434 = vadd.f32 %v2356, %v2433
        %2435 = vdwg.mxu0
        %v2436 = vadd.f32 %v2198, %v2426
        %v2437 = vadd.f32 %v2200, %v2428
        %v2438 = vadd.f32 %v2204, %v2432
        %v2439 = vadd.f32 %v2206, %v2434
        %v2440 = vxor.u32 %v2436, 2147483648
        %v2441 = vxor.u32 %v2437, 2147483648
        %v2442 = vxor.u32 %v2438, 2147483648
        %v2443 = vxor.u32 %v2439, 2147483648
        %v2444 = vmul.f32 %v2440, 1.442695
        %v2445 = vpow.pop %v2444
        %v2446 = vmul.f32 %v2441, 1.442695
        %v2447 = vpow.pop %v2446
        %v2448 = vmul.f32 %v2442, 1.442695
        %v2449 = vpow.pop %v2448
        %v2450 = vmul.f32 %v2443, 1.442695
        %v2451 = vpow.pop %v2450
        %v2452 = vadd.f32 %v2445, 1.0
        %v2453 = vadd.f32 %v2447, 1.0
        %v2454 = vadd.f32 %v2449, 1.0
        %v2455 = vadd.f32 %v2451, 1.0
        %v2456 = vrcp.pop %v2452
        %v2457 = vmul.f32 1.0, %v2456
        %v2458 = vrcp.pop %v2453
        %v2459 = vmul.f32 1.0, %v2458
        %v2460 = vrcp.pop %v2454
        %v2461 = vmul.f32 1.0, %v2460
        %v2462 = vrcp.pop %v2455
        %v2463 = vmul.f32 1.0, %v2462
        %v2464 = vmul.f32 %v2459, %v1733
        %v2465 = vmul.f32 %v2463, %v1734
        %2466 = vmatprep.subr.mxu0 0.0
        %2467 = vmatpush1.msra.mxu0 0.0
        %2468 = vmatprep.subr.mxu0 0.0
        %2469 = vmatpush1.msra.mxu0 0.0
        %2470 = vmatprep.subr.mxu0 0.0
        %2471 = vmatpush1.msra.mxu0 0.0
        %2472 = vmatprep.subr.mxu0 0.0
        %2473 = vmatpush1.msra.mxu0 0.0
        %2474 = vmatprep.subr.mxu0 0.0
        %2475 = vmatpush1.msra.mxu0 0.0
        %2476 = vmatprep.subr.mxu0 0.0
        %2477 = vmatpush1.msra.mxu0 0.0
        %2478 = vmatprep.subr.mxu0 0.0
        %2479 = vmatpush1.msra.mxu0 0.0
        %2480 = vmatprep.subr.mxu0 0.0
        %2481 = vmatpush1.msra.mxu0 0.0
        %2482 = vmatprep.subr.mxu0 0.0
        %2483 = vmatpush1.msra.mxu0 0.0
        %2484 = vmatprep.subr.mxu0 0.0
        %2485 = vmatpush1.msra.mxu0 0.0
        %2486 = vmatprep.subr.mxu0 0.0
        %2487 = vmatpush1.msra.mxu0 0.0
        %2488 = vmatprep.subr.mxu0 0.0
        %2489 = vmatpush1.msra.mxu0 0.0
        %2490 = vmatprep.subr.mxu0 0.0
        %2491 = vmatpush1.msra.mxu0 0.0
        %2492 = vmatprep.subr.mxu0 0.0
        %2493 = vmatpush1.msra.mxu0 0.0
        %2494 = vmatprep.subr.mxu0 0.0
        %2495 = vmatpush1.msra.mxu0 %v2465
        %2496 = vmatprep.subr.mxu0 0.0
        %2497 = vmatpush1.msra.mxu0 %v2464
        %2498 = vmatprep.subr.mxu0 0.0
        %2499 = vmatpush2.msra.mxu0 0.0
        %2500 = vmatprep.subr.mxu0 0.0
        %2501 = vmatpush2.msra.mxu0 0.0
        %2502 = vmatprep.subr.mxu0 0.0
        %2503 = vmatpush2.msra.mxu0 0.0
        %2504 = vmatprep.subr.mxu0 0.0
        %2505 = vmatpush2.msra.mxu0 0.0
        %2506 = vmatprep.subr.mxu0 0.0
        %2507 = vmatpush2.msra.mxu0 0.0
        %2508 = vmatprep.subr.mxu0 0.0
        %2509 = vmatpush2.msra.mxu0 0.0
        %2510 = vmatprep.subr.mxu0 0.0
        %2511 = vmatpush2.msra.mxu0 0.0
        %2512 = vmatprep.subr.mxu0 0.0
        %2513 = vmatpush2.msra.mxu0 0.0
        %2514 = vmatprep.subr.mxu0 0.0
        %2515 = vmatpush2.msra.mxu0 0.0
        %2516 = vmatprep.subr.mxu0 0.0
        %2517 = vmatpush2.msra.mxu0 0.0
        %2518 = vmatprep.subr.mxu0 0.0
        %2519 = vmatpush2.msra.mxu0 0.0
        %2520 = vmatprep.subr.mxu0 0.0
        %2521 = vmatpush2.msra.mxu0 0.0
        %2522 = vmatprep.subr.mxu0 0.0
        %2523 = vmatpush2.msra.mxu0 0.0
        %2524 = vmatprep.subr.mxu0 0.0
        %2525 = vmatpush2.msra.mxu0 0.0
        %2526 = vmatprep.subr.mxu0 0.0
        %2527 = vmatpush2.msra.mxu0 0.0
        %2528 = vmatprep.subr.mxu0 0.0
        %2529 = vmatpush2.msra.mxu0 0.0
        %2530 = vmatprep.mubr.f32.mxu0 0.0
        %2531 = vmatmul.mubr.f32.gmra.mxu0 %v779
        %v2532 = vpop.f32.mrf.mxu0
        %v2533 = vadd.f32 0.0, %v2532
        %v2534 = vpop.f32.mrf.mxu0
        %2535 = vmatprep.mubr.f32.mxu0 0.0
        %2536 = vmatmul.mubr.f32.gmra.mxu0 %v782
        %v2537 = vpop.f32.mrf.mxu0
        %v2538 = vadd.f32 0.0, %v2537
        %v2539 = vpop.f32.mrf.mxu0
        %2540 = vdwg.mxu0
        %2541 = vmatprep.subr.mxu0 0.0
        %2542 = vmatpush1.msra.mxu0 0.0
        %2543 = vmatprep.subr.mxu0 0.0
        %2544 = vmatpush1.msra.mxu0 0.0
        %2545 = vmatprep.subr.mxu0 0.0
        %2546 = vmatpush1.msra.mxu0 0.0
        %2547 = vmatprep.subr.mxu0 0.0
        %2548 = vmatpush1.msra.mxu0 0.0
        %2549 = vmatprep.subr.mxu0 0.0
        %2550 = vmatpush1.msra.mxu0 0.0
        %2551 = vmatprep.subr.mxu0 0.0
        %2552 = vmatpush1.msra.mxu0 0.0
        %2553 = vmatprep.subr.mxu0 0.0
        %2554 = vmatpush1.msra.mxu0 0.0
        %2555 = vmatprep.subr.mxu0 0.0
        %2556 = vmatpush1.msra.mxu0 0.0
        %2557 = vmatprep.subr.mxu0 0.0
        %2558 = vmatpush1.msra.mxu0 0.0
        %2559 = vmatprep.subr.mxu0 0.0
        %2560 = vmatpush1.msra.mxu0 0.0
        %2561 = vmatprep.subr.mxu0 0.0
        %2562 = vmatpush1.msra.mxu0 0.0
        %2563 = vmatprep.subr.mxu0 0.0
        %2564 = vmatpush1.msra.mxu0 0.0
        %2565 = vmatprep.subr.mxu0 0.0
        %2566 = vmatpush1.msra.mxu0 0.0
        %2567 = vmatprep.subr.mxu0 0.0
        %2568 = vmatpush1.msra.mxu0 0.0
        %2569 = vmatprep.subr.mxu0 0.0
        %2570 = vmatpush1.msra.mxu0 %v2465
        %2571 = vmatprep.subr.mxu0 0.0
        %2572 = vmatpush1.msra.mxu0 %v2464
        %2573 = vmatprep.subr.mxu0 0.0
        %2574 = vmatpush2.msra.mxu0 0.0
        %2575 = vmatprep.subr.mxu0 0.0
        %2576 = vmatpush2.msra.mxu0 0.0
        %2577 = vmatprep.subr.mxu0 0.0
        %2578 = vmatpush2.msra.mxu0 0.0
        %2579 = vmatprep.subr.mxu0 0.0
        %2580 = vmatpush2.msra.mxu0 0.0
        %2581 = vmatprep.subr.mxu0 0.0
        %2582 = vmatpush2.msra.mxu0 0.0
        %2583 = vmatprep.subr.mxu0 0.0
        %2584 = vmatpush2.msra.mxu0 0.0
        %2585 = vmatprep.subr.mxu0 0.0
        %2586 = vmatpush2.msra.mxu0 0.0
        %2587 = vmatprep.subr.mxu0 0.0
        %2588 = vmatpush2.msra.mxu0 0.0
        %2589 = vmatprep.subr.mxu0 0.0
        %2590 = vmatpush2.msra.mxu0 0.0
        %2591 = vmatprep.subr.mxu0 0.0
        %2592 = vmatpush2.msra.mxu0 0.0
        %2593 = vmatprep.subr.mxu0 0.0
        %2594 = vmatpush2.msra.mxu0 0.0
        %2595 = vmatprep.subr.mxu0 0.0
        %2596 = vmatpush2.msra.mxu0 0.0
        %2597 = vmatprep.subr.mxu0 0.0
        %2598 = vmatpush2.msra.mxu0 0.0
        %2599 = vmatprep.subr.mxu0 0.0
        %2600 = vmatpush2.msra.mxu0 0.0
        %2601 = vmatprep.subr.mxu0 0.0
        %2602 = vmatpush2.msra.mxu0 0.0
        %2603 = vmatprep.subr.mxu0 0.0
        %2604 = vmatpush2.msra.mxu0 0.0
        %2605 = vmatprep.mubr.f32.mxu0 0.0
        %2606 = vmatmul.mubr.f32.gmra.mxu0 %v860
        %v2607 = vpop.f32.mrf.mxu0
        %v2608 = vadd.f32 0.0, %v2607
        %v2609 = vpop.f32.mrf.mxu0
        %2610 = vmatprep.mubr.f32.mxu0 0.0
        %2611 = vmatmul.mubr.f32.gmra.mxu0 %v863
        %v2612 = vpop.f32.mrf.mxu0
        %v2613 = vadd.f32 0.0, %v2612
        %v2614 = vpop.f32.mrf.mxu0
        %2615 = vdwg.mxu0
        %v2616 = vld [vmem:[%s13] sm:$0x1]
        %v2618 = vlaneseq
        %v2619 = vshrl.u32 %v2618, 7
        %v2620 = vsub.s32 0, %v2619
        %v2621 = vrot.slane %v2616, %v2620
        %v2623 = vadd.f32 %v2275, %v2621
        %v2624 = vadd.f32 %v2280, %v2621
        %v2625 = vld [vmem:[#allocation13] sm:$0xff]
        %v2626 = vld [vmem:[#allocation13 + $0x8] sm:$0xff]
        %v2627 = vld [vmem:[#allocation13 + $0x10] sm:$0xff]
        %v2628 = vld [vmem:[#allocation13 + $0x18] sm:$0xff]
        %v2629 = vld [vmem:[#allocation13 + $0x20] sm:$0xff]
        %v2630 = vld [vmem:[#allocation13 + $0x28] sm:$0xff]
        %v2631 = vld [vmem:[#allocation13 + $0x30] sm:$0xff]
        %v2632 = vld [vmem:[#allocation13 + $0x38] sm:$0xff]
        %v2633 = vld [vmem:[#allocation13 + $0x40] sm:$0xff]
        %v2634 = vld [vmem:[#allocation13 + $0x48] sm:$0xff]
        %v2635 = vld [vmem:[#allocation13 + $0x50] sm:$0xff]
        %v2636 = vld [vmem:[#allocation13 + $0x58] sm:$0xff]
        %v2637 = vld [vmem:[#allocation13 + $0x60] sm:$0xff]
        %v2638 = vld [vmem:[#allocation13 + $0x68] sm:$0xff]
        %v2639 = vld [vmem:[#allocation13 + $0x70] sm:$0xff]
        %v2640 = vld [vmem:[#allocation13 + $0x78] sm:$0xff]
        %v2641 = vld [vmem:[#allocation13 + $0x80] sm:$0xff]
        %v2642 = vld [vmem:[#allocation13 + $0x88] sm:$0xff]
        %v2643 = vld [vmem:[#allocation13 + $0x90] sm:$0xff]
        %v2644 = vld [vmem:[#allocation13 + $0x98] sm:$0xff]
        %v2645 = vld [vmem:[#allocation13 + $0xa0] sm:$0xff]
        %v2646 = vld [vmem:[#allocation13 + $0xa8] sm:$0xff]
        %v2647 = vld [vmem:[#allocation13 + $0xb0] sm:$0xff]
        %v2648 = vld [vmem:[#allocation13 + $0xb8] sm:$0xff]
        %v2649 = vld [vmem:[#allocation13 + $0xc0] sm:$0xff]
        %v2650 = vld [vmem:[#allocation13 + $0xc8] sm:$0xff]
        %v2651 = vld [vmem:[#allocation13 + $0xd0] sm:$0xff]
        %v2652 = vld [vmem:[#allocation13 + $0xd8] sm:$0xff]
        %v2653 = vld [vmem:[#allocation13 + $0xe0] sm:$0xff]
        %v2654 = vld [vmem:[#allocation13 + $0xe8] sm:$0xff]
        %v2655 = vld [vmem:[#allocation13 + $0xf0] sm:$0xff]
        %v2656 = vld [vmem:[#allocation13 + $0xf8] sm:$0xff]
        %2657 = vmatprep.subr.mxu0 0.0
        %2658 = vmatpush1.msra.mxu0 %v2640
        %2659 = vmatprep.subr.mxu0 0.0
        %2660 = vmatpush1.msra.mxu0 %v2639
        %2661 = vmatprep.subr.mxu0 0.0
        %2662 = vmatpush1.msra.mxu0 %v2638
        %2663 = vmatprep.subr.mxu0 0.0
        %2664 = vmatpush1.msra.mxu0 %v2637
        %2665 = vmatprep.subr.mxu0 0.0
        %2666 = vmatpush1.msra.mxu0 %v2636
        %2667 = vmatprep.subr.mxu0 0.0
        %2668 = vmatpush1.msra.mxu0 %v2635
        %2669 = vmatprep.subr.mxu0 0.0
        %2670 = vmatpush1.msra.mxu0 %v2634
        %2671 = vmatprep.subr.mxu0 0.0
        %2672 = vmatpush1.msra.mxu0 %v2633
        %2673 = vmatprep.subr.mxu0 0.0
        %2674 = vmatpush1.msra.mxu0 %v2632
        %2675 = vmatprep.subr.mxu0 0.0
        %2676 = vmatpush1.msra.mxu0 %v2631
        %2677 = vmatprep.subr.mxu0 0.0
        %2678 = vmatpush1.msra.mxu0 %v2630
        %2679 = vmatprep.subr.mxu0 0.0
        %2680 = vmatpush1.msra.mxu0 %v2629
        %2681 = vmatprep.subr.mxu0 0.0
        %2682 = vmatpush1.msra.mxu0 %v2628
        %2683 = vmatprep.subr.mxu0 0.0
        %2684 = vmatpush1.msra.mxu0 %v2627
        %2685 = vmatprep.subr.mxu0 0.0
        %2686 = vmatpush1.msra.mxu0 %v2626
        %2687 = vmatprep.subr.mxu0 0.0
        %2688 = vmatpush1.msra.mxu0 %v2625
        %2689 = vmatprep.subr.mxu0 0.0
        %2690 = vmatpush2.msra.mxu0 %v2656
        %2691 = vmatprep.subr.mxu0 0.0
        %2692 = vmatpush2.msra.mxu0 %v2655
        %2693 = vmatprep.subr.mxu0 0.0
        %2694 = vmatpush2.msra.mxu0 %v2654
        %2695 = vmatprep.subr.mxu0 0.0
        %2696 = vmatpush2.msra.mxu0 %v2653
        %2697 = vmatprep.subr.mxu0 0.0
        %2698 = vmatpush2.msra.mxu0 %v2652
        %2699 = vmatprep.subr.mxu0 0.0
        %2700 = vmatpush2.msra.mxu0 %v2651
        %2701 = vmatprep.subr.mxu0 0.0
        %2702 = vmatpush2.msra.mxu0 %v2650
        %2703 = vmatprep.subr.mxu0 0.0
        %2704 = vmatpush2.msra.mxu0 %v2649
        %2705 = vmatprep.subr.mxu0 0.0
        %2706 = vmatpush2.msra.mxu0 %v2648
        %2707 = vmatprep.subr.mxu0 0.0
        %2708 = vmatpush2.msra.mxu0 %v2647
        %2709 = vmatprep.subr.mxu0 0.0
        %2710 = vmatpush2.msra.mxu0 %v2646
        %2711 = vmatprep.subr.mxu0 0.0
        %2712 = vmatpush2.msra.mxu0 %v2645
        %2713 = vmatprep.subr.mxu0 0.0
        %2714 = vmatpush2.msra.mxu0 %v2644
        %2715 = vmatprep.subr.mxu0 0.0
        %2716 = vmatpush2.msra.mxu0 %v2643
        %2717 = vmatprep.subr.mxu0 0.0
        %2718 = vmatpush2.msra.mxu0 %v2642
        %2719 = vmatprep.subr.mxu0 0.0
        %2720 = vmatpush2.msra.mxu0 %v2641
        %2721 = vmatprep.mubr.f32.mxu0 %v2608
        %2722 = vmatmul.mubr.f32.gmra.mxu0 %v2533
        %v2723 = vpop.f32.mrf.mxu0
        %v2724 = vadd.f32 0.0, %v2723
        %v2725 = vpop.f32.mrf.mxu0
        %2726 = vmatprep.mubr.f32.mxu0 %v2613
        %2727 = vmatmul.mubr.f32.gmra.mxu0 %v2538
        %v2728 = vpop.f32.mrf.mxu0
        %v2729 = vadd.f32 0.0, %v2728
        %v2730 = vpop.f32.mrf.mxu0
        %2731 = vdwg.mxu0
        %v2732 = vadd.f32 %v2623, %v2724
        %v2733 = vadd.f32 %v2624, %v2729
        %v2734 = vtanh.pop %v2732
        %v2735 = vtanh.pop %v2733
        %v2736 = vsub.f32 1.0, %v2457
        %v2737 = vsub.f32 1.0, %v2461
        %v2738 = vmul.f32 %v2736, %v1733
        %v2739 = vmul.f32 %v2737, %v1734
        %v2740 = vmul.f32 %v2457, %v2734
        %v2741 = vmul.f32 %v2461, %v2735
        %v2742 = vadd.f32 %v2738, %v2740
        %v2743 = vadd.f32 %v2739, %v2741
        %v2744 = vld [vmem:[#allocation15] sm:$0xff]
        %v2745 = vld [vmem:[#allocation15 + $0x8] sm:$0xff]
        %v2746 = vld [vmem:[#allocation15 + $0x10] sm:$0xff]
        %v2747 = vld [vmem:[#allocation15 + $0x18] sm:$0xff]
        %v2748 = vld [vmem:[#allocation15 + $0x20] sm:$0xff]
        %v2749 = vld [vmem:[#allocation15 + $0x28] sm:$0xff]
        %v2750 = vld [vmem:[#allocation15 + $0x30] sm:$0xff]
        %v2751 = vld [vmem:[#allocation15 + $0x38] sm:$0xff]
        %v2752 = vld [vmem:[#allocation15 + $0x40] sm:$0xff]
        %v2753 = vld [vmem:[#allocation15 + $0x48] sm:$0xff]
        %v2754 = vld [vmem:[#allocation15 + $0x50] sm:$0xff]
        %v2755 = vld [vmem:[#allocation15 + $0x58] sm:$0xff]
        %v2756 = vld [vmem:[#allocation15 + $0x60] sm:$0xff]
        %v2757 = vld [vmem:[#allocation15 + $0x68] sm:$0xff]
        %v2758 = vld [vmem:[#allocation15 + $0x70] sm:$0xff]
        %v2759 = vld [vmem:[#allocation15 + $0x78] sm:$0xff]
        %v2760 = vld [vmem:[%s15] sm:$0x1]
        %v2762 = vlaneseq
        %v2763 = vshrl.u32 %v2762, 7
        %v2764 = vsub.s32 0, %v2763
        %v2765 = vrot.slane %v2760, %v2764
        %2767 = vmatprep.subr.mxu0 0.0
        %2768 = vmatpush1.msra.mxu0 %v2759
        %2769 = vmatprep.subr.mxu0 0.0
        %2770 = vmatpush1.msra.mxu0 %v2758
        %2771 = vmatprep.subr.mxu0 0.0
        %2772 = vmatpush1.msra.mxu0 %v2757
        %2773 = vmatprep.subr.mxu0 0.0
        %2774 = vmatpush1.msra.mxu0 %v2756
        %2775 = vmatprep.subr.mxu0 0.0
        %2776 = vmatpush1.msra.mxu0 %v2755
        %2777 = vmatprep.subr.mxu0 0.0
        %2778 = vmatpush1.msra.mxu0 %v2754
        %2779 = vmatprep.subr.mxu0 0.0
        %2780 = vmatpush1.msra.mxu0 %v2753
        %2781 = vmatprep.subr.mxu0 0.0
        %2782 = vmatpush1.msra.mxu0 %v2752
        %2783 = vmatprep.subr.mxu0 0.0
        %2784 = vmatpush1.msra.mxu0 %v2751
        %2785 = vmatprep.subr.mxu0 0.0
        %2786 = vmatpush1.msra.mxu0 %v2750
        %2787 = vmatprep.subr.mxu0 0.0
        %2788 = vmatpush1.msra.mxu0 %v2749
        %2789 = vmatprep.subr.mxu0 0.0
        %2790 = vmatpush1.msra.mxu0 %v2748
        %2791 = vmatprep.subr.mxu0 0.0
        %2792 = vmatpush1.msra.mxu0 %v2747
        %2793 = vmatprep.subr.mxu0 0.0
        %2794 = vmatpush1.msra.mxu0 %v2746
        %2795 = vmatprep.subr.mxu0 0.0
        %2796 = vmatpush1.msra.mxu0 %v2745
        %2797 = vmatprep.subr.mxu0 0.0
        %2798 = vmatpush1.msra.mxu0 %v2744
        %2799 = vmatprep.subr.mxu0 0.0
        %2800 = vmatpush2.msra.mxu0 0.0
        %2801 = vmatprep.subr.mxu0 0.0
        %2802 = vmatpush2.msra.mxu0 0.0
        %2803 = vmatprep.subr.mxu0 0.0
        %2804 = vmatpush2.msra.mxu0 0.0
        %2805 = vmatprep.subr.mxu0 0.0
        %2806 = vmatpush2.msra.mxu0 0.0
        %2807 = vmatprep.subr.mxu0 0.0
        %2808 = vmatpush2.msra.mxu0 0.0
        %2809 = vmatprep.subr.mxu0 0.0
        %2810 = vmatpush2.msra.mxu0 0.0
        %2811 = vmatprep.subr.mxu0 0.0
        %2812 = vmatpush2.msra.mxu0 0.0
        %2813 = vmatprep.subr.mxu0 0.0
        %2814 = vmatpush2.msra.mxu0 0.0
        %2815 = vmatprep.subr.mxu0 0.0
        %2816 = vmatpush2.msra.mxu0 0.0
        %2817 = vmatprep.subr.mxu0 0.0
        %2818 = vmatpush2.msra.mxu0 0.0
        %2819 = vmatprep.subr.mxu0 0.0
        %2820 = vmatpush2.msra.mxu0 0.0
        %2821 = vmatprep.subr.mxu0 0.0
        %2822 = vmatpush2.msra.mxu0 0.0
        %2823 = vmatprep.subr.mxu0 0.0
        %2824 = vmatpush2.msra.mxu0 0.0
        %2825 = vmatprep.subr.mxu0 0.0
        %2826 = vmatpush2.msra.mxu0 0.0
        %2827 = vmatprep.subr.mxu0 0.0
        %2828 = vmatpush2.msra.mxu0 0.0
        %2829 = vmatprep.subr.mxu0 0.0
        %2830 = vmatpush2.msra.mxu0 0.0
        %2831 = vmatprep.mubr.f32.mxu0 0.0
        %2832 = vmatmul.mubr.f32.gmra.mxu0 %v2742
        %v2833 = vpop.f32.mrf.mxu0
        %v2834 = vadd.f32 %v2765, %v2833
        %v2835 = vpop.f32.mrf.mxu0
        %2836 = vmatprep.mubr.f32.mxu0 0.0
        %2837 = vmatmul.mubr.f32.gmra.mxu0 %v2743
        %v2838 = vpop.f32.mrf.mxu0
        %v2839 = vadd.f32 %v2765, %v2838
        %v2840 = vpop.f32.mrf.mxu0
        %2841 = vdwg.mxu0
        %2842 = vst [vmem:[%s748] sm:$0xff] %v2834
        %2843 = vst [vmem:[%s748 + $0x8] sm:$0xff] %v2839
        %2844 = vst [vmem:[%s755] sm:$0xff] %v1731
        %2845 = vst [vmem:[%s755 + $0x8] sm:$0xff] %v1732
        %2846 = vst [vmem:[%s762] sm:$0xff] %v2742
        %2847 = vst [vmem:[%s762 + $0x8] sm:$0xff] %v2743
        %s2848 = sand.u32 %s401, 1
        %s2849 = scalar_lea.sflag [#allocation4], %s2848
        %s2850 = sand.u32 %s401, 1
        %s2851 = smul.addr %s2850, 16
        %s2852 = scalar_lea.vmem [#allocation16], %s2851
        %s2853 = sand.u32 %s42, 1
        %s2854 = scalar_lea.sflag [#allocation18], %s2853
        %s2855 = sand.u32 %s427, 1
        %s2856 = smul.addr %s2855, 16
        %s2857 = scalar_lea.vmem [#allocation17], %s2856
        %s2858 = sand.u32 %s42, 1
        %s2859 = scalar_lea.sflag [#allocation18], %s2858
        %s2860 = sand.u32 %s453, 1
        %s2861 = smul.addr %s2860, 16
        %s2862 = scalar_lea.vmem [#allocation19], %s2861
        // Predicated region
        $region121: #{tpu_custom_call.1} parent=83 // pred_check
          %p2863 = pneg %p411
        $region122: #{tpu_custom_call.1} parent=83 // pred_check_branch
          %2865 = sbr.rel (%p2863) target = $region124
        $region123: #{tpu_custom_call.1} parent=83 // pred_region
          %s2867 = ssub.s32 256, 256
          %2868 = vsyncadd %s2849, %s2867
          %s2869 = smul.addr %s42, 2
          %s2870 = smul.addr %s2869, 128
          %s2871 = scalar_lea.hbm %s16, %s2870
          %s2872 = sshll.u32 %s2852, 4
          %s2873 = int_to_ptr.vmem [resolvable:$true] %s2872
          %2878 = dma.vmem_to_hbm [thread:$0]  %s2873, 256, %s2871, %s2849, 128, 128, 8
        $region124: #{tpu_custom_call.1} parent=83 // pred_fallthru
          _
        // Predicated region
        $region125: #{tpu_custom_call.1} parent=83 // pred_check
          %p2879 = pneg %p437
        $region126: #{tpu_custom_call.1} parent=83 // pred_check_branch
          %2881 = sbr.rel (%p2879) target = $region128
        $region127: #{tpu_custom_call.1} parent=83 // pred_region
          %s2883 = ssub.s32 256, 256
          %2884 = vsyncadd %s2854, %s2883
          %s2885 = smul.addr %s42, 2
          %s2886 = smul.addr %s2885, 128
          %s2887 = scalar_lea.hbm %s17, %s2886
          %s2888 = sshll.u32 %s2857, 4
          %s2889 = int_to_ptr.vmem [resolvable:$true] %s2888
          %2894 = dma.vmem_to_hbm [thread:$0]  %s2889, 256, %s2887, %s2854, 128, 128, 8
        $region128: #{tpu_custom_call.1} parent=83 // pred_fallthru
          _
        // Predicated region
        $region129: #{tpu_custom_call.1} parent=83 // pred_check
          %p2895 = pneg %p463
        $region130: #{tpu_custom_call.1} parent=83 // pred_check_branch
          %2897 = sbr.rel (%p2895) target = $region132
        $region131: #{tpu_custom_call.1} parent=83 // pred_region
          %s2899 = ssub.s32 256, 256
          %2900 = vsyncadd %s2859, %s2899
          %s2901 = smul.addr %s42, 2
          %s2902 = smul.addr %s2901, 128
          %s2903 = scalar_lea.hbm %s18, %s2902
          %s2904 = sshll.u32 %s2862, 4
          %s2905 = int_to_ptr.vmem [resolvable:$true] %s2904
          %2910 = dma.vmem_to_hbm [thread:$0]  %s2905, 256, %s2903, %s2859, 128, 128, 8
        $region132: #{tpu_custom_call.1} parent=83 // pred_fallthru
          _
      $region84: #{tpu_custom_call.1} parent=5 // pred_fallthru
        _
      %p2911 = scmp.le.s32.totalorder 2, %s37
      // Predicated region
      $region133: #{tpu_custom_call.1} parent=5 // pred_check
        %p2912 = pneg %p2911
      $region134: #{tpu_custom_call.1} parent=5 // pred_check_branch
        %2914 = sbr.rel (%p2912) target = $region136
      $region135: #{tpu_custom_call.1} parent=5 // pred_region
        %s2915 = ssub.s32 %s37, 2
        // Predicated region
        $region137: #{tpu_custom_call.1} parent=135 // pred_check
          %p2916 = pneg %p417
        $region138: #{tpu_custom_call.1} parent=135 // pred_check_branch
          %2918 = sbr.rel (%p2916) target = $region140
        $region139: #{tpu_custom_call.1} parent=135 // pred_region
          %s2919 = sand.u32 %s402, 1
          %s2920 = scalar_lea.sflag [#allocation4], %s2919
          %s2921 = sand.u32 %s402, 1
          %s2922 = smul.addr %s2921, 16
          %s2923 = scalar_lea.vmem [#allocation16], %s2922
          %2924 = dma.done %s2920, 256
        $region140: #{tpu_custom_call.1} parent=135 // pred_fallthru
          _
        // Predicated region
        $region141: #{tpu_custom_call.1} parent=135 // pred_check
          %p2925 = pneg %p443
        $region142: #{tpu_custom_call.1} parent=135 // pred_check_branch
          %2927 = sbr.rel (%p2925) target = $region144
        $region143: #{tpu_custom_call.1} parent=135 // pred_region
          %s2928 = sand.u32 %s43, 1
          %s2929 = scalar_lea.sflag [#allocation18], %s2928
          %s2930 = sand.u32 %s428, 1
          %s2931 = smul.addr %s2930, 16
          %s2932 = scalar_lea.vmem [#allocation17], %s2931
          %2933 = dma.done %s2929, 256
        $region144: #{tpu_custom_call.1} parent=135 // pred_fallthru
          _
        // Predicated region
        $region145: #{tpu_custom_call.1} parent=135 // pred_check
          %p2934 = pneg %p469
        $region146: #{tpu_custom_call.1} parent=135 // pred_check_branch
          %2936 = sbr.rel (%p2934) target = $region148
        $region147: #{tpu_custom_call.1} parent=135 // pred_region
          %s2937 = sand.u32 %s43, 1
          %s2938 = scalar_lea.sflag [#allocation18], %s2937
          %s2939 = sand.u32 %s454, 1
          %s2940 = smul.addr %s2939, 16
          %s2941 = scalar_lea.vmem [#allocation19], %s2940
          %2942 = dma.done %s2938, 256
        $region148: #{tpu_custom_call.1} parent=135 // pred_fallthru
          _
      $region136: #{tpu_custom_call.1} parent=5 // pred_fallthru
        _
    $region6: #{tpu_custom_call.1} parent=1 // loop_footer
      %s41 = sadd.s32 1, %s37
    $region7: #{tpu_custom_call.1} parent=1 // loop_footer_branch
      %36 = sbr.rel target = $region3
    $region8: #{tpu_custom_call.1} parent=1 // loop_exit
      _
    %2943 = vsyncpa [#allocation3], 1
    %s2944 = scalar_lea.sflag [#allocation3], 1
    %2945 = vsyncpa %s2944, 1
    %2946 = vsyncpa [#allocation6], 1
    %2947 = vsyncpa [#allocation9], 1
    %2948 = vsyncpa [#allocation14], 1
    %2949 = vsyncpa [#allocation4], 1
    %s2950 = scalar_lea.sflag [#allocation4], 1
    %2951 = vsyncpa %s2950, 1
    %2952 = vsyncpa [#allocation18], 1
    %s2953 = scalar_lea.sflag [#allocation18], 1
    %2954 = vsyncpa %s2953, 1

</llo_original>
